<compile_context>
chip_gen: v6e
topology: v6e:2x2x1
jax: 0.10.0
libtpu: 0.0.40
codegen_flags: <defaults>
</compile_context>

<pallas_src>
import jax
import jax.numpy as jnp
from jax import lax
from jax.experimental import pallas as pl
from jax.experimental.pallas import tpu as pltpu

LANE = 128


def _round_up(x, m):
    return ((x + m - 1) // m) * m


# ----------------------------- Pallas kernel --------------------------------
def textcnn_kernel(tok_ref, w_ref, wfc_ref, aux_ref, out_ref):
    """One grid step == one batch tile of Bt elements.

    tok_ref : (max_k, Bt, S) int32  shifted token ids, tok_ref[j, b, t] = tokens[b, (t+j) % S]
    w_ref   : (max_k, VP, CP) bf16  pre-projected conv weights,
                                    w[j, v, f*C+c] = emb_table[v] . W_conv[f][j][:, c]
                                    (zero for j >= k_f and for padded lanes)
    wfc_ref : (CP, CP)        f32   zero-padded fc weight
    aux_ref : (S+2, CP)       f32   rows [0, S): per-lane valid-position mask,
                                    row S: conv bias, row S+1: fc bias
    out_ref : (Bt, CP)        f32   lane-dense (128-wide) logits
    """
    n_shifts, bt, s_len = tok_ref.shape
    vp = w_ref.shape[1]
    cp = out_ref.shape[1]

    # Vocab iota, hoisted out of the shift loop (broadcasts are not CSE'd).
    viota = lax.broadcasted_iota(jnp.int32, (bt, s_len, vp), 2)

    # Fused "embedding gather + conv projection": one-hot(token) @ pre-projected
    # table, accumulated over the k shifts of every filter.  One-hots are exact
    # in bf16; accumulation is f32 on the MXU.  All operands are full 128-lane
    # tiles, so no unaligned slice relayouts remain in the hot path.
    p = None
    for j in range(n_shifts):
        oh = (tok_ref[j][:, :, None] == viota).astype(jnp.bfloat16)   # (Bt, S, VP)
        d = jnp.dot(oh.reshape(bt * s_len, vp), w_ref[j],
                    preferred_element_type=jnp.float32)               # (Bt*S, CP)
        p = d if p is None else p + d
    p = p.reshape(bt, s_len, cp)

    mask = aux_ref[0:s_len, :]               # (S, CP)  1.0 on valid conv positions
    conv_b = aux_ref[s_len:s_len + 1, :]     # (1, CP)
    fc_b = aux_ref[s_len + 1:s_len + 2, :]   # (1, CP)

    # bias + ReLU, zero out invalid (incomplete-window / wrapped-shift) positions
    # (safe: all valid post-ReLU values are >= 0), then global max-pool over S.
    scores = jnp.maximum(p + conv_b, 0.0) * mask                      # (Bt, S, CP)
    feat = jnp.max(scores, axis=1)                                    # (Bt, CP)

    # Tiny fully-connected head on already lane-padded features; fc bias is
    # folded into the store expression.  (Dropout = eval-mode identity.)
    out_ref[...] = jnp.dot(feat, wfc_ref[...],
                           preferred_element_type=jnp.float32) + fc_b


# ----------------------------- param packing --------------------------------
def pack_params(params, *, filter_sizes, filter_num, class_num, seq_len):
    """Pre-project the embedding table through every (filter, shift) conv slice
    and pad everything to 128-lane tiles."""
    emb = params["embedding"].astype(jnp.float32)          # (vocab, D)
    vocab, _ = emb.shape
    nf = len(filter_sizes)
    c = filter_num
    max_k = max(filter_sizes)
    s = seq_len
    vp = _round_up(max(vocab, LANE), LANE)
    cp = LANE
    # TODO(synk): generalize padding when nF*filterNum or classNum exceed 128.
    assert nf * c <= cp and class_num <= cp

    w_stack = jnp.zeros((max_k, vp, cp), jnp.float32)
    aux = jnp.zeros((s + 2, cp), jnp.float32)
    for f, k in enumerate(filter_sizes):
        c0 = f * c
        for j in range(k):
            proj = emb @ params["conv_w"][f][j]             # (vocab, C) f32 pre-projection
            w_stack = w_stack.at[j, :vocab, c0:c0 + c].set(proj)
        aux = aux.at[0:s - k + 1, c0:c0 + c].set(1.0)                  # valid positions
        aux = aux.at[s, c0:c0 + c].set(params["conv_b"][f][0])         # conv bias
    aux = aux.at[s + 1, :class_num].set(params["fc_b"][0])             # fc bias

    wfc = jnp.zeros((cp, cp), jnp.float32)
    wfc = wfc.at[:nf * c, :class_num].set(params["fc_w"])
    return w_stack.astype(jnp.bfloat16), wfc, aux, vp, cp


# ------------------------------- wrapper -------------------------------------
def _default_block_batch(batch):
    # v5e / v6e: single TensorCore -> one grid step (whole batch) avoids the
    # ~0.35us/step fixed cost and gives the MXU a Bt*S-row pass.
    # v7x: 2 TensorCores/chip -> two parallel batch tiles.
    try:
        kind = jax.devices()[0].device_kind.lower().replace(" ", "")
    except Exception:
        kind = ""
    if ("v7" in kind or "tpu7" in kind) and batch >= 16:
        return batch // 2
    return batch


def textcnn_forward(tokens, params, *, filter_sizes, filter_num, class_num,
                    block_batch=None):
    B, S = tokens.shape
    max_k = max(filter_sizes)
    w_stack, wfc, aux, vp, cp = pack_params(
        params, filter_sizes=filter_sizes, filter_num=filter_num,
        class_num=class_num, seq_len=S)

    # Batch tiling: Bt elements per grid step; pad batch to a multiple of Bt.
    if block_batch is None:
        block_batch = _default_block_batch(B)
    bt = min(block_batch, B)
    if bt < B:
        bt = max(8, (bt // 8) * 8)     # keep the batch-tile sublane dim 8-aligned
    b_pad = pl.cdiv(B, bt) * bt
    toks = tokens.astype(jnp.int32)
    if b_pad != B:
        toks = jnp.pad(toks, ((0, b_pad - B), (0, 0)))    # token 0 is a valid id

    # Shifted token ids (t -> t+j), stacked along a leading axis.  This is a
    # tiny int32 array (max_k * B * S * 4 bytes), so doing the shift here keeps
    # the kernel free of unaligned in-kernel slices while the expensive
    # expansion (one-hot / embedding rows) still happens entirely in VMEM.
    tok_stack = jnp.stack([jnp.roll(toks, -j, axis=1) for j in range(max_k)],
                          axis=0)                          # (max_k, b_pad, S)

    grid = (b_pad // bt,)
    flops = grid[0] * (2 * bt * S * vp * cp * max_k + 2 * bt * cp * cp)
    bytes_accessed = (tok_stack.size * 4 + w_stack.size * 2 + wfc.size * 4
                      + aux.size * 4 + b_pad * cp * 4)
    cost = pl.CostEstimate(flops=flops, transcendentals=0,
                           bytes_accessed=bytes_accessed)
    cparams = pltpu.CompilerParams(
        dimension_semantics=("parallel",),
        # Well under budget here; re-derive before scaling Bt / D / filterNum
        # (v7x physical VMEM is only 64 MiB).
        vmem_limit_bytes=32 * 1024 * 1024,
    )
    out_shape = jax.ShapeDtypeStruct((b_pad, cp), jnp.float32)

    def run(single_buffer_weights):
        # Constant-index weight operands don't need double buffering.
        wkw = ({"pipeline_mode": pl.Buffered(1)} if single_buffer_weights else {})
        in_specs = [
            pl.BlockSpec((max_k, bt, S), lambda b: (0, b, 0)),        # token ids
            pl.BlockSpec(w_stack.shape, lambda b: (0, 0, 0), **wkw),  # pre-projected conv W
            pl.BlockSpec(wfc.shape, lambda b: (0, 0), **wkw),         # fc W (padded)
            pl.BlockSpec(aux.shape, lambda b: (0, 0), **wkw),         # mask + biases
        ]
        return pl.pallas_call(
            textcnn_kernel,
            out_shape=out_shape,
            grid_spec=pltpu.PrefetchScalarGridSpec(
                num_scalar_prefetch=0,
                grid=grid,
                in_specs=in_specs,
                out_specs=pl.BlockSpec((bt, cp), lambda b: (b, 0)),   # lane-dense store
            ),
            compiler_params=cparams,
            cost_estimate=cost,
        )(tok_stack, w_stack, wfc, aux)

    try:
        out = run(True)
    except Exception:
        out = run(False)   # fall back if Buffered(1) is unsupported in this JAX
    return out[:B, :class_num]


# -------------------------- reference (pure JAX, f32) -------------------------
def textcnn_reference(tokens, params, *, filter_sizes, filter_num, class_num):
    del class_num
    emb = jnp.take(params["embedding"], tokens, axis=0)     # (B, S, D) f32
    B, S, _ = emb.shape
    feats = []
    for f, k in enumerate(filter_sizes):
        w = params["conv_w"][f]                              # (k, D, C)
        bv = params["conv_b"][f]                             # (1, C)
        out_len = S - k + 1
        s = jnp.zeros((B, out_len, filter_num), jnp.float32)
        for j in range(k):
            s = s + jnp.einsum("bld,dc->blc", emb[:, j:j + out_len, :], w[j],
                               precision=jax.lax.Precision.HIGHEST)
        s = jnp.maximum(s + bv[None], 0.0)
        feats.append(jnp.max(s, axis=1))
    feat = jnp.concatenate(feats, axis=1)                    # (B, nF*C)
    return jnp.dot(feat, params["fc_w"],
                   precision=jax.lax.Precision.HIGHEST) + params["fc_b"]


# ------------------------------ param init ------------------------------------
def init_params(key, *, vocab, dim, filter_sizes, filter_num, class_num):
    n_keys = 3 + 2 * len(filter_sizes)
    keys = jax.random.split(key, n_keys)
    params = {
        "embedding": 0.1 * jax.random.normal(keys[0], (vocab, dim), jnp.float32),
        "conv_w": [],
        "conv_b": [],
    }
    for f, k in enumerate(filter_sizes):
        # PyTorch Conv2d weight is (C, 1, k, D); stored here transposed as (k, D, C).
        params["conv_w"].append(
            0.1 * jax.random.normal(keys[1 + 2 * f], (k, dim, filter_num), jnp.float32))
        params["conv_b"].append(
            0.1 * jax.random.normal(keys[2 + 2 * f], (1, filter_num), jnp.float32))
    params["fc_w"] = 0.1 * jax.random.normal(
        keys[-2], (len(filter_sizes) * filter_num, class_num), jnp.float32)
    params["fc_b"] = 0.1 * jax.random.normal(keys[-1], (1, class_num), jnp.float32)
    return params


# --------------------------------- main ---------------------------------------
if __name__ == "__main__":
    # args-equivalent config (small, synthetic)
    embeddingNum = 97      # vocab size
    embeddingDim = 32
    filterSizes = (3, 4, 5)
    filterNum = 8
    classNum = 4
    batch = 16
    seqLen = 16

    key = jax.random.PRNGKey(0)
    pkey, xkey = jax.random.split(key)
    params = init_params(
        pkey, vocab=embeddingNum, dim=embeddingDim,
        filter_sizes=filterSizes, filter_num=filterNum, class_num=classNum)
    tokens = jax.random.randint(xkey, (batch, seqLen), 0, embeddingNum,
                                dtype=jnp.int32)

    out = textcnn_forward(
        tokens, params,
        filter_sizes=filterSizes, filter_num=filterNum, class_num=classNum)
    out = jax.block_until_ready(out)

    ref = textcnn_reference(
        tokens, params,
        filter_sizes=filterSizes, filter_num=filterNum, class_num=classNum)

    assert out.shape == (batch, classNum)
    # Only quantization in the kernel path is the bf16 pre-projected conv table;
    # everything else accumulates in f32, so the f32 reference matches tightly.
    assert jnp.allclose(out, ref, atol=5e-3, rtol=5e-3), (out, ref)

    print("KERNEL_OK")
</pallas_src>

<mosaic_0001>
module attributes {stable_mosaic.version = 11 : i64} {
  func.func @textcnn_kernel(%arg0: i32, %arg1: memref<5x16x16xi32, #tpu.memory_space<vmem>>, %arg2: memref<5x128x128xbf16, #tpu.memory_space<vmem>>, %arg3: memref<128x128xf32, #tpu.memory_space<vmem>>, %arg4: memref<18x128xf32, #tpu.memory_space<vmem>>, %arg5: memref<16x128xf32, #tpu.memory_space<vmem>>) attributes {dimension_semantics = [#tpu.dimension_semantics<parallel>], iteration_bounds = array<i64: 1>, scalar_prefetch = 0 : i64, scratch_operands = 0 : i64, tpu.core_type = #tpu.core_type<tc>, window_params = [{transform_indices = @transform_0, window_bounds = array<i64: 5, 16, 16>}, {pipeline_mode = #tpu.pipeline_mode<synchronous>, transform_indices = @transform_1, window_bounds = array<i64: 5, 128, 128>}, {pipeline_mode = #tpu.pipeline_mode<synchronous>, transform_indices = @transform_2, window_bounds = array<i64: 128, 128>}, {pipeline_mode = #tpu.pipeline_mode<synchronous>, transform_indices = @transform_3, window_bounds = array<i64: 18, 128>}, {transform_indices = @transform_4, window_bounds = array<i64: 16, 128>}]} {
    %0 = tpu.iota {dimensions = array<i32: 2>} : vector<16x16x128xi32>
    %c0 = arith.constant 0 : index
    %c0_0 = arith.constant 0 : index
    %c0_1 = arith.constant 0 : index
    %1 = vector.load %arg1[%c0, %c0_0, %c0_1] : memref<5x16x16xi32, #tpu.memory_space<vmem>>, vector<1x16x16xi32>
    %2 = vector.shape_cast %1 : vector<1x16x16xi32> to vector<16x16xi32>
    %3 = vector.shape_cast %2 : vector<16x16xi32> to vector<16x16x1xi32>
    %4 = vector.broadcast %3 : vector<16x16x1xi32> to vector<16x16x128xi32>
    %5 = arith.cmpi eq, %4, %0 : vector<16x16x128xi32>
    %6 = arith.extui %5 : vector<16x16x128xi1> to vector<16x16x128xi32>
    %7 = arith.sitofp %6 : vector<16x16x128xi32> to vector<16x16x128xf32>
    %8 = arith.truncf %7 : vector<16x16x128xf32> to vector<16x16x128xbf16>
    %9 = vector.shape_cast %8 : vector<16x16x128xbf16> to vector<256x128xbf16>
    %c0_2 = arith.constant 0 : index
    %c0_3 = arith.constant 0 : index
    %c0_4 = arith.constant 0 : index
    %10 = vector.load %arg2[%c0_2, %c0_3, %c0_4] : memref<5x128x128xbf16, #tpu.memory_space<vmem>>, vector<1x128x128xbf16>
    %11 = vector.shape_cast %10 : vector<1x128x128xbf16> to vector<128x128xbf16>
    %cst = arith.constant dense<0.000000e+00> : vector<256x128xf32>
    %12 = tpu.matmul %9, %11, %cst {dimension_numbers = #tpu.dot_dimension_numbers<[1], [0], [0], [1], [0, 0, 1, 1], [], []>} : vector<256x128xbf16>, vector<128x128xbf16>, vector<256x128xf32> -> vector<256x128xf32>
    %c1 = arith.constant 1 : index
    %c0_5 = arith.constant 0 : index
    %c0_6 = arith.constant 0 : index
    %13 = vector.load %arg1[%c1, %c0_5, %c0_6] : memref<5x16x16xi32, #tpu.memory_space<vmem>>, vector<1x16x16xi32>
    %14 = vector.shape_cast %13 : vector<1x16x16xi32> to vector<16x16xi32>
    %15 = vector.shape_cast %14 : vector<16x16xi32> to vector<16x16x1xi32>
    %16 = vector.broadcast %15 : vector<16x16x1xi32> to vector<16x16x128xi32>
    %17 = arith.cmpi eq, %16, %0 : vector<16x16x128xi32>
    %18 = arith.extui %17 : vector<16x16x128xi1> to vector<16x16x128xi32>
    %19 = arith.sitofp %18 : vector<16x16x128xi32> to vector<16x16x128xf32>
    %20 = arith.truncf %19 : vector<16x16x128xf32> to vector<16x16x128xbf16>
    %21 = vector.shape_cast %20 : vector<16x16x128xbf16> to vector<256x128xbf16>
    %c1_7 = arith.constant 1 : index
    %c0_8 = arith.constant 0 : index
    %c0_9 = arith.constant 0 : index
    %22 = vector.load %arg2[%c1_7, %c0_8, %c0_9] : memref<5x128x128xbf16, #tpu.memory_space<vmem>>, vector<1x128x128xbf16>
    %23 = vector.shape_cast %22 : vector<1x128x128xbf16> to vector<128x128xbf16>
    %cst_10 = arith.constant dense<0.000000e+00> : vector<256x128xf32>
    %24 = tpu.matmul %21, %23, %cst_10 {dimension_numbers = #tpu.dot_dimension_numbers<[1], [0], [0], [1], [0, 0, 1, 1], [], []>} : vector<256x128xbf16>, vector<128x128xbf16>, vector<256x128xf32> -> vector<256x128xf32>
    %25 = arith.addf %12, %24 : vector<256x128xf32>
    %c2 = arith.constant 2 : index
    %c0_11 = arith.constant 0 : index
    %c0_12 = arith.constant 0 : index
    %26 = vector.load %arg1[%c2, %c0_11, %c0_12] : memref<5x16x16xi32, #tpu.memory_space<vmem>>, vector<1x16x16xi32>
    %27 = vector.shape_cast %26 : vector<1x16x16xi32> to vector<16x16xi32>
    %28 = vector.shape_cast %27 : vector<16x16xi32> to vector<16x16x1xi32>
    %29 = vector.broadcast %28 : vector<16x16x1xi32> to vector<16x16x128xi32>
    %30 = arith.cmpi eq, %29, %0 : vector<16x16x128xi32>
    %31 = arith.extui %30 : vector<16x16x128xi1> to vector<16x16x128xi32>
    %32 = arith.sitofp %31 : vector<16x16x128xi32> to vector<16x16x128xf32>
    %33 = arith.truncf %32 : vector<16x16x128xf32> to vector<16x16x128xbf16>
    %34 = vector.shape_cast %33 : vector<16x16x128xbf16> to vector<256x128xbf16>
    %c2_13 = arith.constant 2 : index
    %c0_14 = arith.constant 0 : index
    %c0_15 = arith.constant 0 : index
    %35 = vector.load %arg2[%c2_13, %c0_14, %c0_15] : memref<5x128x128xbf16, #tpu.memory_space<vmem>>, vector<1x128x128xbf16>
    %36 = vector.shape_cast %35 : vector<1x128x128xbf16> to vector<128x128xbf16>
    %cst_16 = arith.constant dense<0.000000e+00> : vector<256x128xf32>
    %37 = tpu.matmul %34, %36, %cst_16 {dimension_numbers = #tpu.dot_dimension_numbers<[1], [0], [0], [1], [0, 0, 1, 1], [], []>} : vector<256x128xbf16>, vector<128x128xbf16>, vector<256x128xf32> -> vector<256x128xf32>
    %38 = arith.addf %25, %37 : vector<256x128xf32>
    %c3 = arith.constant 3 : index
    %c0_17 = arith.constant 0 : index
    %c0_18 = arith.constant 0 : index
    %39 = vector.load %arg1[%c3, %c0_17, %c0_18] : memref<5x16x16xi32, #tpu.memory_space<vmem>>, vector<1x16x16xi32>
    %40 = vector.shape_cast %39 : vector<1x16x16xi32> to vector<16x16xi32>
    %41 = vector.shape_cast %40 : vector<16x16xi32> to vector<16x16x1xi32>
    %42 = vector.broadcast %41 : vector<16x16x1xi32> to vector<16x16x128xi32>
    %43 = arith.cmpi eq, %42, %0 : vector<16x16x128xi32>
    %44 = arith.extui %43 : vector<16x16x128xi1> to vector<16x16x128xi32>
    %45 = arith.sitofp %44 : vector<16x16x128xi32> to vector<16x16x128xf32>
    %46 = arith.truncf %45 : vector<16x16x128xf32> to vector<16x16x128xbf16>
    %47 = vector.shape_cast %46 : vector<16x16x128xbf16> to vector<256x128xbf16>
    %c3_19 = arith.constant 3 : index
    %c0_20 = arith.constant 0 : index
    %c0_21 = arith.constant 0 : index
    %48 = vector.load %arg2[%c3_19, %c0_20, %c0_21] : memref<5x128x128xbf16, #tpu.memory_space<vmem>>, vector<1x128x128xbf16>
    %49 = vector.shape_cast %48 : vector<1x128x128xbf16> to vector<128x128xbf16>
    %cst_22 = arith.constant dense<0.000000e+00> : vector<256x128xf32>
    %50 = tpu.matmul %47, %49, %cst_22 {dimension_numbers = #tpu.dot_dimension_numbers<[1], [0], [0], [1], [0, 0, 1, 1], [], []>} : vector<256x128xbf16>, vector<128x128xbf16>, vector<256x128xf32> -> vector<256x128xf32>
    %51 = arith.addf %38, %50 : vector<256x128xf32>
    %c4 = arith.constant 4 : index
    %c0_23 = arith.constant 0 : index
    %c0_24 = arith.constant 0 : index
    %52 = vector.load %arg1[%c4, %c0_23, %c0_24] : memref<5x16x16xi32, #tpu.memory_space<vmem>>, vector<1x16x16xi32>
    %53 = vector.shape_cast %52 : vector<1x16x16xi32> to vector<16x16xi32>
    %54 = vector.shape_cast %53 : vector<16x16xi32> to vector<16x16x1xi32>
    %55 = vector.broadcast %54 : vector<16x16x1xi32> to vector<16x16x128xi32>
    %56 = arith.cmpi eq, %55, %0 : vector<16x16x128xi32>
    %57 = arith.extui %56 : vector<16x16x128xi1> to vector<16x16x128xi32>
    %58 = arith.sitofp %57 : vector<16x16x128xi32> to vector<16x16x128xf32>
    %59 = arith.truncf %58 : vector<16x16x128xf32> to vector<16x16x128xbf16>
    %60 = vector.shape_cast %59 : vector<16x16x128xbf16> to vector<256x128xbf16>
    %c4_25 = arith.constant 4 : index
    %c0_26 = arith.constant 0 : index
    %c0_27 = arith.constant 0 : index
    %61 = vector.load %arg2[%c4_25, %c0_26, %c0_27] : memref<5x128x128xbf16, #tpu.memory_space<vmem>>, vector<1x128x128xbf16>
    %62 = vector.shape_cast %61 : vector<1x128x128xbf16> to vector<128x128xbf16>
    %cst_28 = arith.constant dense<0.000000e+00> : vector<256x128xf32>
    %63 = tpu.matmul %60, %62, %cst_28 {dimension_numbers = #tpu.dot_dimension_numbers<[1], [0], [0], [1], [0, 0, 1, 1], [], []>} : vector<256x128xbf16>, vector<128x128xbf16>, vector<256x128xf32> -> vector<256x128xf32>
    %64 = arith.addf %51, %63 : vector<256x128xf32>
    %65 = vector.shape_cast %64 : vector<256x128xf32> to vector<16x16x128xf32>
    %c0_29 = arith.constant 0 : index
    %c0_30 = arith.constant 0 : index
    %66 = vector.load %arg4[%c0_29, %c0_30] : memref<18x128xf32, #tpu.memory_space<vmem>>, vector<16x128xf32>
    %c16 = arith.constant 16 : index
    %c0_31 = arith.constant 0 : index
    %67 = vector.load %arg4[%c16, %c0_31] : memref<18x128xf32, #tpu.memory_space<vmem>>, vector<1x128xf32>
    %c17 = arith.constant 17 : index
    %c0_32 = arith.constant 0 : index
    %68 = vector.load %arg4[%c17, %c0_32] : memref<18x128xf32, #tpu.memory_space<vmem>>, vector<1x128xf32>
    %69 = vector.shape_cast %67 : vector<1x128xf32> to vector<1x1x128xf32>
    %70 = vector.broadcast %69 : vector<1x1x128xf32> to vector<16x16x128xf32>
    %71 = arith.addf %65, %70 : vector<16x16x128xf32>
    %cst_33 = arith.constant 0.000000e+00 : f32
    %72 = vector.broadcast %cst_33 : f32 to vector<16x16x128xf32>
    %73 = arith.maximumf %71, %72 : vector<16x16x128xf32>
    %74 = vector.shape_cast %66 : vector<16x128xf32> to vector<1x16x128xf32>
    %75 = vector.broadcast %74 : vector<1x16x128xf32> to vector<16x16x128xf32>
    %76 = arith.mulf %73, %75 : vector<16x16x128xf32>
    %cst_34 = arith.constant dense<0xFF800000> : vector<16x128xf32>
    %77 = vector.multi_reduction <maximumf>, %76, %cst_34 [1] : vector<16x16x128xf32> to vector<16x128xf32>
    %c0_35 = arith.constant 0 : index
    %c0_36 = arith.constant 0 : index
    %78 = vector.load %arg3[%c0_35, %c0_36] : memref<128x128xf32, #tpu.memory_space<vmem>>, vector<128x128xf32>
    %cst_37 = arith.constant dense<0.000000e+00> : vector<16x128xf32>
    %79 = tpu.matmul %77, %78, %cst_37 {dimension_numbers = #tpu.dot_dimension_numbers<[1], [0], [0], [1], [0, 0, 1, 1], [], []>} : vector<16x128xf32>, vector<128x128xf32>, vector<16x128xf32> -> vector<16x128xf32>
    %80 = vector.broadcast %68 : vector<1x128xf32> to vector<16x128xf32>
    %81 = arith.addf %79, %80 : vector<16x128xf32>
    %c0_38 = arith.constant 0 : index
    %c0_39 = arith.constant 0 : index
    %82 = vector.load %arg5[%c0_38, %c0_39] : memref<16x128xf32, #tpu.memory_space<vmem>>, vector<16x128xf32>
    tpu.vector_store %arg5[%c0_38, %c0_39], %81 {strides = array<i32>} : memref<16x128xf32, #tpu.memory_space<vmem>>, vector<16x128xf32>,
    return
  }
  func.func @transform_0(%arg0: i32) -> (i32, i32, i32) {
    %c0_i32 = arith.constant 0 : i32
    %c0_i32_0 = arith.constant 0 : i32
    %c0_i32_1 = arith.constant 0 : i32
    return %c0_i32, %arg0, %c0_i32_0 : i32, i32, i32
  }
  func.func @transform_1(%arg0: i32) -> (i32, i32, i32) {
    %c0_i32 = arith.constant 0 : i32
    %c0_i32_0 = arith.constant 0 : i32
    %c0_i32_1 = arith.constant 0 : i32
    %c0_i32_2 = arith.constant 0 : i32
    return %c0_i32, %c0_i32_0, %c0_i32_1 : i32, i32, i32
  }
  func.func @transform_2(%arg0: i32) -> (i32, i32) {
    %c0_i32 = arith.constant 0 : i32
    %c0_i32_0 = arith.constant 0 : i32
    %c0_i32_1 = arith.constant 0 : i32
    return %c0_i32, %c0_i32_0 : i32, i32
  }
  func.func @transform_3(%arg0: i32) -> (i32, i32) {
    %c0_i32 = arith.constant 0 : i32
    %c0_i32_0 = arith.constant 0 : i32
    %c0_i32_1 = arith.constant 0 : i32
    return %c0_i32, %c0_i32_0 : i32, i32
  }
  func.func @transform_4(%arg0: i32) -> (i32, i32) {
    %c0_i32 = arith.constant 0 : i32
    %c0_i32_0 = arith.constant 0 : i32
    return %arg0, %c0_i32 : i32, i32
  }
}

module attributes {stable_mosaic.version = 11 : i64} {
  func.func @textcnn_kernel(%arg0: i32, %arg1: memref<5x16x16xi32, #tpu.memory_space<vmem>>, %arg2: memref<5x128x128xbf16, #tpu.memory_space<vmem>>, %arg3: memref<128x128xf32, #tpu.memory_space<vmem>>, %arg4: memref<18x128xf32, #tpu.memory_space<vmem>>, %arg5: memref<16x128xf32, #tpu.memory_space<vmem>>) attributes {dimension_semantics = [#tpu.dimension_semantics<parallel>], iteration_bounds = array<i64: 1>, scalar_prefetch = 0 : i64, scratch_operands = 0 : i64, tpu.core_type = #tpu.core_type<tc>, window_params = [{transform_indices = @transform_0, window_bounds = array<i64: 5, 16, 16>}, {pipeline_mode = #tpu.pipeline_mode<synchronous>, transform_indices = @transform_1, window_bounds = array<i64: 5, 128, 128>}, {pipeline_mode = #tpu.pipeline_mode<synchronous>, transform_indices = @transform_2, window_bounds = array<i64: 128, 128>}, {pipeline_mode = #tpu.pipeline_mode<synchronous>, transform_indices = @transform_3, window_bounds = array<i64: 18, 128>}, {transform_indices = @transform_4, window_bounds = array<i64: 16, 128>}]} {
    %0 = tpu.iota {dimensions = array<i32: 2>} : vector<16x16x128xi32>
    %c0 = arith.constant 0 : index
    %c0_0 = arith.constant 0 : index
    %c0_1 = arith.constant 0 : index
    %1 = vector.load %arg1[%c0, %c0_0, %c0_1] : memref<5x16x16xi32, #tpu.memory_space<vmem>>, vector<1x16x16xi32>
    %2 = vector.shape_cast %1 : vector<1x16x16xi32> to vector<16x16xi32>
    %3 = vector.shape_cast %2 : vector<16x16xi32> to vector<16x16x1xi32>
    %4 = vector.broadcast %3 : vector<16x16x1xi32> to vector<16x16x128xi32>
    %5 = arith.cmpi eq, %4, %0 : vector<16x16x128xi32>
    %6 = arith.extui %5 : vector<16x16x128xi1> to vector<16x16x128xi32>
    %7 = arith.sitofp %6 : vector<16x16x128xi32> to vector<16x16x128xf32>
    %8 = arith.truncf %7 : vector<16x16x128xf32> to vector<16x16x128xbf16>
    %9 = vector.shape_cast %8 : vector<16x16x128xbf16> to vector<256x128xbf16>
    %c0_2 = arith.constant 0 : index
    %c0_3 = arith.constant 0 : index
    %c0_4 = arith.constant 0 : index
    %10 = vector.load %arg2[%c0_2, %c0_3, %c0_4] : memref<5x128x128xbf16, #tpu.memory_space<vmem>>, vector<1x128x128xbf16>
    %11 = vector.shape_cast %10 : vector<1x128x128xbf16> to vector<128x128xbf16>
    %cst = arith.constant dense<0.000000e+00> : vector<256x128xf32>
    %12 = tpu.matmul %9, %11, %cst {dimension_numbers = #tpu.dot_dimension_numbers<[1], [0], [0], [1], [0, 0, 1, 1], [], []>} : vector<256x128xbf16>, vector<128x128xbf16>, vector<256x128xf32> -> vector<256x128xf32>
    %c1 = arith.constant 1 : index
    %c0_5 = arith.constant 0 : index
    %c0_6 = arith.constant 0 : index
    %13 = vector.load %arg1[%c1, %c0_5, %c0_6] : memref<5x16x16xi32, #tpu.memory_space<vmem>>, vector<1x16x16xi32>
    %14 = vector.shape_cast %13 : vector<1x16x16xi32> to vector<16x16xi32>
    %15 = vector.shape_cast %14 : vector<16x16xi32> to vector<16x16x1xi32>
    %16 = vector.broadcast %15 : vector<16x16x1xi32> to vector<16x16x128xi32>
    %17 = arith.cmpi eq, %16, %0 : vector<16x16x128xi32>
    %18 = arith.extui %17 : vector<16x16x128xi1> to vector<16x16x128xi32>
    %19 = arith.sitofp %18 : vector<16x16x128xi32> to vector<16x16x128xf32>
    %20 = arith.truncf %19 : vector<16x16x128xf32> to vector<16x16x128xbf16>
    %21 = vector.shape_cast %20 : vector<16x16x128xbf16> to vector<256x128xbf16>
    %c1_7 = arith.constant 1 : index
    %c0_8 = arith.constant 0 : index
    %c0_9 = arith.constant 0 : index
    %22 = vector.load %arg2[%c1_7, %c0_8, %c0_9] : memref<5x128x128xbf16, #tpu.memory_space<vmem>>, vector<1x128x128xbf16>
    %23 = vector.shape_cast %22 : vector<1x128x128xbf16> to vector<128x128xbf16>
    %cst_10 = arith.constant dense<0.000000e+00> : vector<256x128xf32>
    %24 = tpu.matmul %21, %23, %cst_10 {dimension_numbers = #tpu.dot_dimension_numbers<[1], [0], [0], [1], [0, 0, 1, 1], [], []>} : vector<256x128xbf16>, vector<128x128xbf16>, vector<256x128xf32> -> vector<256x128xf32>
    %25 = arith.addf %12, %24 : vector<256x128xf32>
    %c2 = arith.constant 2 : index
    %c0_11 = arith.constant 0 : index
    %c0_12 = arith.constant 0 : index
    %26 = vector.load %arg1[%c2, %c0_11, %c0_12] : memref<5x16x16xi32, #tpu.memory_space<vmem>>, vector<1x16x16xi32>
    %27 = vector.shape_cast %26 : vector<1x16x16xi32> to vector<16x16xi32>
    %28 = vector.shape_cast %27 : vector<16x16xi32> to vector<16x16x1xi32>
    %29 = vector.broadcast %28 : vector<16x16x1xi32> to vector<16x16x128xi32>
    %30 = arith.cmpi eq, %29, %0 : vector<16x16x128xi32>
    %31 = arith.extui %30 : vector<16x16x128xi1> to vector<16x16x128xi32>
    %32 = arith.sitofp %31 : vector<16x16x128xi32> to vector<16x16x128xf32>
    %33 = arith.truncf %32 : vector<16x16x128xf32> to vector<16x16x128xbf16>
    %34 = vector.shape_cast %33 : vector<16x16x128xbf16> to vector<256x128xbf16>
    %c2_13 = arith.constant 2 : index
    %c0_14 = arith.constant 0 : index
    %c0_15 = arith.constant 0 : index
    %35 = vector.load %arg2[%c2_13, %c0_14, %c0_15] : memref<5x128x128xbf16, #tpu.memory_space<vmem>>, vector<1x128x128xbf16>
    %36 = vector.shape_cast %35 : vector<1x128x128xbf16> to vector<128x128xbf16>
    %cst_16 = arith.constant dense<0.000000e+00> : vector<256x128xf32>
    %37 = tpu.matmul %34, %36, %cst_16 {dimension_numbers = #tpu.dot_dimension_numbers<[1], [0], [0], [1], [0, 0, 1, 1], [], []>} : vector<256x128xbf16>, vector<128x128xbf16>, vector<256x128xf32> -> vector<256x128xf32>
    %38 = arith.addf %25, %37 : vector<256x128xf32>
    %c3 = arith.constant 3 : index
    %c0_17 = arith.constant 0 : index
    %c0_18 = arith.constant 0 : index
    %39 = vector.load %arg1[%c3, %c0_17, %c0_18] : memref<5x16x16xi32, #tpu.memory_space<vmem>>, vector<1x16x16xi32>
    %40 = vector.shape_cast %39 : vector<1x16x16xi32> to vector<16x16xi32>
    %41 = vector.shape_cast %40 : vector<16x16xi32> to vector<16x16x1xi32>
    %42 = vector.broadcast %41 : vector<16x16x1xi32> to vector<16x16x128xi32>
    %43 = arith.cmpi eq, %42, %0 : vector<16x16x128xi32>
    %44 = arith.extui %43 : vector<16x16x128xi1> to vector<16x16x128xi32>
    %45 = arith.sitofp %44 : vector<16x16x128xi32> to vector<16x16x128xf32>
    %46 = arith.truncf %45 : vector<16x16x128xf32> to vector<16x16x128xbf16>
    %47 = vector.shape_cast %46 : vector<16x16x128xbf16> to vector<256x128xbf16>
    %c3_19 = arith.constant 3 : index
    %c0_20 = arith.constant 0 : index
    %c0_21 = arith.constant 0 : index
    %48 = vector.load %arg2[%c3_19, %c0_20, %c0_21] : memref<5x128x128xbf16, #tpu.memory_space<vmem>>, vector<1x128x128xbf16>
    %49 = vector.shape_cast %48 : vector<1x128x128xbf16> to vector<128x128xbf16>
    %cst_22 = arith.constant dense<0.000000e+00> : vector<256x128xf32>
    %50 = tpu.matmul %47, %49, %cst_22 {dimension_numbers = #tpu.dot_dimension_numbers<[1], [0], [0], [1], [0, 0, 1, 1], [], []>} : vector<256x128xbf16>, vector<128x128xbf16>, vector<256x128xf32> -> vector<256x128xf32>
    %51 = arith.addf %38, %50 : vector<256x128xf32>
    %c4 = arith.constant 4 : index
    %c0_23 = arith.constant 0 : index
    %c0_24 = arith.constant 0 : index
    %52 = vector.load %arg1[%c4, %c0_23, %c0_24] : memref<5x16x16xi32, #tpu.memory_space<vmem>>, vector<1x16x16xi32>
    %53 = vector.shape_cast %52 : vector<1x16x16xi32> to vector<16x16xi32>
    %54 = vector.shape_cast %53 : vector<16x16xi32> to vector<16x16x1xi32>
    %55 = vector.broadcast %54 : vector<16x16x1xi32> to vector<16x16x128xi32>
    %56 = arith.cmpi eq, %55, %0 : vector<16x16x128xi32>
    %57 = arith.extui %56 : vector<16x16x128xi1> to vector<16x16x128xi32>
    %58 = arith.sitofp %57 : vector<16x16x128xi32> to vector<16x16x128xf32>
    %59 = arith.truncf %58 : vector<16x16x128xf32> to vector<16x16x128xbf16>
    %60 = vector.shape_cast %59 : vector<16x16x128xbf16> to vector<256x128xbf16>
    %c4_25 = arith.constant 4 : index
    %c0_26 = arith.constant 0 : index
    %c0_27 = arith.constant 0 : index
    %61 = vector.load %arg2[%c4_25, %c0_26, %c0_27] : memref<5x128x128xbf16, #tpu.memory_space<vmem>>, vector<1x128x128xbf16>
    %62 = vector.shape_cast %61 : vector<1x128x128xbf16> to vector<128x128xbf16>
    %cst_28 = arith.constant dense<0.000000e+00> : vector<256x128xf32>
    %63 = tpu.matmul %60, %62, %cst_28 {dimension_numbers = #tpu.dot_dimension_numbers<[1], [0], [0], [1], [0, 0, 1, 1], [], []>} : vector<256x128xbf16>, vector<128x128xbf16>, vector<256x128xf32> -> vector<256x128xf32>
    %64 = arith.addf %51, %63 : vector<256x128xf32>
    %65 = vector.shape_cast %64 : vector<256x128xf32> to vector<16x16x128xf32>
    %c0_29 = arith.constant 0 : index
    %c0_30 = arith.constant 0 : index
    %66 = vector.load %arg4[%c0_29, %c0_30] : memref<18x128xf32, #tpu.memory_space<vmem>>, vector<16x128xf32>
    %c16 = arith.constant 16 : index
    %c0_31 = arith.constant 0 : index
    %67 = vector.load %arg4[%c16, %c0_31] : memref<18x128xf32, #tpu.memory_space<vmem>>, vector<1x128xf32>
    %c17 = arith.constant 17 : index
    %c0_32 = arith.constant 0 : index
    %68 = vector.load %arg4[%c17, %c0_32] : memref<18x128xf32, #tpu.memory_space<vmem>>, vector<1x128xf32>
    %69 = vector.shape_cast %67 : vector<1x128xf32> to vector<1x1x128xf32>
    %70 = vector.broadcast %69 : vector<1x1x128xf32> to vector<16x16x128xf32>
    %71 = arith.addf %65, %70 : vector<16x16x128xf32>
    %cst_33 = arith.constant 0.000000e+00 : f32
    %72 = vector.broadcast %cst_33 : f32 to vector<16x16x128xf32>
    %73 = arith.maximumf %71, %72 : vector<16x16x128xf32>
    %74 = vector.shape_cast %66 : vector<16x128xf32> to vector<1x16x128xf32>
    %75 = vector.broadcast %74 : vector<1x16x128xf32> to vector<16x16x128xf32>
    %76 = arith.mulf %73, %75 : vector<16x16x128xf32>
    %cst_34 = arith.constant dense<0xFF800000> : vector<16x128xf32>
    %77 = vector.multi_reduction <maximumf>, %76, %cst_34 [1] : vector<16x16x128xf32> to vector<16x128xf32>
    %c0_35 = arith.constant 0 : index
    %c0_36 = arith.constant 0 : index
    %78 = vector.load %arg3[%c0_35, %c0_36] : memref<128x128xf32, #tpu.memory_space<vmem>>, vector<128x128xf32>
    %cst_37 = arith.constant dense<0.000000e+00> : vector<16x128xf32>
    %79 = tpu.matmul %77, %78, %cst_37 {dimension_numbers = #tpu.dot_dimension_numbers<[1], [0], [0], [1], [0, 0, 1, 1], [], []>} : vector<16x128xf32>, vector<128x128xf32>, vector<16x128xf32> -> vector<16x128xf32>
    %80 = vector.broadcast %68 : vector<1x128xf32> to vector<16x128xf32>
    %81 = arith.addf %79, %80 : vector<16x128xf32>
    %c0_38 = arith.constant 0 : index
    %c0_39 = arith.constant 0 : index
    %82 = vector.load %arg5[%c0_38, %c0_39] : memref<16x128xf32, #tpu.memory_space<vmem>>, vector<16x128xf32>
    tpu.vector_store %arg5[%c0_38, %c0_39], %81 {strides = array<i32>} : memref<16x128xf32, #tpu.memory_space<vmem>>, vector<16x128xf32>,
    return
  }
  func.func @transform_0(%arg0: i32) -> (i32, i32, i32) {
    %c0_i32 = arith.constant 0 : i32
    %c0_i32_0 = arith.constant 0 : i32
    %c0_i32_1 = arith.constant 0 : i32
    return %c0_i32, %arg0, %c0_i32_0 : i32, i32, i32
  }
  func.func @transform_1(%arg0: i32) -> (i32, i32, i32) {
    %c0_i32 = arith.constant 0 : i32
    %c0_i32_0 = arith.constant 0 : i32
    %c0_i32_1 = arith.constant 0 : i32
    %c0_i32_2 = arith.constant 0 : i32
    return %c0_i32, %c0_i32_0, %c0_i32_1 : i32, i32, i32
  }
  func.func @transform_2(%arg0: i32) -> (i32, i32) {
    %c0_i32 = arith.constant 0 : i32
    %c0_i32_0 = arith.constant 0 : i32
    %c0_i32_1 = arith.constant 0 : i32
    return %c0_i32, %c0_i32_0 : i32, i32
  }
  func.func @transform_3(%arg0: i32) -> (i32, i32) {
    %c0_i32 = arith.constant 0 : i32
    %c0_i32_0 = arith.constant 0 : i32
    %c0_i32_1 = arith.constant 0 : i32
    return %c0_i32, %c0_i32_0 : i32, i32
  }
  func.func @transform_4(%arg0: i32) -> (i32, i32) {
    %c0_i32 = arith.constant 0 : i32
    %c0_i32_0 = arith.constant 0 : i32
    return %arg0, %c0_i32 : i32, i32
  }
}

</mosaic_0001>

<llo_original>
// kernel: tpu_custom_call.1
$region0: #{tpu_custom_call.1}
  #allocation0 [shape = 'u32[]', space=smem, size = 0x4, offset = 0x4, fixed_abs, tag = 'smem constant byte address 0x4 - core index']
  #allocation1 [shape = 'u32[144,128]{1,0:T(1,128)}', space=vmem, size = 0x12000, scoped, tag = 'internal scratch']
  %s0 = inlined_call_operand.hbm [shape: s32[5,16,16], index: 0, kind: input, shape index: {}]
  %s1 = inlined_call_operand.hbm [shape: bf16[5,128,128], index: 1, kind: input, shape index: {}]
  %s2 = inlined_call_operand.hbm [shape: f32[128,128], index: 2, kind: input, shape index: {}]
  %s3 = inlined_call_operand.hbm [shape: f32[18,128], index: 3, kind: input, shape index: {}]
  %s4 = inlined_call_operand.hbm [shape: f32[16,128], index: 4, kind: output, shape index: {}]
  %s5 = sld [smem:[#allocation0]]
  $region42: #{tpu_custom_call.1} parent=0
    _
  %s7 = ssub.s32 1, %s5
  %s8 = scalar_select 0, %s7, %s5
  $region1: #{tpu_custom_call.1} parent=0
    #allocation2 [shape = 'u8[40960]{0}', space=vmem, size = 0xa000, scoped, tag = 'input window, operand 0, single buffered']
    #allocation3 [shape = 's32[1]{0}', space=sflag, size = 0x4, scoped, tag = 'scoped memory for tpu_custom_call.1']
    #allocation4 [shape = 's32[1]{0}', space=sflag, size = 0x4, scoped, tag = 'scoped memory for tpu_custom_call.1']
    #allocation5 [shape = 'u8[163840]{0}', space=vmem, size = 0x28000, scoped, tag = 'input window, operand 1, single buffered']
    #allocation6 [shape = 's32[1]{0}', space=sflag, size = 0x4, scoped, tag = 'scoped memory for tpu_custom_call.1']
    #allocation7 [shape = 'u8[65536]{0}', space=vmem, size = 0x10000, scoped, tag = 'input window, operand 2, single buffered']
    #allocation8 [shape = 'u8[12288]{0}', space=vmem, size = 0x3000, scoped, tag = 'input window, operand 3, single buffered']
    #allocation9 [shape = 's32[1]{0}', space=sflag, size = 0x4, scoped, tag = 'scoped memory for tpu_custom_call.1']
    #allocation10 [shape = 'u8[8192]{0}', space=vmem, size = 0x2000, scoped, tag = 'output window, operand 0, single buffered']
    %9 = vsyncpa [#allocation3], 0
    %10 = vsyncpa [#allocation6], 0
    %11 = vsyncpa [#allocation9], 0
    %12 = vsyncpa [#allocation4], 0
    // Predicated region
    $region2: #{tpu_custom_call.1} parent=1 // pred_check
      _
    $region3: #{tpu_custom_call.1} parent=1 // pred_check_branch
      %14 = sbr.rel (0) target = $region5
    $region4: #{tpu_custom_call.1} parent=1 // pred_region
      %s16 = ssub.s32 1280, 1280
      %17 = vsyncadd [#allocation3], %s16
      %s18 = sshll.u32 [#allocation2], 4
      %s19 = int_to_ptr.vmem [resolvable:$true] %s18
      %24 = dma.hbm_to_vmem [thread:$0]  %s0, 1280, %s19, [#allocation3], 128, 128, 8
    $region5: #{tpu_custom_call.1} parent=1 // pred_fallthru
      _
    // Predicated region
    $region6: #{tpu_custom_call.1} parent=1 // pred_check
      _
    $region7: #{tpu_custom_call.1} parent=1 // pred_check_branch
      %26 = sbr.rel (0) target = $region9
    $region8: #{tpu_custom_call.1} parent=1 // pred_region
      %s28 = ssub.s32 5120, 5120
      %29 = vsyncadd [#allocation6], %s28
      %s30 = sshll.u32 [#allocation5], 4
      %s31 = int_to_ptr.vmem [resolvable:$true] %s30
      %36 = dma.hbm_to_vmem [thread:$0]  %s1, 5120, %s31, [#allocation6], 64, 64, 4
    $region9: #{tpu_custom_call.1} parent=1 // pred_fallthru
      _
    // Predicated region
    $region10: #{tpu_custom_call.1} parent=1 // pred_check
      _
    $region11: #{tpu_custom_call.1} parent=1 // pred_check_branch
      %38 = sbr.rel (0) target = $region13
    $region12: #{tpu_custom_call.1} parent=1 // pred_region
      %s40 = ssub.s32 2048, 2048
      %41 = vsyncadd [#allocation6], %s40
      %s42 = sshll.u32 [#allocation7], 4
      %s43 = int_to_ptr.vmem [resolvable:$true] %s42
      %48 = dma.hbm_to_vmem [thread:$0]  %s2, 2048, %s43, [#allocation6], 128, 128, 8
    $region13: #{tpu_custom_call.1} parent=1 // pred_fallthru
      _
    // Predicated region
    $region14: #{tpu_custom_call.1} parent=1 // pred_check
      _
    $region15: #{tpu_custom_call.1} parent=1 // pred_check_branch
      %50 = sbr.rel (0) target = $region17
    $region16: #{tpu_custom_call.1} parent=1 // pred_region
      %s52 = ssub.s32 384, 384
      %53 = vsyncadd [#allocation9], %s52
      %s54 = sshll.u32 [#allocation8], 4
      %s55 = int_to_ptr.vmem [resolvable:$true] %s54
      %60 = dma.hbm_to_vmem [thread:$0]  %s3, 384, %s55, [#allocation9], 128, 128, 8
    $region17: #{tpu_custom_call.1} parent=1 // pred_fallthru
      _
    // Predicated region
    $region18: #{tpu_custom_call.1} parent=1 // pred_check
      _
    $region19: #{tpu_custom_call.1} parent=1 // pred_check_branch
      %62 = sbr.rel (0) target = $region21
    $region20: #{tpu_custom_call.1} parent=1 // pred_region
      %63 = dma.done [#allocation3], 1280
    $region21: #{tpu_custom_call.1} parent=1 // pred_fallthru
      _
    // Predicated region
    $region22: #{tpu_custom_call.1} parent=1 // pred_check
      _
    $region23: #{tpu_custom_call.1} parent=1 // pred_check_branch
      %65 = sbr.rel (0) target = $region25
    $region24: #{tpu_custom_call.1} parent=1 // pred_region
      %66 = dma.done [#allocation6], 5120
    $region25: #{tpu_custom_call.1} parent=1 // pred_fallthru
      _
    // Predicated region
    $region26: #{tpu_custom_call.1} parent=1 // pred_check
      _
    $region27: #{tpu_custom_call.1} parent=1 // pred_check_branch
      %68 = sbr.rel (0) target = $region29
    $region28: #{tpu_custom_call.1} parent=1 // pred_region
      %69 = dma.done [#allocation6], 2048
    $region29: #{tpu_custom_call.1} parent=1 // pred_fallthru
      _
    // Predicated region
    $region30: #{tpu_custom_call.1} parent=1 // pred_check
      _
    $region31: #{tpu_custom_call.1} parent=1 // pred_check_branch
      %71 = sbr.rel (0) target = $region33
    $region32: #{tpu_custom_call.1} parent=1 // pred_region
      %72 = dma.done [#allocation9], 384
    $region33: #{tpu_custom_call.1} parent=1 // pred_fallthru
      _
    %v74 = vlaneseq
    %v75 = vand.u32 %v74, 127
    %v76 = vld [vmem:[#allocation2] sm:$0xff]
    %v77 = vld [vmem:[#allocation2 + $0x8] sm:$0xff]
    %v78 = vlaneseq
    %v79 = vshrl.u32 %v78, 7
    %v80 = vsub.s32 0, %v79
    %v81 = vrot.slane %v76, %v80
    %83 = vbcast.lane.b32.xlu0 %v81, 256
    %v84 = vpop.permute.xlu0 %83
    %s86 = sor.u32 256, 8
    %87 = vbcast.lane.b32.xlu0 %v81, %s86
    %v88 = vpop.permute.xlu0 %87
    %v89 = vlaneseq
    %v90 = vshrl.u32 %v89, 7
    %v91 = vsub.s32 1, %v90
    %v92 = vrot.slane %v76, %v91
    %94 = vbcast.lane.b32.xlu0 %v92, 256
    %v95 = vpop.permute.xlu0 %94
    %s97 = sor.u32 256, 8
    %98 = vbcast.lane.b32.xlu0 %v92, %s97
    %v99 = vpop.permute.xlu0 %98
    %v100 = vlaneseq
    %v101 = vshrl.u32 %v100, 7
    %v102 = vsub.s32 2, %v101
    %v103 = vrot.slane %v76, %v102
    %105 = vbcast.lane.b32.xlu0 %v103, 256
    %v106 = vpop.permute.xlu0 %105
    %s108 = sor.u32 256, 8
    %109 = vbcast.lane.b32.xlu0 %v103, %s108
    %v110 = vpop.permute.xlu0 %109
    %v111 = vlaneseq
    %v112 = vshrl.u32 %v111, 7
    %v113 = vsub.s32 3, %v112
    %v114 = vrot.slane %v76, %v113
    %116 = vbcast.lane.b32.xlu0 %v114, 256
    %v117 = vpop.permute.xlu0 %116
    %s119 = sor.u32 256, 8
    %120 = vbcast.lane.b32.xlu0 %v114, %s119
    %v121 = vpop.permute.xlu0 %120
    %v122 = vlaneseq
    %v123 = vshrl.u32 %v122, 7
    %v124 = vsub.s32 4, %v123
    %v125 = vrot.slane %v76, %v124
    %127 = vbcast.lane.b32.xlu0 %v125, 256
    %v128 = vpop.permute.xlu0 %127
    %s130 = sor.u32 256, 8
    %131 = vbcast.lane.b32.xlu0 %v125, %s130
    %v132 = vpop.permute.xlu0 %131
    %v133 = vlaneseq
    %v134 = vshrl.u32 %v133, 7
    %v135 = vsub.s32 5, %v134
    %v136 = vrot.slane %v76, %v135
    %138 = vbcast.lane.b32.xlu0 %v136, 256
    %v139 = vpop.permute.xlu0 %138
    %s141 = sor.u32 256, 8
    %142 = vbcast.lane.b32.xlu0 %v136, %s141
    %v143 = vpop.permute.xlu0 %142
    %v144 = vlaneseq
    %v145 = vshrl.u32 %v144, 7
    %v146 = vsub.s32 6, %v145
    %v147 = vrot.slane %v76, %v146
    %149 = vbcast.lane.b32.xlu0 %v147, 256
    %v150 = vpop.permute.xlu0 %149
    %s152 = sor.u32 256, 8
    %153 = vbcast.lane.b32.xlu0 %v147, %s152
    %v154 = vpop.permute.xlu0 %153
    %v155 = vlaneseq
    %v156 = vshrl.u32 %v155, 7
    %v157 = vsub.s32 7, %v156
    %v158 = vrot.slane %v76, %v157
    %160 = vbcast.lane.b32.xlu0 %v158, 256
    %v161 = vpop.permute.xlu0 %160
    %s163 = sor.u32 256, 8
    %164 = vbcast.lane.b32.xlu0 %v158, %s163
    %v165 = vpop.permute.xlu0 %164
    %v166 = vlaneseq
    %v167 = vshrl.u32 %v166, 7
    %v168 = vsub.s32 0, %v167
    %v169 = vrot.slane %v77, %v168
    %171 = vbcast.lane.b32.xlu0 %v169, 256
    %v172 = vpop.permute.xlu0 %171
    %s174 = sor.u32 256, 8
    %175 = vbcast.lane.b32.xlu0 %v169, %s174
    %v176 = vpop.permute.xlu0 %175
    %v177 = vlaneseq
    %v178 = vshrl.u32 %v177, 7
    %v179 = vsub.s32 1, %v178
    %v180 = vrot.slane %v77, %v179
    %182 = vbcast.lane.b32.xlu0 %v180, 256
    %v183 = vpop.permute.xlu0 %182
    %s185 = sor.u32 256, 8
    %186 = vbcast.lane.b32.xlu0 %v180, %s185
    %v187 = vpop.permute.xlu0 %186
    %v188 = vlaneseq
    %v189 = vshrl.u32 %v188, 7
    %v190 = vsub.s32 2, %v189
    %v191 = vrot.slane %v77, %v190
    %193 = vbcast.lane.b32.xlu0 %v191, 256
    %v194 = vpop.permute.xlu0 %193
    %s196 = sor.u32 256, 8
    %197 = vbcast.lane.b32.xlu0 %v191, %s196
    %v198 = vpop.permute.xlu0 %197
    %v199 = vlaneseq
    %v200 = vshrl.u32 %v199, 7
    %v201 = vsub.s32 3, %v200
    %v202 = vrot.slane %v77, %v201
    %204 = vbcast.lane.b32.xlu0 %v202, 256
    %v205 = vpop.permute.xlu0 %204
    %s207 = sor.u32 256, 8
    %208 = vbcast.lane.b32.xlu0 %v202, %s207
    %v209 = vpop.permute.xlu0 %208
    %v210 = vlaneseq
    %v211 = vshrl.u32 %v210, 7
    %v212 = vsub.s32 4, %v211
    %v213 = vrot.slane %v77, %v212
    %215 = vbcast.lane.b32.xlu0 %v213, 256
    %v216 = vpop.permute.xlu0 %215
    %s218 = sor.u32 256, 8
    %219 = vbcast.lane.b32.xlu0 %v213, %s218
    %v220 = vpop.permute.xlu0 %219
    %v221 = vlaneseq
    %v222 = vshrl.u32 %v221, 7
    %v223 = vsub.s32 5, %v222
    %v224 = vrot.slane %v77, %v223
    %226 = vbcast.lane.b32.xlu0 %v224, 256
    %v227 = vpop.permute.xlu0 %226
    %s229 = sor.u32 256, 8
    %230 = vbcast.lane.b32.xlu0 %v224, %s229
    %v231 = vpop.permute.xlu0 %230
    %v232 = vlaneseq
    %v233 = vshrl.u32 %v232, 7
    %v234 = vsub.s32 6, %v233
    %v235 = vrot.slane %v77, %v234
    %237 = vbcast.lane.b32.xlu0 %v235, 256
    %v238 = vpop.permute.xlu0 %237
    %s240 = sor.u32 256, 8
    %241 = vbcast.lane.b32.xlu0 %v235, %s240
    %v242 = vpop.permute.xlu0 %241
    %v243 = vlaneseq
    %v244 = vshrl.u32 %v243, 7
    %v245 = vsub.s32 7, %v244
    %v246 = vrot.slane %v77, %v245
    %248 = vbcast.lane.b32.xlu0 %v246, 256
    %v249 = vpop.permute.xlu0 %248
    %s251 = sor.u32 256, 8
    %252 = vbcast.lane.b32.xlu0 %v246, %s251
    %v253 = vpop.permute.xlu0 %252
    %vm254 = vcmp.eq.s32.totalorder %v84, %v75
    %vm255 = vcmp.eq.s32.totalorder %v88, %v75
    %vm256 = vcmp.eq.s32.totalorder %v95, %v75
    %vm257 = vcmp.eq.s32.totalorder %v99, %v75
    %vm258 = vcmp.eq.s32.totalorder %v106, %v75
    %vm259 = vcmp.eq.s32.totalorder %v110, %v75
    %vm260 = vcmp.eq.s32.totalorder %v117, %v75
    %vm261 = vcmp.eq.s32.totalorder %v121, %v75
    %vm262 = vcmp.eq.s32.totalorder %v128, %v75
    %vm263 = vcmp.eq.s32.totalorder %v132, %v75
    %vm264 = vcmp.eq.s32.totalorder %v139, %v75
    %vm265 = vcmp.eq.s32.totalorder %v143, %v75
    %vm266 = vcmp.eq.s32.totalorder %v150, %v75
    %vm267 = vcmp.eq.s32.totalorder %v154, %v75
    %vm268 = vcmp.eq.s32.totalorder %v161, %v75
    %vm269 = vcmp.eq.s32.totalorder %v165, %v75
    %vm270 = vcmp.eq.s32.totalorder %v172, %v75
    %vm271 = vcmp.eq.s32.totalorder %v176, %v75
    %vm272 = vcmp.eq.s32.totalorder %v183, %v75
    %vm273 = vcmp.eq.s32.totalorder %v187, %v75
    %vm274 = vcmp.eq.s32.totalorder %v194, %v75
    %vm275 = vcmp.eq.s32.totalorder %v198, %v75
    %vm276 = vcmp.eq.s32.totalorder %v205, %v75
    %vm277 = vcmp.eq.s32.totalorder %v209, %v75
    %vm278 = vcmp.eq.s32.totalorder %v216, %v75
    %vm279 = vcmp.eq.s32.totalorder %v220, %v75
    %vm280 = vcmp.eq.s32.totalorder %v227, %v75
    %vm281 = vcmp.eq.s32.totalorder %v231, %v75
    %vm282 = vcmp.eq.s32.totalorder %v238, %v75
    %vm283 = vcmp.eq.s32.totalorder %v242, %v75
    %vm284 = vcmp.eq.s32.totalorder %v249, %v75
    %vm285 = vcmp.eq.s32.totalorder %v253, %v75
    %v286 = vsel %vm254, 1, 0
    %v287 = vsel %vm255, 1, 0
    %v288 = vsel %vm256, 1, 0
    %v289 = vsel %vm257, 1, 0
    %v290 = vsel %vm258, 1, 0
    %v291 = vsel %vm259, 1, 0
    %v292 = vsel %vm260, 1, 0
    %v293 = vsel %vm261, 1, 0
    %v294 = vsel %vm262, 1, 0
    %v295 = vsel %vm263, 1, 0
    %v296 = vsel %vm264, 1, 0
    %v297 = vsel %vm265, 1, 0
    %v298 = vsel %vm266, 1, 0
    %v299 = vsel %vm267, 1, 0
    %v300 = vsel %vm268, 1, 0
    %v301 = vsel %vm269, 1, 0
    %v302 = vsel %vm270, 1, 0
    %v303 = vsel %vm271, 1, 0
    %v304 = vsel %vm272, 1, 0
    %v305 = vsel %vm273, 1, 0
    %v306 = vsel %vm274, 1, 0
    %v307 = vsel %vm275, 1, 0
    %v308 = vsel %vm276, 1, 0
    %v309 = vsel %vm277, 1, 0
    %v310 = vsel %vm278, 1, 0
    %v311 = vsel %vm279, 1, 0
    %v312 = vsel %vm280, 1, 0
    %v313 = vsel %vm281, 1, 0
    %v314 = vsel %vm282, 1, 0
    %v315 = vsel %vm283, 1, 0
    %v316 = vsel %vm284, 1, 0
    %v317 = vsel %vm285, 1, 0
    %v318 = vcvt.s32.f32 %v286
    %v319 = vcvt.s32.f32 %v287
    %v320 = vcvt.s32.f32 %v288
    %v321 = vcvt.s32.f32 %v289
    %v322 = vcvt.s32.f32 %v290
    %v323 = vcvt.s32.f32 %v291
    %v324 = vcvt.s32.f32 %v292
    %v325 = vcvt.s32.f32 %v293
    %v326 = vcvt.s32.f32 %v294
    %v327 = vcvt.s32.f32 %v295
    %v328 = vcvt.s32.f32 %v296
    %v329 = vcvt.s32.f32 %v297
    %v330 = vcvt.s32.f32 %v298
    %v331 = vcvt.s32.f32 %v299
    %v332 = vcvt.s32.f32 %v300
    %v333 = vcvt.s32.f32 %v301
    %v334 = vcvt.s32.f32 %v302
    %v335 = vcvt.s32.f32 %v303
    %v336 = vcvt.s32.f32 %v304
    %v337 = vcvt.s32.f32 %v305
    %v338 = vcvt.s32.f32 %v306
    %v339 = vcvt.s32.f32 %v307
    %v340 = vcvt.s32.f32 %v308
    %v341 = vcvt.s32.f32 %v309
    %v342 = vcvt.s32.f32 %v310
    %v343 = vcvt.s32.f32 %v311
    %v344 = vcvt.s32.f32 %v312
    %v345 = vcvt.s32.f32 %v313
    %v346 = vcvt.s32.f32 %v314
    %v347 = vcvt.s32.f32 %v315
    %v348 = vcvt.s32.f32 %v316
    %v349 = vcvt.s32.f32 %v317
    %v350 = vpack.c.bf16 %v319, %v318
    %v351 = vpack.c.bf16 %v321, %v320
    %v352 = vpack.c.bf16 %v323, %v322
    %v353 = vpack.c.bf16 %v325, %v324
    %v354 = vpack.c.bf16 %v327, %v326
    %v355 = vpack.c.bf16 %v329, %v328
    %v356 = vpack.c.bf16 %v331, %v330
    %v357 = vpack.c.bf16 %v333, %v332
    %v358 = vpack.c.bf16 %v335, %v334
    %v359 = vpack.c.bf16 %v337, %v336
    %v360 = vpack.c.bf16 %v339, %v338
    %v361 = vpack.c.bf16 %v341, %v340
    %v362 = vpack.c.bf16 %v343, %v342
    %v363 = vpack.c.bf16 %v345, %v344
    %v364 = vpack.c.bf16 %v347, %v346
    %v365 = vpack.c.bf16 %v349, %v348
    %v366 = vld [vmem:[#allocation5] sm:$0xf]
    %v367 = vld [vmem:[#allocation5 + $0x4] sm:$0xf]
    %v368 = vld [vmem:[#allocation5 + $0x8] sm:$0xf]
    %v369 = vld [vmem:[#allocation5 + $0xc] sm:$0xf]
    %v370 = vld [vmem:[#allocation5 + $0x10] sm:$0xf]
    %v371 = vld [vmem:[#allocation5 + $0x14] sm:$0xf]
    %v372 = vld [vmem:[#allocation5 + $0x18] sm:$0xf]
    %v373 = vld [vmem:[#allocation5 + $0x1c] sm:$0xf]
    %v374 = vld [vmem:[#allocation5 + $0x20] sm:$0xf]
    %v375 = vld [vmem:[#allocation5 + $0x24] sm:$0xf]
    %v376 = vld [vmem:[#allocation5 + $0x28] sm:$0xf]
    %v377 = vld [vmem:[#allocation5 + $0x2c] sm:$0xf]
    %v378 = vld [vmem:[#allocation5 + $0x30] sm:$0xf]
    %v379 = vld [vmem:[#allocation5 + $0x34] sm:$0xf]
    %v380 = vld [vmem:[#allocation5 + $0x38] sm:$0xf]
    %v381 = vld [vmem:[#allocation5 + $0x3c] sm:$0xf]
    %s382 = scalar_lea.vmem [#allocation2], 16
    %v383 = vld [vmem:[%s382] sm:$0xff]
    %v384 = vld [vmem:[%s382 + $0x8] sm:$0xff]
    %v385 = vlaneseq
    %v386 = vshrl.u32 %v385, 7
    %v387 = vsub.s32 0, %v386
    %v388 = vrot.slane %v383, %v387
    %390 = vbcast.lane.b32.xlu0 %v388, 256
    %v391 = vpop.permute.xlu0 %390
    %s393 = sor.u32 256, 8
    %394 = vbcast.lane.b32.xlu0 %v388, %s393
    %v395 = vpop.permute.xlu0 %394
    %v396 = vlaneseq
    %v397 = vshrl.u32 %v396, 7
    %v398 = vsub.s32 1, %v397
    %v399 = vrot.slane %v383, %v398
    %401 = vbcast.lane.b32.xlu0 %v399, 256
    %v402 = vpop.permute.xlu0 %401
    %s404 = sor.u32 256, 8
    %405 = vbcast.lane.b32.xlu0 %v399, %s404
    %v406 = vpop.permute.xlu0 %405
    %v407 = vlaneseq
    %v408 = vshrl.u32 %v407, 7
    %v409 = vsub.s32 2, %v408
    %v410 = vrot.slane %v383, %v409
    %412 = vbcast.lane.b32.xlu0 %v410, 256
    %v413 = vpop.permute.xlu0 %412
    %s415 = sor.u32 256, 8
    %416 = vbcast.lane.b32.xlu0 %v410, %s415
    %v417 = vpop.permute.xlu0 %416
    %v418 = vlaneseq
    %v419 = vshrl.u32 %v418, 7
    %v420 = vsub.s32 3, %v419
    %v421 = vrot.slane %v383, %v420
    %423 = vbcast.lane.b32.xlu0 %v421, 256
    %v424 = vpop.permute.xlu0 %423
    %s426 = sor.u32 256, 8
    %427 = vbcast.lane.b32.xlu0 %v421, %s426
    %v428 = vpop.permute.xlu0 %427
    %v429 = vlaneseq
    %v430 = vshrl.u32 %v429, 7
    %v431 = vsub.s32 4, %v430
    %v432 = vrot.slane %v383, %v431
    %434 = vbcast.lane.b32.xlu0 %v432, 256
    %v435 = vpop.permute.xlu0 %434
    %s437 = sor.u32 256, 8
    %438 = vbcast.lane.b32.xlu0 %v432, %s437
    %v439 = vpop.permute.xlu0 %438
    %v440 = vlaneseq
    %v441 = vshrl.u32 %v440, 7
    %v442 = vsub.s32 5, %v441
    %v443 = vrot.slane %v383, %v442
    %445 = vbcast.lane.b32.xlu0 %v443, 256
    %v446 = vpop.permute.xlu0 %445
    %s448 = sor.u32 256, 8
    %449 = vbcast.lane.b32.xlu0 %v443, %s448
    %v450 = vpop.permute.xlu0 %449
    %v451 = vlaneseq
    %v452 = vshrl.u32 %v451, 7
    %v453 = vsub.s32 6, %v452
    %v454 = vrot.slane %v383, %v453
    %456 = vbcast.lane.b32.xlu0 %v454, 256
    %v457 = vpop.permute.xlu0 %456
    %s459 = sor.u32 256, 8
    %460 = vbcast.lane.b32.xlu0 %v454, %s459
    %v461 = vpop.permute.xlu0 %460
    %v462 = vlaneseq
    %v463 = vshrl.u32 %v462, 7
    %v464 = vsub.s32 7, %v463
    %v465 = vrot.slane %v383, %v464
    %467 = vbcast.lane.b32.xlu0 %v465, 256
    %v468 = vpop.permute.xlu0 %467
    %s470 = sor.u32 256, 8
    %471 = vbcast.lane.b32.xlu0 %v465, %s470
    %v472 = vpop.permute.xlu0 %471
    %v473 = vlaneseq
    %v474 = vshrl.u32 %v473, 7
    %v475 = vsub.s32 0, %v474
    %v476 = vrot.slane %v384, %v475
    %478 = vbcast.lane.b32.xlu0 %v476, 256
    %v479 = vpop.permute.xlu0 %478
    %s481 = sor.u32 256, 8
    %482 = vbcast.lane.b32.xlu0 %v476, %s481
    %v483 = vpop.permute.xlu0 %482
    %v484 = vlaneseq
    %v485 = vshrl.u32 %v484, 7
    %v486 = vsub.s32 1, %v485
    %v487 = vrot.slane %v384, %v486
    %489 = vbcast.lane.b32.xlu0 %v487, 256
    %v490 = vpop.permute.xlu0 %489
    %s492 = sor.u32 256, 8
    %493 = vbcast.lane.b32.xlu0 %v487, %s492
    %v494 = vpop.permute.xlu0 %493
    %v495 = vlaneseq
    %v496 = vshrl.u32 %v495, 7
    %v497 = vsub.s32 2, %v496
    %v498 = vrot.slane %v384, %v497
    %500 = vbcast.lane.b32.xlu0 %v498, 256
    %v501 = vpop.permute.xlu0 %500
    %s503 = sor.u32 256, 8
    %504 = vbcast.lane.b32.xlu0 %v498, %s503
    %v505 = vpop.permute.xlu0 %504
    %v506 = vlaneseq
    %v507 = vshrl.u32 %v506, 7
    %v508 = vsub.s32 3, %v507
    %v509 = vrot.slane %v384, %v508
    %511 = vbcast.lane.b32.xlu0 %v509, 256
    %v512 = vpop.permute.xlu0 %511
    %s514 = sor.u32 256, 8
    %515 = vbcast.lane.b32.xlu0 %v509, %s514
    %v516 = vpop.permute.xlu0 %515
    %v517 = vlaneseq
    %v518 = vshrl.u32 %v517, 7
    %v519 = vsub.s32 4, %v518
    %v520 = vrot.slane %v384, %v519
    %522 = vbcast.lane.b32.xlu0 %v520, 256
    %v523 = vpop.permute.xlu0 %522
    %s525 = sor.u32 256, 8
    %526 = vbcast.lane.b32.xlu0 %v520, %s525
    %v527 = vpop.permute.xlu0 %526
    %v528 = vlaneseq
    %v529 = vshrl.u32 %v528, 7
    %v530 = vsub.s32 5, %v529
    %v531 = vrot.slane %v384, %v530
    %533 = vbcast.lane.b32.xlu0 %v531, 256
    %v534 = vpop.permute.xlu0 %533
    %s536 = sor.u32 256, 8
    %537 = vbcast.lane.b32.xlu0 %v531, %s536
    %v538 = vpop.permute.xlu0 %537
    %v539 = vlaneseq
    %v540 = vshrl.u32 %v539, 7
    %v541 = vsub.s32 6, %v540
    %v542 = vrot.slane %v384, %v541
    %544 = vbcast.lane.b32.xlu0 %v542, 256
    %v545 = vpop.permute.xlu0 %544
    %s547 = sor.u32 256, 8
    %548 = vbcast.lane.b32.xlu0 %v542, %s547
    %v549 = vpop.permute.xlu0 %548
    %v550 = vlaneseq
    %v551 = vshrl.u32 %v550, 7
    %v552 = vsub.s32 7, %v551
    %v553 = vrot.slane %v384, %v552
    %555 = vbcast.lane.b32.xlu0 %v553, 256
    %v556 = vpop.permute.xlu0 %555
    %s558 = sor.u32 256, 8
    %559 = vbcast.lane.b32.xlu0 %v553, %s558
    %v560 = vpop.permute.xlu0 %559
    %vm561 = vcmp.eq.s32.totalorder %v391, %v75
    %vm562 = vcmp.eq.s32.totalorder %v395, %v75
    %vm563 = vcmp.eq.s32.totalorder %v402, %v75
    %vm564 = vcmp.eq.s32.totalorder %v406, %v75
    %vm565 = vcmp.eq.s32.totalorder %v413, %v75
    %vm566 = vcmp.eq.s32.totalorder %v417, %v75
    %vm567 = vcmp.eq.s32.totalorder %v424, %v75
    %vm568 = vcmp.eq.s32.totalorder %v428, %v75
    %vm569 = vcmp.eq.s32.totalorder %v435, %v75
    %vm570 = vcmp.eq.s32.totalorder %v439, %v75
    %vm571 = vcmp.eq.s32.totalorder %v446, %v75
    %vm572 = vcmp.eq.s32.totalorder %v450, %v75
    %vm573 = vcmp.eq.s32.totalorder %v457, %v75
    %vm574 = vcmp.eq.s32.totalorder %v461, %v75
    %vm575 = vcmp.eq.s32.totalorder %v468, %v75
    %vm576 = vcmp.eq.s32.totalorder %v472, %v75
    %vm577 = vcmp.eq.s32.totalorder %v479, %v75
    %vm578 = vcmp.eq.s32.totalorder %v483, %v75
    %vm579 = vcmp.eq.s32.totalorder %v490, %v75
    %vm580 = vcmp.eq.s32.totalorder %v494, %v75
    %vm581 = vcmp.eq.s32.totalorder %v501, %v75
    %vm582 = vcmp.eq.s32.totalorder %v505, %v75
    %vm583 = vcmp.eq.s32.totalorder %v512, %v75
    %vm584 = vcmp.eq.s32.totalorder %v516, %v75
    %vm585 = vcmp.eq.s32.totalorder %v523, %v75
    %vm586 = vcmp.eq.s32.totalorder %v527, %v75
    %vm587 = vcmp.eq.s32.totalorder %v534, %v75
    %vm588 = vcmp.eq.s32.totalorder %v538, %v75
    %vm589 = vcmp.eq.s32.totalorder %v545, %v75
    %vm590 = vcmp.eq.s32.totalorder %v549, %v75
    %vm591 = vcmp.eq.s32.totalorder %v556, %v75
    %vm592 = vcmp.eq.s32.totalorder %v560, %v75
    %v593 = vsel %vm561, 1, 0
    %v594 = vsel %vm562, 1, 0
    %v595 = vsel %vm563, 1, 0
    %v596 = vsel %vm564, 1, 0
    %v597 = vsel %vm565, 1, 0
    %v598 = vsel %vm566, 1, 0
    %v599 = vsel %vm567, 1, 0
    %v600 = vsel %vm568, 1, 0
    %v601 = vsel %vm569, 1, 0
    %v602 = vsel %vm570, 1, 0
    %v603 = vsel %vm571, 1, 0
    %v604 = vsel %vm572, 1, 0
    %v605 = vsel %vm573, 1, 0
    %v606 = vsel %vm574, 1, 0
    %v607 = vsel %vm575, 1, 0
    %v608 = vsel %vm576, 1, 0
    %v609 = vsel %vm577, 1, 0
    %v610 = vsel %vm578, 1, 0
    %v611 = vsel %vm579, 1, 0
    %v612 = vsel %vm580, 1, 0
    %v613 = vsel %vm581, 1, 0
    %v614 = vsel %vm582, 1, 0
    %v615 = vsel %vm583, 1, 0
    %v616 = vsel %vm584, 1, 0
    %v617 = vsel %vm585, 1, 0
    %v618 = vsel %vm586, 1, 0
    %v619 = vsel %vm587, 1, 0
    %v620 = vsel %vm588, 1, 0
    %v621 = vsel %vm589, 1, 0
    %v622 = vsel %vm590, 1, 0
    %v623 = vsel %vm591, 1, 0
    %v624 = vsel %vm592, 1, 0
    %v625 = vcvt.s32.f32 %v593
    %v626 = vcvt.s32.f32 %v594
    %v627 = vcvt.s32.f32 %v595
    %v628 = vcvt.s32.f32 %v596
    %v629 = vcvt.s32.f32 %v597
    %v630 = vcvt.s32.f32 %v598
    %v631 = vcvt.s32.f32 %v599
    %v632 = vcvt.s32.f32 %v600
    %v633 = vcvt.s32.f32 %v601
    %v634 = vcvt.s32.f32 %v602
    %v635 = vcvt.s32.f32 %v603
    %v636 = vcvt.s32.f32 %v604
    %v637 = vcvt.s32.f32 %v605
    %v638 = vcvt.s32.f32 %v606
    %v639 = vcvt.s32.f32 %v607
    %v640 = vcvt.s32.f32 %v608
    %v641 = vcvt.s32.f32 %v609
    %v642 = vcvt.s32.f32 %v610
    %v643 = vcvt.s32.f32 %v611
    %v644 = vcvt.s32.f32 %v612
    %v645 = vcvt.s32.f32 %v613
    %v646 = vcvt.s32.f32 %v614
    %v647 = vcvt.s32.f32 %v615
    %v648 = vcvt.s32.f32 %v616
    %v649 = vcvt.s32.f32 %v617
    %v650 = vcvt.s32.f32 %v618
    %v651 = vcvt.s32.f32 %v619
    %v652 = vcvt.s32.f32 %v620
    %v653 = vcvt.s32.f32 %v621
    %v654 = vcvt.s32.f32 %v622
    %v655 = vcvt.s32.f32 %v623
    %v656 = vcvt.s32.f32 %v624
    %v657 = vpack.c.bf16 %v626, %v625
    %v658 = vpack.c.bf16 %v628, %v627
    %v659 = vpack.c.bf16 %v630, %v629
    %v660 = vpack.c.bf16 %v632, %v631
    %v661 = vpack.c.bf16 %v634, %v633
    %v662 = vpack.c.bf16 %v636, %v635
    %v663 = vpack.c.bf16 %v638, %v637
    %v664 = vpack.c.bf16 %v640, %v639
    %v665 = vpack.c.bf16 %v642, %v641
    %v666 = vpack.c.bf16 %v644, %v643
    %v667 = vpack.c.bf16 %v646, %v645
    %v668 = vpack.c.bf16 %v648, %v647
    %v669 = vpack.c.bf16 %v650, %v649
    %v670 = vpack.c.bf16 %v652, %v651
    %v671 = vpack.c.bf16 %v654, %v653
    %v672 = vpack.c.bf16 %v656, %v655
    %s673 = scalar_lea.vmem [#allocation5], 64
    %v674 = vld [vmem:[%s673] sm:$0xf]
    %v675 = vld [vmem:[%s673 + $0x4] sm:$0xf]
    %v676 = vld [vmem:[%s673 + $0x8] sm:$0xf]
    %v677 = vld [vmem:[%s673 + $0xc] sm:$0xf]
    %v678 = vld [vmem:[%s673 + $0x10] sm:$0xf]
    %v679 = vld [vmem:[%s673 + $0x14] sm:$0xf]
    %v680 = vld [vmem:[%s673 + $0x18] sm:$0xf]
    %v681 = vld [vmem:[%s673 + $0x1c] sm:$0xf]
    %v682 = vld [vmem:[%s673 + $0x20] sm:$0xf]
    %v683 = vld [vmem:[%s673 + $0x24] sm:$0xf]
    %v684 = vld [vmem:[%s673 + $0x28] sm:$0xf]
    %v685 = vld [vmem:[%s673 + $0x2c] sm:$0xf]
    %v686 = vld [vmem:[%s673 + $0x30] sm:$0xf]
    %v687 = vld [vmem:[%s673 + $0x34] sm:$0xf]
    %v688 = vld [vmem:[%s673 + $0x38] sm:$0xf]
    %v689 = vld [vmem:[%s673 + $0x3c] sm:$0xf]
    %v706 = vunpack.c.l.b16 %v674
    %v707 = vunpack.c.l.b16 %v675
    %v708 = vunpack.c.l.b16 %v676
    %v709 = vunpack.c.l.b16 %v677
    %v710 = vunpack.c.l.b16 %v678
    %v711 = vunpack.c.l.b16 %v679
    %v712 = vunpack.c.l.b16 %v680
    %v713 = vunpack.c.l.b16 %v681
    %v714 = vunpack.c.l.b16 %v682
    %v715 = vunpack.c.l.b16 %v683
    %v716 = vunpack.c.l.b16 %v684
    %v717 = vunpack.c.l.b16 %v685
    %v718 = vunpack.c.l.b16 %v686
    %v719 = vunpack.c.l.b16 %v687
    %v720 = vunpack.c.l.b16 %v688
    %v721 = vunpack.c.l.b16 %v689
    %v722 = vpack.c.b16 %v707, %v706
    %v723 = vpack.c.b16 %v709, %v708
    %v724 = vpack.c.b16 %v711, %v710
    %v725 = vpack.c.b16 %v713, %v712
    %v726 = vpack.c.b16 %v715, %v714
    %v727 = vpack.c.b16 %v717, %v716
    %v728 = vpack.c.b16 %v719, %v718
    %v729 = vpack.c.b16 %v721, %v720
    %738 = vmatprep.subr.bf16.mxu0 0
    %739 = vmatpush1.bf16.msra.mxu0 %v729
    %740 = vmatprep.subr.bf16.mxu0 0
    %741 = vmatpush1.bf16.msra.mxu0 %v728
    %742 = vmatprep.subr.bf16.mxu0 0
    %743 = vmatpush1.bf16.msra.mxu0 %v727
    %744 = vmatprep.subr.bf16.mxu0 0
    %745 = vmatpush1.bf16.msra.mxu0 %v726
    %746 = vmatprep.subr.bf16.mxu0 0
    %747 = vmatpush1.bf16.msra.mxu0 %v725
    %748 = vmatprep.subr.bf16.mxu0 0
    %749 = vmatpush1.bf16.msra.mxu0 %v724
    %750 = vmatprep.subr.bf16.mxu0 0
    %751 = vmatpush1.bf16.msra.mxu0 %v723
    %752 = vmatprep.subr.bf16.mxu0 0
    %753 = vmatpush1.bf16.msra.mxu0 %v722
    %754 = vmatprep.subr.bf16.mxu0 0
    %755 = vmatpush2.bf16.msra.mxu0 0
    %756 = vmatprep.subr.bf16.mxu0 0
    %757 = vmatpush2.bf16.msra.mxu0 0
    %758 = vmatprep.subr.bf16.mxu0 0
    %759 = vmatpush2.bf16.msra.mxu0 0
    %760 = vmatprep.subr.bf16.mxu0 0
    %761 = vmatpush2.bf16.msra.mxu0 0
    %762 = vmatprep.subr.bf16.mxu0 0
    %763 = vmatpush2.bf16.msra.mxu0 0
    %764 = vmatprep.subr.bf16.mxu0 0
    %765 = vmatpush2.bf16.msra.mxu0 0
    %766 = vmatprep.subr.bf16.mxu0 0
    %767 = vmatpush2.bf16.msra.mxu0 0
    %768 = vmatprep.subr.bf16.mxu0 0
    %769 = vmatpush2.bf16.msra.mxu0 0
    %770 = vmatprep.mubr.bf16.mxu0 0
    %771 = vmatmul.mubr.bf16.gmra.mxu0 %v657
    %v772 = vpop.f32.mrf.mxu0
    %v773 = vadd.f32 0.0, %v772
    %v774 = vpop.f32.mrf.mxu0
    %v775 = vpop.f32.mrf.mxu0
    %v776 = vadd.f32 0.0, %v775
    %v777 = vpop.f32.mrf.mxu0
    %778 = vmatprep.mubr.bf16.mxu0 0
    %779 = vmatmul.mubr.bf16.gmra.mxu0 %v658
    %v780 = vpop.f32.mrf.mxu0
    %v781 = vadd.f32 0.0, %v780
    %v782 = vpop.f32.mrf.mxu0
    %v783 = vpop.f32.mrf.mxu0
    %v784 = vadd.f32 0.0, %v783
    %v785 = vpop.f32.mrf.mxu0
    %786 = vmatprep.mubr.bf16.mxu0 0
    %787 = vmatmul.mubr.bf16.gmra.mxu0 %v659
    %v788 = vpop.f32.mrf.mxu0
    %v789 = vadd.f32 0.0, %v788
    %v790 = vpop.f32.mrf.mxu0
    %v791 = vpop.f32.mrf.mxu0
    %v792 = vadd.f32 0.0, %v791
    %v793 = vpop.f32.mrf.mxu0
    %794 = vmatprep.mubr.bf16.mxu0 0
    %795 = vmatmul.mubr.bf16.gmra.mxu0 %v660
    %v796 = vpop.f32.mrf.mxu0
    %v797 = vadd.f32 0.0, %v796
    %v798 = vpop.f32.mrf.mxu0
    %v799 = vpop.f32.mrf.mxu0
    %v800 = vadd.f32 0.0, %v799
    %v801 = vpop.f32.mrf.mxu0
    %802 = vmatprep.mubr.bf16.mxu0 0
    %803 = vmatmul.mubr.bf16.gmra.mxu0 %v661
    %v804 = vpop.f32.mrf.mxu0
    %v805 = vadd.f32 0.0, %v804
    %v806 = vpop.f32.mrf.mxu0
    %v807 = vpop.f32.mrf.mxu0
    %v808 = vadd.f32 0.0, %v807
    %v809 = vpop.f32.mrf.mxu0
    %810 = vmatprep.mubr.bf16.mxu0 0
    %811 = vmatmul.mubr.bf16.gmra.mxu0 %v662
    %v812 = vpop.f32.mrf.mxu0
    %v813 = vadd.f32 0.0, %v812
    %v814 = vpop.f32.mrf.mxu0
    %v815 = vpop.f32.mrf.mxu0
    %v816 = vadd.f32 0.0, %v815
    %v817 = vpop.f32.mrf.mxu0
    %818 = vmatprep.mubr.bf16.mxu0 0
    %819 = vmatmul.mubr.bf16.gmra.mxu0 %v663
    %v820 = vpop.f32.mrf.mxu0
    %v821 = vadd.f32 0.0, %v820
    %v822 = vpop.f32.mrf.mxu0
    %v823 = vpop.f32.mrf.mxu0
    %v824 = vadd.f32 0.0, %v823
    %v825 = vpop.f32.mrf.mxu0
    %826 = vmatprep.mubr.bf16.mxu0 0
    %827 = vmatmul.mubr.bf16.gmra.mxu0 %v664
    %v828 = vpop.f32.mrf.mxu0
    %v829 = vadd.f32 0.0, %v828
    %v830 = vpop.f32.mrf.mxu0
    %v831 = vpop.f32.mrf.mxu0
    %v832 = vadd.f32 0.0, %v831
    %v833 = vpop.f32.mrf.mxu0
    %834 = vmatprep.mubr.bf16.mxu0 0
    %835 = vmatmul.mubr.bf16.gmra.mxu0 %v665
    %v836 = vpop.f32.mrf.mxu0
    %v837 = vadd.f32 0.0, %v836
    %v838 = vpop.f32.mrf.mxu0
    %v839 = vpop.f32.mrf.mxu0
    %v840 = vadd.f32 0.0, %v839
    %v841 = vpop.f32.mrf.mxu0
    %842 = vmatprep.mubr.bf16.mxu0 0
    %843 = vmatmul.mubr.bf16.gmra.mxu0 %v666
    %v844 = vpop.f32.mrf.mxu0
    %v845 = vadd.f32 0.0, %v844
    %v846 = vpop.f32.mrf.mxu0
    %v847 = vpop.f32.mrf.mxu0
    %v848 = vadd.f32 0.0, %v847
    %v849 = vpop.f32.mrf.mxu0
    %850 = vmatprep.mubr.bf16.mxu0 0
    %851 = vmatmul.mubr.bf16.gmra.mxu0 %v667
    %v852 = vpop.f32.mrf.mxu0
    %v853 = vadd.f32 0.0, %v852
    %v854 = vpop.f32.mrf.mxu0
    %v855 = vpop.f32.mrf.mxu0
    %v856 = vadd.f32 0.0, %v855
    %v857 = vpop.f32.mrf.mxu0
    %858 = vmatprep.mubr.bf16.mxu0 0
    %859 = vmatmul.mubr.bf16.gmra.mxu0 %v668
    %v860 = vpop.f32.mrf.mxu0
    %v861 = vadd.f32 0.0, %v860
    %v862 = vpop.f32.mrf.mxu0
    %v863 = vpop.f32.mrf.mxu0
    %v864 = vadd.f32 0.0, %v863
    %v865 = vpop.f32.mrf.mxu0
    %866 = vmatprep.mubr.bf16.mxu0 0
    %867 = vmatmul.mubr.bf16.gmra.mxu0 %v669
    %v868 = vpop.f32.mrf.mxu0
    %v869 = vadd.f32 0.0, %v868
    %v870 = vpop.f32.mrf.mxu0
    %v871 = vpop.f32.mrf.mxu0
    %v872 = vadd.f32 0.0, %v871
    %v873 = vpop.f32.mrf.mxu0
    %874 = vmatprep.mubr.bf16.mxu0 0
    %875 = vmatmul.mubr.bf16.gmra.mxu0 %v670
    %v876 = vpop.f32.mrf.mxu0
    %v877 = vadd.f32 0.0, %v876
    %v878 = vpop.f32.mrf.mxu0
    %v879 = vpop.f32.mrf.mxu0
    %v880 = vadd.f32 0.0, %v879
    %v881 = vpop.f32.mrf.mxu0
    %882 = vmatprep.mubr.bf16.mxu0 0
    %883 = vmatmul.mubr.bf16.gmra.mxu0 %v671
    %v884 = vpop.f32.mrf.mxu0
    %v885 = vadd.f32 0.0, %v884
    %v886 = vpop.f32.mrf.mxu0
    %v887 = vpop.f32.mrf.mxu0
    %v888 = vadd.f32 0.0, %v887
    %v889 = vpop.f32.mrf.mxu0
    %890 = vmatprep.mubr.bf16.mxu0 0
    %891 = vmatmul.mubr.bf16.gmra.mxu0 %v672
    %v892 = vpop.f32.mrf.mxu0
    %v893 = vadd.f32 0.0, %v892
    %v894 = vpop.f32.mrf.mxu0
    %v895 = vpop.f32.mrf.mxu0
    %v896 = vadd.f32 0.0, %v895
    %v897 = vpop.f32.mrf.mxu0
    %898 = vdwg.mxu0
    %v915 = vunpack.c.l.b16 %v366
    %v916 = vunpack.c.l.b16 %v367
    %v917 = vunpack.c.l.b16 %v368
    %v918 = vunpack.c.l.b16 %v369
    %v919 = vunpack.c.l.b16 %v370
    %v920 = vunpack.c.l.b16 %v371
    %v921 = vunpack.c.l.b16 %v372
    %v922 = vunpack.c.l.b16 %v373
    %v923 = vunpack.c.l.b16 %v374
    %v924 = vunpack.c.l.b16 %v375
    %v925 = vunpack.c.l.b16 %v376
    %v926 = vunpack.c.l.b16 %v377
    %v927 = vunpack.c.l.b16 %v378
    %v928 = vunpack.c.l.b16 %v379
    %v929 = vunpack.c.l.b16 %v380
    %v930 = vunpack.c.l.b16 %v381
    %v931 = vpack.c.b16 %v916, %v915
    %v932 = vpack.c.b16 %v918, %v917
    %v933 = vpack.c.b16 %v920, %v919
    %v934 = vpack.c.b16 %v922, %v921
    %v935 = vpack.c.b16 %v924, %v923
    %v936 = vpack.c.b16 %v926, %v925
    %v937 = vpack.c.b16 %v928, %v927
    %v938 = vpack.c.b16 %v930, %v929
    %947 = vmatprep.subr.bf16.mxu0 0
    %948 = vmatpush1.bf16.msra.mxu0 %v938
    %949 = vmatprep.subr.bf16.mxu0 0
    %950 = vmatpush1.bf16.msra.mxu0 %v937
    %951 = vmatprep.subr.bf16.mxu0 0
    %952 = vmatpush1.bf16.msra.mxu0 %v936
    %953 = vmatprep.subr.bf16.mxu0 0
    %954 = vmatpush1.bf16.msra.mxu0 %v935
    %955 = vmatprep.subr.bf16.mxu0 0
    %956 = vmatpush1.bf16.msra.mxu0 %v934
    %957 = vmatprep.subr.bf16.mxu0 0
    %958 = vmatpush1.bf16.msra.mxu0 %v933
    %959 = vmatprep.subr.bf16.mxu0 0
    %960 = vmatpush1.bf16.msra.mxu0 %v932
    %961 = vmatprep.subr.bf16.mxu0 0
    %962 = vmatpush1.bf16.msra.mxu0 %v931
    %963 = vmatprep.subr.bf16.mxu0 0
    %964 = vmatpush2.bf16.msra.mxu0 0
    %965 = vmatprep.subr.bf16.mxu0 0
    %966 = vmatpush2.bf16.msra.mxu0 0
    %967 = vmatprep.subr.bf16.mxu0 0
    %968 = vmatpush2.bf16.msra.mxu0 0
    %969 = vmatprep.subr.bf16.mxu0 0
    %970 = vmatpush2.bf16.msra.mxu0 0
    %971 = vmatprep.subr.bf16.mxu0 0
    %972 = vmatpush2.bf16.msra.mxu0 0
    %973 = vmatprep.subr.bf16.mxu0 0
    %974 = vmatpush2.bf16.msra.mxu0 0
    %975 = vmatprep.subr.bf16.mxu0 0
    %976 = vmatpush2.bf16.msra.mxu0 0
    %977 = vmatprep.subr.bf16.mxu0 0
    %978 = vmatpush2.bf16.msra.mxu0 0
    %979 = vmatprep.mubr.bf16.mxu0 0
    %980 = vmatmul.mubr.bf16.gmra.mxu0 %v350
    %v981 = vpop.f32.mrf.mxu0
    %v982 = vadd.f32 %v773, %v981
    %v983 = vpop.f32.mrf.mxu0
    %v984 = vpop.f32.mrf.mxu0
    %v985 = vadd.f32 %v776, %v984
    %v986 = vpop.f32.mrf.mxu0
    %987 = vmatprep.mubr.bf16.mxu0 0
    %988 = vmatmul.mubr.bf16.gmra.mxu0 %v351
    %v989 = vpop.f32.mrf.mxu0
    %v990 = vadd.f32 %v781, %v989
    %v991 = vpop.f32.mrf.mxu0
    %v992 = vpop.f32.mrf.mxu0
    %v993 = vadd.f32 %v784, %v992
    %v994 = vpop.f32.mrf.mxu0
    %995 = vmatprep.mubr.bf16.mxu0 0
    %996 = vmatmul.mubr.bf16.gmra.mxu0 %v352
    %v997 = vpop.f32.mrf.mxu0
    %v998 = vadd.f32 %v789, %v997
    %v999 = vpop.f32.mrf.mxu0
    %v1000 = vpop.f32.mrf.mxu0
    %v1001 = vadd.f32 %v792, %v1000
    %v1002 = vpop.f32.mrf.mxu0
    %1003 = vmatprep.mubr.bf16.mxu0 0
    %1004 = vmatmul.mubr.bf16.gmra.mxu0 %v353
    %v1005 = vpop.f32.mrf.mxu0
    %v1006 = vadd.f32 %v797, %v1005
    %v1007 = vpop.f32.mrf.mxu0
    %v1008 = vpop.f32.mrf.mxu0
    %v1009 = vadd.f32 %v800, %v1008
    %v1010 = vpop.f32.mrf.mxu0
    %1011 = vmatprep.mubr.bf16.mxu0 0
    %1012 = vmatmul.mubr.bf16.gmra.mxu0 %v354
    %v1013 = vpop.f32.mrf.mxu0
    %v1014 = vadd.f32 %v805, %v1013
    %v1015 = vpop.f32.mrf.mxu0
    %v1016 = vpop.f32.mrf.mxu0
    %v1017 = vadd.f32 %v808, %v1016
    %v1018 = vpop.f32.mrf.mxu0
    %1019 = vmatprep.mubr.bf16.mxu0 0
    %1020 = vmatmul.mubr.bf16.gmra.mxu0 %v355
    %v1021 = vpop.f32.mrf.mxu0
    %v1022 = vadd.f32 %v813, %v1021
    %v1023 = vpop.f32.mrf.mxu0
    %v1024 = vpop.f32.mrf.mxu0
    %v1025 = vadd.f32 %v816, %v1024
    %v1026 = vpop.f32.mrf.mxu0
    %1027 = vmatprep.mubr.bf16.mxu0 0
    %1028 = vmatmul.mubr.bf16.gmra.mxu0 %v356
    %v1029 = vpop.f32.mrf.mxu0
    %v1030 = vadd.f32 %v821, %v1029
    %v1031 = vpop.f32.mrf.mxu0
    %v1032 = vpop.f32.mrf.mxu0
    %v1033 = vadd.f32 %v824, %v1032
    %v1034 = vpop.f32.mrf.mxu0
    %1035 = vmatprep.mubr.bf16.mxu0 0
    %1036 = vmatmul.mubr.bf16.gmra.mxu0 %v357
    %v1037 = vpop.f32.mrf.mxu0
    %v1038 = vadd.f32 %v829, %v1037
    %v1039 = vpop.f32.mrf.mxu0
    %v1040 = vpop.f32.mrf.mxu0
    %v1041 = vadd.f32 %v832, %v1040
    %v1042 = vpop.f32.mrf.mxu0
    %1043 = vmatprep.mubr.bf16.mxu0 0
    %1044 = vmatmul.mubr.bf16.gmra.mxu0 %v358
    %v1045 = vpop.f32.mrf.mxu0
    %v1046 = vadd.f32 %v837, %v1045
    %v1047 = vpop.f32.mrf.mxu0
    %v1048 = vpop.f32.mrf.mxu0
    %v1049 = vadd.f32 %v840, %v1048
    %v1050 = vpop.f32.mrf.mxu0
    %1051 = vmatprep.mubr.bf16.mxu0 0
    %1052 = vmatmul.mubr.bf16.gmra.mxu0 %v359
    %v1053 = vpop.f32.mrf.mxu0
    %v1054 = vadd.f32 %v845, %v1053
    %v1055 = vpop.f32.mrf.mxu0
    %v1056 = vpop.f32.mrf.mxu0
    %v1057 = vadd.f32 %v848, %v1056
    %v1058 = vpop.f32.mrf.mxu0
    %1059 = vmatprep.mubr.bf16.mxu0 0
    %1060 = vmatmul.mubr.bf16.gmra.mxu0 %v360
    %v1061 = vpop.f32.mrf.mxu0
    %v1062 = vadd.f32 %v853, %v1061
    %v1063 = vpop.f32.mrf.mxu0
    %v1064 = vpop.f32.mrf.mxu0
    %v1065 = vadd.f32 %v856, %v1064
    %v1066 = vpop.f32.mrf.mxu0
    %1067 = vmatprep.mubr.bf16.mxu0 0
    %1068 = vmatmul.mubr.bf16.gmra.mxu0 %v361
    %v1069 = vpop.f32.mrf.mxu0
    %v1070 = vadd.f32 %v861, %v1069
    %v1071 = vpop.f32.mrf.mxu0
    %v1072 = vpop.f32.mrf.mxu0
    %v1073 = vadd.f32 %v864, %v1072
    %v1074 = vpop.f32.mrf.mxu0
    %1075 = vmatprep.mubr.bf16.mxu0 0
    %1076 = vmatmul.mubr.bf16.gmra.mxu0 %v362
    %v1077 = vpop.f32.mrf.mxu0
    %v1078 = vadd.f32 %v869, %v1077
    %v1079 = vpop.f32.mrf.mxu0
    %v1080 = vpop.f32.mrf.mxu0
    %v1081 = vadd.f32 %v872, %v1080
    %v1082 = vpop.f32.mrf.mxu0
    %1083 = vmatprep.mubr.bf16.mxu0 0
    %1084 = vmatmul.mubr.bf16.gmra.mxu0 %v363
    %v1085 = vpop.f32.mrf.mxu0
    %v1086 = vadd.f32 %v877, %v1085
    %v1087 = vpop.f32.mrf.mxu0
    %v1088 = vpop.f32.mrf.mxu0
    %v1089 = vadd.f32 %v880, %v1088
    %v1090 = vpop.f32.mrf.mxu0
    %1091 = vmatprep.mubr.bf16.mxu0 0
    %1092 = vmatmul.mubr.bf16.gmra.mxu0 %v364
    %v1093 = vpop.f32.mrf.mxu0
    %v1094 = vadd.f32 %v885, %v1093
    %v1095 = vpop.f32.mrf.mxu0
    %v1096 = vpop.f32.mrf.mxu0
    %v1097 = vadd.f32 %v888, %v1096
    %v1098 = vpop.f32.mrf.mxu0
    %1099 = vmatprep.mubr.bf16.mxu0 0
    %1100 = vmatmul.mubr.bf16.gmra.mxu0 %v365
    %v1101 = vpop.f32.mrf.mxu0
    %v1102 = vadd.f32 %v893, %v1101
    %v1103 = vpop.f32.mrf.mxu0
    %v1104 = vpop.f32.mrf.mxu0
    %v1105 = vadd.f32 %v896, %v1104
    %v1106 = vpop.f32.mrf.mxu0
    %1107 = vdwg.mxu0
    %s1108 = scalar_lea.vmem [#allocation2], 32
    %v1109 = vld [vmem:[%s1108] sm:$0xff]
    %v1110 = vld [vmem:[%s1108 + $0x8] sm:$0xff]
    %v1111 = vlaneseq
    %v1112 = vshrl.u32 %v1111, 7
    %v1113 = vsub.s32 0, %v1112
    %v1114 = vrot.slane %v1109, %v1113
    %1116 = vbcast.lane.b32.xlu0 %v1114, 256
    %v1117 = vpop.permute.xlu0 %1116
    %s1119 = sor.u32 256, 8
    %1120 = vbcast.lane.b32.xlu0 %v1114, %s1119
    %v1121 = vpop.permute.xlu0 %1120
    %v1122 = vlaneseq
    %v1123 = vshrl.u32 %v1122, 7
    %v1124 = vsub.s32 1, %v1123
    %v1125 = vrot.slane %v1109, %v1124
    %1127 = vbcast.lane.b32.xlu0 %v1125, 256
    %v1128 = vpop.permute.xlu0 %1127
    %s1130 = sor.u32 256, 8
    %1131 = vbcast.lane.b32.xlu0 %v1125, %s1130
    %v1132 = vpop.permute.xlu0 %1131
    %v1133 = vlaneseq
    %v1134 = vshrl.u32 %v1133, 7
    %v1135 = vsub.s32 2, %v1134
    %v1136 = vrot.slane %v1109, %v1135
    %1138 = vbcast.lane.b32.xlu0 %v1136, 256
    %v1139 = vpop.permute.xlu0 %1138
    %s1141 = sor.u32 256, 8
    %1142 = vbcast.lane.b32.xlu0 %v1136, %s1141
    %v1143 = vpop.permute.xlu0 %1142
    %v1144 = vlaneseq
    %v1145 = vshrl.u32 %v1144, 7
    %v1146 = vsub.s32 3, %v1145
    %v1147 = vrot.slane %v1109, %v1146
    %1149 = vbcast.lane.b32.xlu0 %v1147, 256
    %v1150 = vpop.permute.xlu0 %1149
    %s1152 = sor.u32 256, 8
    %1153 = vbcast.lane.b32.xlu0 %v1147, %s1152
    %v1154 = vpop.permute.xlu0 %1153
    %v1155 = vlaneseq
    %v1156 = vshrl.u32 %v1155, 7
    %v1157 = vsub.s32 4, %v1156
    %v1158 = vrot.slane %v1109, %v1157
    %1160 = vbcast.lane.b32.xlu0 %v1158, 256
    %v1161 = vpop.permute.xlu0 %1160
    %s1163 = sor.u32 256, 8
    %1164 = vbcast.lane.b32.xlu0 %v1158, %s1163
    %v1165 = vpop.permute.xlu0 %1164
    %v1166 = vlaneseq
    %v1167 = vshrl.u32 %v1166, 7
    %v1168 = vsub.s32 5, %v1167
    %v1169 = vrot.slane %v1109, %v1168
    %1171 = vbcast.lane.b32.xlu0 %v1169, 256
    %v1172 = vpop.permute.xlu0 %1171
    %s1174 = sor.u32 256, 8
    %1175 = vbcast.lane.b32.xlu0 %v1169, %s1174
    %v1176 = vpop.permute.xlu0 %1175
    %v1177 = vlaneseq
    %v1178 = vshrl.u32 %v1177, 7
    %v1179 = vsub.s32 6, %v1178
    %v1180 = vrot.slane %v1109, %v1179
    %1182 = vbcast.lane.b32.xlu0 %v1180, 256
    %v1183 = vpop.permute.xlu0 %1182
    %s1185 = sor.u32 256, 8
    %1186 = vbcast.lane.b32.xlu0 %v1180, %s1185
    %v1187 = vpop.permute.xlu0 %1186
    %v1188 = vlaneseq
    %v1189 = vshrl.u32 %v1188, 7
    %v1190 = vsub.s32 7, %v1189
    %v1191 = vrot.slane %v1109, %v1190
    %1193 = vbcast.lane.b32.xlu0 %v1191, 256
    %v1194 = vpop.permute.xlu0 %1193
    %s1196 = sor.u32 256, 8
    %1197 = vbcast.lane.b32.xlu0 %v1191, %s1196
    %v1198 = vpop.permute.xlu0 %1197
    %v1199 = vlaneseq
    %v1200 = vshrl.u32 %v1199, 7
    %v1201 = vsub.s32 0, %v1200
    %v1202 = vrot.slane %v1110, %v1201
    %1204 = vbcast.lane.b32.xlu0 %v1202, 256
    %v1205 = vpop.permute.xlu0 %1204
    %s1207 = sor.u32 256, 8
    %1208 = vbcast.lane.b32.xlu0 %v1202, %s1207
    %v1209 = vpop.permute.xlu0 %1208
    %v1210 = vlaneseq
    %v1211 = vshrl.u32 %v1210, 7
    %v1212 = vsub.s32 1, %v1211
    %v1213 = vrot.slane %v1110, %v1212
    %1215 = vbcast.lane.b32.xlu0 %v1213, 256
    %v1216 = vpop.permute.xlu0 %1215
    %s1218 = sor.u32 256, 8
    %1219 = vbcast.lane.b32.xlu0 %v1213, %s1218
    %v1220 = vpop.permute.xlu0 %1219
    %v1221 = vlaneseq
    %v1222 = vshrl.u32 %v1221, 7
    %v1223 = vsub.s32 2, %v1222
    %v1224 = vrot.slane %v1110, %v1223
    %1226 = vbcast.lane.b32.xlu0 %v1224, 256
    %v1227 = vpop.permute.xlu0 %1226
    %s1229 = sor.u32 256, 8
    %1230 = vbcast.lane.b32.xlu0 %v1224, %s1229
    %v1231 = vpop.permute.xlu0 %1230
    %v1232 = vlaneseq
    %v1233 = vshrl.u32 %v1232, 7
    %v1234 = vsub.s32 3, %v1233
    %v1235 = vrot.slane %v1110, %v1234
    %1237 = vbcast.lane.b32.xlu0 %v1235, 256
    %v1238 = vpop.permute.xlu0 %1237
    %s1240 = sor.u32 256, 8
    %1241 = vbcast.lane.b32.xlu0 %v1235, %s1240
    %v1242 = vpop.permute.xlu0 %1241
    %v1243 = vlaneseq
    %v1244 = vshrl.u32 %v1243, 7
    %v1245 = vsub.s32 4, %v1244
    %v1246 = vrot.slane %v1110, %v1245
    %1248 = vbcast.lane.b32.xlu0 %v1246, 256
    %v1249 = vpop.permute.xlu0 %1248
    %s1251 = sor.u32 256, 8
    %1252 = vbcast.lane.b32.xlu0 %v1246, %s1251
    %v1253 = vpop.permute.xlu0 %1252
    %v1254 = vlaneseq
    %v1255 = vshrl.u32 %v1254, 7
    %v1256 = vsub.s32 5, %v1255
    %v1257 = vrot.slane %v1110, %v1256
    %1259 = vbcast.lane.b32.xlu0 %v1257, 256
    %v1260 = vpop.permute.xlu0 %1259
    %s1262 = sor.u32 256, 8
    %1263 = vbcast.lane.b32.xlu0 %v1257, %s1262
    %v1264 = vpop.permute.xlu0 %1263
    %v1265 = vlaneseq
    %v1266 = vshrl.u32 %v1265, 7
    %v1267 = vsub.s32 6, %v1266
    %v1268 = vrot.slane %v1110, %v1267
    %1270 = vbcast.lane.b32.xlu0 %v1268, 256
    %v1271 = vpop.permute.xlu0 %1270
    %s1273 = sor.u32 256, 8
    %1274 = vbcast.lane.b32.xlu0 %v1268, %s1273
    %v1275 = vpop.permute.xlu0 %1274
    %v1276 = vlaneseq
    %v1277 = vshrl.u32 %v1276, 7
    %v1278 = vsub.s32 7, %v1277
    %v1279 = vrot.slane %v1110, %v1278
    %1281 = vbcast.lane.b32.xlu0 %v1279, 256
    %v1282 = vpop.permute.xlu0 %1281
    %s1284 = sor.u32 256, 8
    %1285 = vbcast.lane.b32.xlu0 %v1279, %s1284
    %v1286 = vpop.permute.xlu0 %1285
    %vm1287 = vcmp.eq.s32.totalorder %v1117, %v75
    %vm1288 = vcmp.eq.s32.totalorder %v1121, %v75
    %vm1289 = vcmp.eq.s32.totalorder %v1128, %v75
    %vm1290 = vcmp.eq.s32.totalorder %v1132, %v75
    %vm1291 = vcmp.eq.s32.totalorder %v1139, %v75
    %vm1292 = vcmp.eq.s32.totalorder %v1143, %v75
    %vm1293 = vcmp.eq.s32.totalorder %v1150, %v75
    %vm1294 = vcmp.eq.s32.totalorder %v1154, %v75
    %vm1295 = vcmp.eq.s32.totalorder %v1161, %v75
    %vm1296 = vcmp.eq.s32.totalorder %v1165, %v75
    %vm1297 = vcmp.eq.s32.totalorder %v1172, %v75
    %vm1298 = vcmp.eq.s32.totalorder %v1176, %v75
    %vm1299 = vcmp.eq.s32.totalorder %v1183, %v75
    %vm1300 = vcmp.eq.s32.totalorder %v1187, %v75
    %vm1301 = vcmp.eq.s32.totalorder %v1194, %v75
    %vm1302 = vcmp.eq.s32.totalorder %v1198, %v75
    %vm1303 = vcmp.eq.s32.totalorder %v1205, %v75
    %vm1304 = vcmp.eq.s32.totalorder %v1209, %v75
    %vm1305 = vcmp.eq.s32.totalorder %v1216, %v75
    %vm1306 = vcmp.eq.s32.totalorder %v1220, %v75
    %vm1307 = vcmp.eq.s32.totalorder %v1227, %v75
    %vm1308 = vcmp.eq.s32.totalorder %v1231, %v75
    %vm1309 = vcmp.eq.s32.totalorder %v1238, %v75
    %vm1310 = vcmp.eq.s32.totalorder %v1242, %v75
    %vm1311 = vcmp.eq.s32.totalorder %v1249, %v75
    %vm1312 = vcmp.eq.s32.totalorder %v1253, %v75
    %vm1313 = vcmp.eq.s32.totalorder %v1260, %v75
    %vm1314 = vcmp.eq.s32.totalorder %v1264, %v75
    %vm1315 = vcmp.eq.s32.totalorder %v1271, %v75
    %vm1316 = vcmp.eq.s32.totalorder %v1275, %v75
    %vm1317 = vcmp.eq.s32.totalorder %v1282, %v75
    %vm1318 = vcmp.eq.s32.totalorder %v1286, %v75
    %v1319 = vsel %vm1287, 1, 0
    %v1320 = vsel %vm1288, 1, 0
    %v1321 = vsel %vm1289, 1, 0
    %v1322 = vsel %vm1290, 1, 0
    %v1323 = vsel %vm1291, 1, 0
    %v1324 = vsel %vm1292, 1, 0
    %v1325 = vsel %vm1293, 1, 0
    %v1326 = vsel %vm1294, 1, 0
    %v1327 = vsel %vm1295, 1, 0
    %v1328 = vsel %vm1296, 1, 0
    %v1329 = vsel %vm1297, 1, 0
    %v1330 = vsel %vm1298, 1, 0
    %v1331 = vsel %vm1299, 1, 0
    %v1332 = vsel %vm1300, 1, 0
    %v1333 = vsel %vm1301, 1, 0
    %v1334 = vsel %vm1302, 1, 0
    %v1335 = vsel %vm1303, 1, 0
    %v1336 = vsel %vm1304, 1, 0
    %v1337 = vsel %vm1305, 1, 0
    %v1338 = vsel %vm1306, 1, 0
    %v1339 = vsel %vm1307, 1, 0
    %v1340 = vsel %vm1308, 1, 0
    %v1341 = vsel %vm1309, 1, 0
    %v1342 = vsel %vm1310, 1, 0
    %v1343 = vsel %vm1311, 1, 0
    %v1344 = vsel %vm1312, 1, 0
    %v1345 = vsel %vm1313, 1, 0
    %v1346 = vsel %vm1314, 1, 0
    %v1347 = vsel %vm1315, 1, 0
    %v1348 = vsel %vm1316, 1, 0
    %v1349 = vsel %vm1317, 1, 0
    %v1350 = vsel %vm1318, 1, 0
    %v1351 = vcvt.s32.f32 %v1319
    %v1352 = vcvt.s32.f32 %v1320
    %v1353 = vcvt.s32.f32 %v1321
    %v1354 = vcvt.s32.f32 %v1322
    %v1355 = vcvt.s32.f32 %v1323
    %v1356 = vcvt.s32.f32 %v1324
    %v1357 = vcvt.s32.f32 %v1325
    %v1358 = vcvt.s32.f32 %v1326
    %v1359 = vcvt.s32.f32 %v1327
    %v1360 = vcvt.s32.f32 %v1328
    %v1361 = vcvt.s32.f32 %v1329
    %v1362 = vcvt.s32.f32 %v1330
    %v1363 = vcvt.s32.f32 %v1331
    %v1364 = vcvt.s32.f32 %v1332
    %v1365 = vcvt.s32.f32 %v1333
    %v1366 = vcvt.s32.f32 %v1334
    %v1367 = vcvt.s32.f32 %v1335
    %v1368 = vcvt.s32.f32 %v1336
    %v1369 = vcvt.s32.f32 %v1337
    %v1370 = vcvt.s32.f32 %v1338
    %v1371 = vcvt.s32.f32 %v1339
    %v1372 = vcvt.s32.f32 %v1340
    %v1373 = vcvt.s32.f32 %v1341
    %v1374 = vcvt.s32.f32 %v1342
    %v1375 = vcvt.s32.f32 %v1343
    %v1376 = vcvt.s32.f32 %v1344
    %v1377 = vcvt.s32.f32 %v1345
    %v1378 = vcvt.s32.f32 %v1346
    %v1379 = vcvt.s32.f32 %v1347
    %v1380 = vcvt.s32.f32 %v1348
    %v1381 = vcvt.s32.f32 %v1349
    %v1382 = vcvt.s32.f32 %v1350
    %v1383 = vpack.c.bf16 %v1352, %v1351
    %v1384 = vpack.c.bf16 %v1354, %v1353
    %v1385 = vpack.c.bf16 %v1356, %v1355
    %v1386 = vpack.c.bf16 %v1358, %v1357
    %v1387 = vpack.c.bf16 %v1360, %v1359
    %v1388 = vpack.c.bf16 %v1362, %v1361
    %v1389 = vpack.c.bf16 %v1364, %v1363
    %v1390 = vpack.c.bf16 %v1366, %v1365
    %v1391 = vpack.c.bf16 %v1368, %v1367
    %v1392 = vpack.c.bf16 %v1370, %v1369
    %v1393 = vpack.c.bf16 %v1372, %v1371
    %v1394 = vpack.c.bf16 %v1374, %v1373
    %v1395 = vpack.c.bf16 %v1376, %v1375
    %v1396 = vpack.c.bf16 %v1378, %v1377
    %v1397 = vpack.c.bf16 %v1380, %v1379
    %v1398 = vpack.c.bf16 %v1382, %v1381
    %s1399 = scalar_lea.vmem [#allocation5], 128
    %v1400 = vld [vmem:[%s1399] sm:$0xf]
    %v1401 = vld [vmem:[%s1399 + $0x4] sm:$0xf]
    %v1402 = vld [vmem:[%s1399 + $0x8] sm:$0xf]
    %v1403 = vld [vmem:[%s1399 + $0xc] sm:$0xf]
    %v1404 = vld [vmem:[%s1399 + $0x10] sm:$0xf]
    %v1405 = vld [vmem:[%s1399 + $0x14] sm:$0xf]
    %v1406 = vld [vmem:[%s1399 + $0x18] sm:$0xf]
    %v1407 = vld [vmem:[%s1399 + $0x1c] sm:$0xf]
    %v1408 = vld [vmem:[%s1399 + $0x20] sm:$0xf]
    %v1409 = vld [vmem:[%s1399 + $0x24] sm:$0xf]
    %v1410 = vld [vmem:[%s1399 + $0x28] sm:$0xf]
    %v1411 = vld [vmem:[%s1399 + $0x2c] sm:$0xf]
    %v1412 = vld [vmem:[%s1399 + $0x30] sm:$0xf]
    %v1413 = vld [vmem:[%s1399 + $0x34] sm:$0xf]
    %v1414 = vld [vmem:[%s1399 + $0x38] sm:$0xf]
    %v1415 = vld [vmem:[%s1399 + $0x3c] sm:$0xf]
    %v1432 = vunpack.c.l.b16 %v1400
    %v1433 = vunpack.c.l.b16 %v1401
    %v1434 = vunpack.c.l.b16 %v1402
    %v1435 = vunpack.c.l.b16 %v1403
    %v1436 = vunpack.c.l.b16 %v1404
    %v1437 = vunpack.c.l.b16 %v1405
    %v1438 = vunpack.c.l.b16 %v1406
    %v1439 = vunpack.c.l.b16 %v1407
    %v1440 = vunpack.c.l.b16 %v1408
    %v1441 = vunpack.c.l.b16 %v1409
    %v1442 = vunpack.c.l.b16 %v1410
    %v1443 = vunpack.c.l.b16 %v1411
    %v1444 = vunpack.c.l.b16 %v1412
    %v1445 = vunpack.c.l.b16 %v1413
    %v1446 = vunpack.c.l.b16 %v1414
    %v1447 = vunpack.c.l.b16 %v1415
    %v1448 = vpack.c.b16 %v1433, %v1432
    %v1449 = vpack.c.b16 %v1435, %v1434
    %v1450 = vpack.c.b16 %v1437, %v1436
    %v1451 = vpack.c.b16 %v1439, %v1438
    %v1452 = vpack.c.b16 %v1441, %v1440
    %v1453 = vpack.c.b16 %v1443, %v1442
    %v1454 = vpack.c.b16 %v1445, %v1444
    %v1455 = vpack.c.b16 %v1447, %v1446
    %1464 = vmatprep.subr.bf16.mxu0 0
    %1465 = vmatpush1.bf16.msra.mxu0 %v1455
    %1466 = vmatprep.subr.bf16.mxu0 0
    %1467 = vmatpush1.bf16.msra.mxu0 %v1454
    %1468 = vmatprep.subr.bf16.mxu0 0
    %1469 = vmatpush1.bf16.msra.mxu0 %v1453
    %1470 = vmatprep.subr.bf16.mxu0 0
    %1471 = vmatpush1.bf16.msra.mxu0 %v1452
    %1472 = vmatprep.subr.bf16.mxu0 0
    %1473 = vmatpush1.bf16.msra.mxu0 %v1451
    %1474 = vmatprep.subr.bf16.mxu0 0
    %1475 = vmatpush1.bf16.msra.mxu0 %v1450
    %1476 = vmatprep.subr.bf16.mxu0 0
    %1477 = vmatpush1.bf16.msra.mxu0 %v1449
    %1478 = vmatprep.subr.bf16.mxu0 0
    %1479 = vmatpush1.bf16.msra.mxu0 %v1448
    %1480 = vmatprep.subr.bf16.mxu0 0
    %1481 = vmatpush2.bf16.msra.mxu0 0
    %1482 = vmatprep.subr.bf16.mxu0 0
    %1483 = vmatpush2.bf16.msra.mxu0 0
    %1484 = vmatprep.subr.bf16.mxu0 0
    %1485 = vmatpush2.bf16.msra.mxu0 0
    %1486 = vmatprep.subr.bf16.mxu0 0
    %1487 = vmatpush2.bf16.msra.mxu0 0
    %1488 = vmatprep.subr.bf16.mxu0 0
    %1489 = vmatpush2.bf16.msra.mxu0 0
    %1490 = vmatprep.subr.bf16.mxu0 0
    %1491 = vmatpush2.bf16.msra.mxu0 0
    %1492 = vmatprep.subr.bf16.mxu0 0
    %1493 = vmatpush2.bf16.msra.mxu0 0
    %1494 = vmatprep.subr.bf16.mxu0 0
    %1495 = vmatpush2.bf16.msra.mxu0 0
    %1496 = vmatprep.mubr.bf16.mxu0 0
    %1497 = vmatmul.mubr.bf16.gmra.mxu0 %v1383
    %v1498 = vpop.f32.mrf.mxu0
    %v1499 = vadd.f32 0.0, %v1498
    %v1500 = vpop.f32.mrf.mxu0
    %v1501 = vpop.f32.mrf.mxu0
    %v1502 = vadd.f32 0.0, %v1501
    %v1503 = vpop.f32.mrf.mxu0
    %1504 = vmatprep.mubr.bf16.mxu0 0
    %1505 = vmatmul.mubr.bf16.gmra.mxu0 %v1384
    %v1506 = vpop.f32.mrf.mxu0
    %v1507 = vadd.f32 0.0, %v1506
    %v1508 = vpop.f32.mrf.mxu0
    %v1509 = vpop.f32.mrf.mxu0
    %v1510 = vadd.f32 0.0, %v1509
    %v1511 = vpop.f32.mrf.mxu0
    %1512 = vmatprep.mubr.bf16.mxu0 0
    %1513 = vmatmul.mubr.bf16.gmra.mxu0 %v1385
    %v1514 = vpop.f32.mrf.mxu0
    %v1515 = vadd.f32 0.0, %v1514
    %v1516 = vpop.f32.mrf.mxu0
    %v1517 = vpop.f32.mrf.mxu0
    %v1518 = vadd.f32 0.0, %v1517
    %v1519 = vpop.f32.mrf.mxu0
    %1520 = vmatprep.mubr.bf16.mxu0 0
    %1521 = vmatmul.mubr.bf16.gmra.mxu0 %v1386
    %v1522 = vpop.f32.mrf.mxu0
    %v1523 = vadd.f32 0.0, %v1522
    %v1524 = vpop.f32.mrf.mxu0
    %v1525 = vpop.f32.mrf.mxu0
    %v1526 = vadd.f32 0.0, %v1525
    %v1527 = vpop.f32.mrf.mxu0
    %1528 = vmatprep.mubr.bf16.mxu0 0
    %1529 = vmatmul.mubr.bf16.gmra.mxu0 %v1387
    %v1530 = vpop.f32.mrf.mxu0
    %v1531 = vadd.f32 0.0, %v1530
    %v1532 = vpop.f32.mrf.mxu0
    %v1533 = vpop.f32.mrf.mxu0
    %v1534 = vadd.f32 0.0, %v1533
    %v1535 = vpop.f32.mrf.mxu0
    %1536 = vmatprep.mubr.bf16.mxu0 0
    %1537 = vmatmul.mubr.bf16.gmra.mxu0 %v1388
    %v1538 = vpop.f32.mrf.mxu0
    %v1539 = vadd.f32 0.0, %v1538
    %v1540 = vpop.f32.mrf.mxu0
    %v1541 = vpop.f32.mrf.mxu0
    %v1542 = vadd.f32 0.0, %v1541
    %v1543 = vpop.f32.mrf.mxu0
    %1544 = vmatprep.mubr.bf16.mxu0 0
    %1545 = vmatmul.mubr.bf16.gmra.mxu0 %v1389
    %v1546 = vpop.f32.mrf.mxu0
    %v1547 = vadd.f32 0.0, %v1546
    %v1548 = vpop.f32.mrf.mxu0
    %v1549 = vpop.f32.mrf.mxu0
    %v1550 = vadd.f32 0.0, %v1549
    %v1551 = vpop.f32.mrf.mxu0
    %1552 = vmatprep.mubr.bf16.mxu0 0
    %1553 = vmatmul.mubr.bf16.gmra.mxu0 %v1390
    %v1554 = vpop.f32.mrf.mxu0
    %v1555 = vadd.f32 0.0, %v1554
    %v1556 = vpop.f32.mrf.mxu0
    %v1557 = vpop.f32.mrf.mxu0
    %v1558 = vadd.f32 0.0, %v1557
    %v1559 = vpop.f32.mrf.mxu0
    %1560 = vmatprep.mubr.bf16.mxu0 0
    %1561 = vmatmul.mubr.bf16.gmra.mxu0 %v1391
    %v1562 = vpop.f32.mrf.mxu0
    %v1563 = vadd.f32 0.0, %v1562
    %v1564 = vpop.f32.mrf.mxu0
    %v1565 = vpop.f32.mrf.mxu0
    %v1566 = vadd.f32 0.0, %v1565
    %v1567 = vpop.f32.mrf.mxu0
    %1568 = vmatprep.mubr.bf16.mxu0 0
    %1569 = vmatmul.mubr.bf16.gmra.mxu0 %v1392
    %v1570 = vpop.f32.mrf.mxu0
    %v1571 = vadd.f32 0.0, %v1570
    %v1572 = vpop.f32.mrf.mxu0
    %v1573 = vpop.f32.mrf.mxu0
    %v1574 = vadd.f32 0.0, %v1573
    %v1575 = vpop.f32.mrf.mxu0
    %1576 = vmatprep.mubr.bf16.mxu0 0
    %1577 = vmatmul.mubr.bf16.gmra.mxu0 %v1393
    %v1578 = vpop.f32.mrf.mxu0
    %v1579 = vadd.f32 0.0, %v1578
    %v1580 = vpop.f32.mrf.mxu0
    %v1581 = vpop.f32.mrf.mxu0
    %v1582 = vadd.f32 0.0, %v1581
    %v1583 = vpop.f32.mrf.mxu0
    %1584 = vmatprep.mubr.bf16.mxu0 0
    %1585 = vmatmul.mubr.bf16.gmra.mxu0 %v1394
    %v1586 = vpop.f32.mrf.mxu0
    %v1587 = vadd.f32 0.0, %v1586
    %v1588 = vpop.f32.mrf.mxu0
    %v1589 = vpop.f32.mrf.mxu0
    %v1590 = vadd.f32 0.0, %v1589
    %v1591 = vpop.f32.mrf.mxu0
    %1592 = vmatprep.mubr.bf16.mxu0 0
    %1593 = vmatmul.mubr.bf16.gmra.mxu0 %v1395
    %v1594 = vpop.f32.mrf.mxu0
    %v1595 = vadd.f32 0.0, %v1594
    %v1596 = vpop.f32.mrf.mxu0
    %v1597 = vpop.f32.mrf.mxu0
    %v1598 = vadd.f32 0.0, %v1597
    %v1599 = vpop.f32.mrf.mxu0
    %1600 = vmatprep.mubr.bf16.mxu0 0
    %1601 = vmatmul.mubr.bf16.gmra.mxu0 %v1396
    %v1602 = vpop.f32.mrf.mxu0
    %v1603 = vadd.f32 0.0, %v1602
    %v1604 = vpop.f32.mrf.mxu0
    %v1605 = vpop.f32.mrf.mxu0
    %v1606 = vadd.f32 0.0, %v1605
    %v1607 = vpop.f32.mrf.mxu0
    %1608 = vmatprep.mubr.bf16.mxu0 0
    %1609 = vmatmul.mubr.bf16.gmra.mxu0 %v1397
    %v1610 = vpop.f32.mrf.mxu0
    %v1611 = vadd.f32 0.0, %v1610
    %v1612 = vpop.f32.mrf.mxu0
    %v1613 = vpop.f32.mrf.mxu0
    %v1614 = vadd.f32 0.0, %v1613
    %v1615 = vpop.f32.mrf.mxu0
    %1616 = vmatprep.mubr.bf16.mxu0 0
    %1617 = vmatmul.mubr.bf16.gmra.mxu0 %v1398
    %v1618 = vpop.f32.mrf.mxu0
    %v1619 = vadd.f32 0.0, %v1618
    %v1620 = vpop.f32.mrf.mxu0
    %v1621 = vpop.f32.mrf.mxu0
    %v1622 = vadd.f32 0.0, %v1621
    %v1623 = vpop.f32.mrf.mxu0
    %1624 = vdwg.mxu0
    %v1625 = vadd.f32 %v982, %v1499
    %v1626 = vadd.f32 %v985, %v1502
    %v1627 = vadd.f32 %v990, %v1507
    %v1628 = vadd.f32 %v993, %v1510
    %v1629 = vadd.f32 %v998, %v1515
    %v1630 = vadd.f32 %v1001, %v1518
    %v1631 = vadd.f32 %v1006, %v1523
    %v1632 = vadd.f32 %v1009, %v1526
    %v1633 = vadd.f32 %v1014, %v1531
    %v1634 = vadd.f32 %v1017, %v1534
    %v1635 = vadd.f32 %v1022, %v1539
    %v1636 = vadd.f32 %v1025, %v1542
    %v1637 = vadd.f32 %v1030, %v1547
    %v1638 = vadd.f32 %v1033, %v1550
    %v1639 = vadd.f32 %v1038, %v1555
    %v1640 = vadd.f32 %v1041, %v1558
    %v1641 = vadd.f32 %v1046, %v1563
    %v1642 = vadd.f32 %v1049, %v1566
    %v1643 = vadd.f32 %v1054, %v1571
    %v1644 = vadd.f32 %v1057, %v1574
    %v1645 = vadd.f32 %v1062, %v1579
    %v1646 = vadd.f32 %v1065, %v1582
    %v1647 = vadd.f32 %v1070, %v1587
    %v1648 = vadd.f32 %v1073, %v1590
    %v1649 = vadd.f32 %v1078, %v1595
    %v1650 = vadd.f32 %v1081, %v1598
    %v1651 = vadd.f32 %v1086, %v1603
    %v1652 = vadd.f32 %v1089, %v1606
    %v1653 = vadd.f32 %v1094, %v1611
    %v1654 = vadd.f32 %v1097, %v1614
    %v1655 = vadd.f32 %v1102, %v1619
    %v1656 = vadd.f32 %v1105, %v1622
    %s1657 = scalar_lea.vmem [#allocation2], 48
    %v1658 = vld [vmem:[%s1657] sm:$0xff]
    %v1659 = vld [vmem:[%s1657 + $0x8] sm:$0xff]
    %v1660 = vlaneseq
    %v1661 = vshrl.u32 %v1660, 7
    %v1662 = vsub.s32 0, %v1661
    %v1663 = vrot.slane %v1658, %v1662
    %1665 = vbcast.lane.b32.xlu0 %v1663, 256
    %v1666 = vpop.permute.xlu0 %1665
    %s1668 = sor.u32 256, 8
    %1669 = vbcast.lane.b32.xlu0 %v1663, %s1668
    %v1670 = vpop.permute.xlu0 %1669
    %v1671 = vlaneseq
    %v1672 = vshrl.u32 %v1671, 7
    %v1673 = vsub.s32 1, %v1672
    %v1674 = vrot.slane %v1658, %v1673
    %1676 = vbcast.lane.b32.xlu0 %v1674, 256
    %v1677 = vpop.permute.xlu0 %1676
    %s1679 = sor.u32 256, 8
    %1680 = vbcast.lane.b32.xlu0 %v1674, %s1679
    %v1681 = vpop.permute.xlu0 %1680
    %v1682 = vlaneseq
    %v1683 = vshrl.u32 %v1682, 7
    %v1684 = vsub.s32 2, %v1683
    %v1685 = vrot.slane %v1658, %v1684
    %1687 = vbcast.lane.b32.xlu0 %v1685, 256
    %v1688 = vpop.permute.xlu0 %1687
    %s1690 = sor.u32 256, 8
    %1691 = vbcast.lane.b32.xlu0 %v1685, %s1690
    %v1692 = vpop.permute.xlu0 %1691
    %v1693 = vlaneseq
    %v1694 = vshrl.u32 %v1693, 7
    %v1695 = vsub.s32 3, %v1694
    %v1696 = vrot.slane %v1658, %v1695
    %1698 = vbcast.lane.b32.xlu0 %v1696, 256
    %v1699 = vpop.permute.xlu0 %1698
    %s1701 = sor.u32 256, 8
    %1702 = vbcast.lane.b32.xlu0 %v1696, %s1701
    %v1703 = vpop.permute.xlu0 %1702
    %v1704 = vlaneseq
    %v1705 = vshrl.u32 %v1704, 7
    %v1706 = vsub.s32 4, %v1705
    %v1707 = vrot.slane %v1658, %v1706
    %1709 = vbcast.lane.b32.xlu0 %v1707, 256
    %v1710 = vpop.permute.xlu0 %1709
    %s1712 = sor.u32 256, 8
    %1713 = vbcast.lane.b32.xlu0 %v1707, %s1712
    %v1714 = vpop.permute.xlu0 %1713
    %v1715 = vlaneseq
    %v1716 = vshrl.u32 %v1715, 7
    %v1717 = vsub.s32 5, %v1716
    %v1718 = vrot.slane %v1658, %v1717
    %1720 = vbcast.lane.b32.xlu0 %v1718, 256
    %v1721 = vpop.permute.xlu0 %1720
    %s1723 = sor.u32 256, 8
    %1724 = vbcast.lane.b32.xlu0 %v1718, %s1723
    %v1725 = vpop.permute.xlu0 %1724
    %v1726 = vlaneseq
    %v1727 = vshrl.u32 %v1726, 7
    %v1728 = vsub.s32 6, %v1727
    %v1729 = vrot.slane %v1658, %v1728
    %1731 = vbcast.lane.b32.xlu0 %v1729, 256
    %v1732 = vpop.permute.xlu0 %1731
    %s1734 = sor.u32 256, 8
    %1735 = vbcast.lane.b32.xlu0 %v1729, %s1734
    %v1736 = vpop.permute.xlu0 %1735
    %v1737 = vlaneseq
    %v1738 = vshrl.u32 %v1737, 7
    %v1739 = vsub.s32 7, %v1738
    %v1740 = vrot.slane %v1658, %v1739
    %1742 = vbcast.lane.b32.xlu0 %v1740, 256
    %v1743 = vpop.permute.xlu0 %1742
    %s1745 = sor.u32 256, 8
    %1746 = vbcast.lane.b32.xlu0 %v1740, %s1745
    %v1747 = vpop.permute.xlu0 %1746
    %v1748 = vlaneseq
    %v1749 = vshrl.u32 %v1748, 7
    %v1750 = vsub.s32 0, %v1749
    %v1751 = vrot.slane %v1659, %v1750
    %1753 = vbcast.lane.b32.xlu0 %v1751, 256
    %v1754 = vpop.permute.xlu0 %1753
    %s1756 = sor.u32 256, 8
    %1757 = vbcast.lane.b32.xlu0 %v1751, %s1756
    %v1758 = vpop.permute.xlu0 %1757
    %v1759 = vlaneseq
    %v1760 = vshrl.u32 %v1759, 7
    %v1761 = vsub.s32 1, %v1760
    %v1762 = vrot.slane %v1659, %v1761
    %1764 = vbcast.lane.b32.xlu0 %v1762, 256
    %v1765 = vpop.permute.xlu0 %1764
    %s1767 = sor.u32 256, 8
    %1768 = vbcast.lane.b32.xlu0 %v1762, %s1767
    %v1769 = vpop.permute.xlu0 %1768
    %v1770 = vlaneseq
    %v1771 = vshrl.u32 %v1770, 7
    %v1772 = vsub.s32 2, %v1771
    %v1773 = vrot.slane %v1659, %v1772
    %1775 = vbcast.lane.b32.xlu0 %v1773, 256
    %v1776 = vpop.permute.xlu0 %1775
    %s1778 = sor.u32 256, 8
    %1779 = vbcast.lane.b32.xlu0 %v1773, %s1778
    %v1780 = vpop.permute.xlu0 %1779
    %v1781 = vlaneseq
    %v1782 = vshrl.u32 %v1781, 7
    %v1783 = vsub.s32 3, %v1782
    %v1784 = vrot.slane %v1659, %v1783
    %1786 = vbcast.lane.b32.xlu0 %v1784, 256
    %v1787 = vpop.permute.xlu0 %1786
    %s1789 = sor.u32 256, 8
    %1790 = vbcast.lane.b32.xlu0 %v1784, %s1789
    %v1791 = vpop.permute.xlu0 %1790
    %v1792 = vlaneseq
    %v1793 = vshrl.u32 %v1792, 7
    %v1794 = vsub.s32 4, %v1793
    %v1795 = vrot.slane %v1659, %v1794
    %1797 = vbcast.lane.b32.xlu0 %v1795, 256
    %v1798 = vpop.permute.xlu0 %1797
    %s1800 = sor.u32 256, 8
    %1801 = vbcast.lane.b32.xlu0 %v1795, %s1800
    %v1802 = vpop.permute.xlu0 %1801
    %v1803 = vlaneseq
    %v1804 = vshrl.u32 %v1803, 7
    %v1805 = vsub.s32 5, %v1804
    %v1806 = vrot.slane %v1659, %v1805
    %1808 = vbcast.lane.b32.xlu0 %v1806, 256
    %v1809 = vpop.permute.xlu0 %1808
    %s1811 = sor.u32 256, 8
    %1812 = vbcast.lane.b32.xlu0 %v1806, %s1811
    %v1813 = vpop.permute.xlu0 %1812
    %v1814 = vlaneseq
    %v1815 = vshrl.u32 %v1814, 7
    %v1816 = vsub.s32 6, %v1815
    %v1817 = vrot.slane %v1659, %v1816
    %1819 = vbcast.lane.b32.xlu0 %v1817, 256
    %v1820 = vpop.permute.xlu0 %1819
    %s1822 = sor.u32 256, 8
    %1823 = vbcast.lane.b32.xlu0 %v1817, %s1822
    %v1824 = vpop.permute.xlu0 %1823
    %v1825 = vlaneseq
    %v1826 = vshrl.u32 %v1825, 7
    %v1827 = vsub.s32 7, %v1826
    %v1828 = vrot.slane %v1659, %v1827
    %1830 = vbcast.lane.b32.xlu0 %v1828, 256
    %v1831 = vpop.permute.xlu0 %1830
    %s1833 = sor.u32 256, 8
    %1834 = vbcast.lane.b32.xlu0 %v1828, %s1833
    %v1835 = vpop.permute.xlu0 %1834
    %vm1836 = vcmp.eq.s32.totalorder %v1666, %v75
    %vm1837 = vcmp.eq.s32.totalorder %v1670, %v75
    %vm1838 = vcmp.eq.s32.totalorder %v1677, %v75
    %vm1839 = vcmp.eq.s32.totalorder %v1681, %v75
    %vm1840 = vcmp.eq.s32.totalorder %v1688, %v75
    %vm1841 = vcmp.eq.s32.totalorder %v1692, %v75
    %vm1842 = vcmp.eq.s32.totalorder %v1699, %v75
    %vm1843 = vcmp.eq.s32.totalorder %v1703, %v75
    %vm1844 = vcmp.eq.s32.totalorder %v1710, %v75
    %vm1845 = vcmp.eq.s32.totalorder %v1714, %v75
    %vm1846 = vcmp.eq.s32.totalorder %v1721, %v75
    %vm1847 = vcmp.eq.s32.totalorder %v1725, %v75
    %vm1848 = vcmp.eq.s32.totalorder %v1732, %v75
    %vm1849 = vcmp.eq.s32.totalorder %v1736, %v75
    %vm1850 = vcmp.eq.s32.totalorder %v1743, %v75
    %vm1851 = vcmp.eq.s32.totalorder %v1747, %v75
    %vm1852 = vcmp.eq.s32.totalorder %v1754, %v75
    %vm1853 = vcmp.eq.s32.totalorder %v1758, %v75
    %vm1854 = vcmp.eq.s32.totalorder %v1765, %v75
    %vm1855 = vcmp.eq.s32.totalorder %v1769, %v75
    %vm1856 = vcmp.eq.s32.totalorder %v1776, %v75
    %vm1857 = vcmp.eq.s32.totalorder %v1780, %v75
    %vm1858 = vcmp.eq.s32.totalorder %v1787, %v75
    %vm1859 = vcmp.eq.s32.totalorder %v1791, %v75
    %vm1860 = vcmp.eq.s32.totalorder %v1798, %v75
    %vm1861 = vcmp.eq.s32.totalorder %v1802, %v75
    %vm1862 = vcmp.eq.s32.totalorder %v1809, %v75
    %vm1863 = vcmp.eq.s32.totalorder %v1813, %v75
    %vm1864 = vcmp.eq.s32.totalorder %v1820, %v75
    %vm1865 = vcmp.eq.s32.totalorder %v1824, %v75
    %vm1866 = vcmp.eq.s32.totalorder %v1831, %v75
    %vm1867 = vcmp.eq.s32.totalorder %v1835, %v75
    %v1868 = vsel %vm1836, 1, 0
    %v1869 = vsel %vm1837, 1, 0
    %v1870 = vsel %vm1838, 1, 0
    %v1871 = vsel %vm1839, 1, 0
    %v1872 = vsel %vm1840, 1, 0
    %v1873 = vsel %vm1841, 1, 0
    %v1874 = vsel %vm1842, 1, 0
    %v1875 = vsel %vm1843, 1, 0
    %v1876 = vsel %vm1844, 1, 0
    %v1877 = vsel %vm1845, 1, 0
    %v1878 = vsel %vm1846, 1, 0
    %v1879 = vsel %vm1847, 1, 0
    %v1880 = vsel %vm1848, 1, 0
    %v1881 = vsel %vm1849, 1, 0
    %v1882 = vsel %vm1850, 1, 0
    %v1883 = vsel %vm1851, 1, 0
    %v1884 = vsel %vm1852, 1, 0
    %v1885 = vsel %vm1853, 1, 0
    %v1886 = vsel %vm1854, 1, 0
    %v1887 = vsel %vm1855, 1, 0
    %v1888 = vsel %vm1856, 1, 0
    %v1889 = vsel %vm1857, 1, 0
    %v1890 = vsel %vm1858, 1, 0
    %v1891 = vsel %vm1859, 1, 0
    %v1892 = vsel %vm1860, 1, 0
    %v1893 = vsel %vm1861, 1, 0
    %v1894 = vsel %vm1862, 1, 0
    %v1895 = vsel %vm1863, 1, 0
    %v1896 = vsel %vm1864, 1, 0
    %v1897 = vsel %vm1865, 1, 0
    %v1898 = vsel %vm1866, 1, 0
    %v1899 = vsel %vm1867, 1, 0
    %v1900 = vcvt.s32.f32 %v1868
    %v1901 = vcvt.s32.f32 %v1869
    %v1902 = vcvt.s32.f32 %v1870
    %v1903 = vcvt.s32.f32 %v1871
    %v1904 = vcvt.s32.f32 %v1872
    %v1905 = vcvt.s32.f32 %v1873
    %v1906 = vcvt.s32.f32 %v1874
    %v1907 = vcvt.s32.f32 %v1875
    %v1908 = vcvt.s32.f32 %v1876
    %v1909 = vcvt.s32.f32 %v1877
    %v1910 = vcvt.s32.f32 %v1878
    %v1911 = vcvt.s32.f32 %v1879
    %v1912 = vcvt.s32.f32 %v1880
    %v1913 = vcvt.s32.f32 %v1881
    %v1914 = vcvt.s32.f32 %v1882
    %v1915 = vcvt.s32.f32 %v1883
    %v1916 = vcvt.s32.f32 %v1884
    %v1917 = vcvt.s32.f32 %v1885
    %v1918 = vcvt.s32.f32 %v1886
    %v1919 = vcvt.s32.f32 %v1887
    %v1920 = vcvt.s32.f32 %v1888
    %v1921 = vcvt.s32.f32 %v1889
    %v1922 = vcvt.s32.f32 %v1890
    %v1923 = vcvt.s32.f32 %v1891
    %v1924 = vcvt.s32.f32 %v1892
    %v1925 = vcvt.s32.f32 %v1893
    %v1926 = vcvt.s32.f32 %v1894
    %v1927 = vcvt.s32.f32 %v1895
    %v1928 = vcvt.s32.f32 %v1896
    %v1929 = vcvt.s32.f32 %v1897
    %v1930 = vcvt.s32.f32 %v1898
    %v1931 = vcvt.s32.f32 %v1899
    %v1932 = vpack.c.bf16 %v1901, %v1900
    %v1933 = vpack.c.bf16 %v1903, %v1902
    %v1934 = vpack.c.bf16 %v1905, %v1904
    %v1935 = vpack.c.bf16 %v1907, %v1906
    %v1936 = vpack.c.bf16 %v1909, %v1908
    %v1937 = vpack.c.bf16 %v1911, %v1910
    %v1938 = vpack.c.bf16 %v1913, %v1912
    %v1939 = vpack.c.bf16 %v1915, %v1914
    %v1940 = vpack.c.bf16 %v1917, %v1916
    %v1941 = vpack.c.bf16 %v1919, %v1918
    %v1942 = vpack.c.bf16 %v1921, %v1920
    %v1943 = vpack.c.bf16 %v1923, %v1922
    %v1944 = vpack.c.bf16 %v1925, %v1924
    %v1945 = vpack.c.bf16 %v1927, %v1926
    %v1946 = vpack.c.bf16 %v1929, %v1928
    %v1947 = vpack.c.bf16 %v1931, %v1930
    %s1948 = scalar_lea.vmem [#allocation5], 192
    %v1949 = vld [vmem:[%s1948] sm:$0xf]
    %v1950 = vld [vmem:[%s1948 + $0x4] sm:$0xf]
    %v1951 = vld [vmem:[%s1948 + $0x8] sm:$0xf]
    %v1952 = vld [vmem:[%s1948 + $0xc] sm:$0xf]
    %v1953 = vld [vmem:[%s1948 + $0x10] sm:$0xf]
    %v1954 = vld [vmem:[%s1948 + $0x14] sm:$0xf]
    %v1955 = vld [vmem:[%s1948 + $0x18] sm:$0xf]
    %v1956 = vld [vmem:[%s1948 + $0x1c] sm:$0xf]
    %v1957 = vld [vmem:[%s1948 + $0x20] sm:$0xf]
    %v1958 = vld [vmem:[%s1948 + $0x24] sm:$0xf]
    %v1959 = vld [vmem:[%s1948 + $0x28] sm:$0xf]
    %v1960 = vld [vmem:[%s1948 + $0x2c] sm:$0xf]
    %v1961 = vld [vmem:[%s1948 + $0x30] sm:$0xf]
    %v1962 = vld [vmem:[%s1948 + $0x34] sm:$0xf]
    %v1963 = vld [vmem:[%s1948 + $0x38] sm:$0xf]
    %v1964 = vld [vmem:[%s1948 + $0x3c] sm:$0xf]
    %v1981 = vunpack.c.l.b16 %v1949
    %v1982 = vunpack.c.l.b16 %v1950
    %v1983 = vunpack.c.l.b16 %v1951
    %v1984 = vunpack.c.l.b16 %v1952
    %v1985 = vunpack.c.l.b16 %v1953
    %v1986 = vunpack.c.l.b16 %v1954
    %v1987 = vunpack.c.l.b16 %v1955
    %v1988 = vunpack.c.l.b16 %v1956
    %v1989 = vunpack.c.l.b16 %v1957
    %v1990 = vunpack.c.l.b16 %v1958
    %v1991 = vunpack.c.l.b16 %v1959
    %v1992 = vunpack.c.l.b16 %v1960
    %v1993 = vunpack.c.l.b16 %v1961
    %v1994 = vunpack.c.l.b16 %v1962
    %v1995 = vunpack.c.l.b16 %v1963
    %v1996 = vunpack.c.l.b16 %v1964
    %v1997 = vpack.c.b16 %v1982, %v1981
    %v1998 = vpack.c.b16 %v1984, %v1983
    %v1999 = vpack.c.b16 %v1986, %v1985
    %v2000 = vpack.c.b16 %v1988, %v1987
    %v2001 = vpack.c.b16 %v1990, %v1989
    %v2002 = vpack.c.b16 %v1992, %v1991
    %v2003 = vpack.c.b16 %v1994, %v1993
    %v2004 = vpack.c.b16 %v1996, %v1995
    %2013 = vmatprep.subr.bf16.mxu0 0
    %2014 = vmatpush1.bf16.msra.mxu0 %v2004
    %2015 = vmatprep.subr.bf16.mxu0 0
    %2016 = vmatpush1.bf16.msra.mxu0 %v2003
    %2017 = vmatprep.subr.bf16.mxu0 0
    %2018 = vmatpush1.bf16.msra.mxu0 %v2002
    %2019 = vmatprep.subr.bf16.mxu0 0
    %2020 = vmatpush1.bf16.msra.mxu0 %v2001
    %2021 = vmatprep.subr.bf16.mxu0 0
    %2022 = vmatpush1.bf16.msra.mxu0 %v2000
    %2023 = vmatprep.subr.bf16.mxu0 0
    %2024 = vmatpush1.bf16.msra.mxu0 %v1999
    %2025 = vmatprep.subr.bf16.mxu0 0
    %2026 = vmatpush1.bf16.msra.mxu0 %v1998
    %2027 = vmatprep.subr.bf16.mxu0 0
    %2028 = vmatpush1.bf16.msra.mxu0 %v1997
    %2029 = vmatprep.subr.bf16.mxu0 0
    %2030 = vmatpush2.bf16.msra.mxu0 0
    %2031 = vmatprep.subr.bf16.mxu0 0
    %2032 = vmatpush2.bf16.msra.mxu0 0
    %2033 = vmatprep.subr.bf16.mxu0 0
    %2034 = vmatpush2.bf16.msra.mxu0 0
    %2035 = vmatprep.subr.bf16.mxu0 0
    %2036 = vmatpush2.bf16.msra.mxu0 0
    %2037 = vmatprep.subr.bf16.mxu0 0
    %2038 = vmatpush2.bf16.msra.mxu0 0
    %2039 = vmatprep.subr.bf16.mxu0 0
    %2040 = vmatpush2.bf16.msra.mxu0 0
    %2041 = vmatprep.subr.bf16.mxu0 0
    %2042 = vmatpush2.bf16.msra.mxu0 0
    %2043 = vmatprep.subr.bf16.mxu0 0
    %2044 = vmatpush2.bf16.msra.mxu0 0
    %2045 = vmatprep.mubr.bf16.mxu0 0
    %2046 = vmatmul.mubr.bf16.gmra.mxu0 %v1932
    %v2047 = vpop.f32.mrf.mxu0
    %v2048 = vadd.f32 0.0, %v2047
    %v2049 = vpop.f32.mrf.mxu0
    %v2050 = vpop.f32.mrf.mxu0
    %v2051 = vadd.f32 0.0, %v2050
    %v2052 = vpop.f32.mrf.mxu0
    %2053 = vmatprep.mubr.bf16.mxu0 0
    %2054 = vmatmul.mubr.bf16.gmra.mxu0 %v1933
    %v2055 = vpop.f32.mrf.mxu0
    %v2056 = vadd.f32 0.0, %v2055
    %v2057 = vpop.f32.mrf.mxu0
    %v2058 = vpop.f32.mrf.mxu0
    %v2059 = vadd.f32 0.0, %v2058
    %v2060 = vpop.f32.mrf.mxu0
    %2061 = vmatprep.mubr.bf16.mxu0 0
    %2062 = vmatmul.mubr.bf16.gmra.mxu0 %v1934
    %v2063 = vpop.f32.mrf.mxu0
    %v2064 = vadd.f32 0.0, %v2063
    %v2065 = vpop.f32.mrf.mxu0
    %v2066 = vpop.f32.mrf.mxu0
    %v2067 = vadd.f32 0.0, %v2066
    %v2068 = vpop.f32.mrf.mxu0
    %2069 = vmatprep.mubr.bf16.mxu0 0
    %2070 = vmatmul.mubr.bf16.gmra.mxu0 %v1935
    %v2071 = vpop.f32.mrf.mxu0
    %v2072 = vadd.f32 0.0, %v2071
    %v2073 = vpop.f32.mrf.mxu0
    %v2074 = vpop.f32.mrf.mxu0
    %v2075 = vadd.f32 0.0, %v2074
    %v2076 = vpop.f32.mrf.mxu0
    %2077 = vmatprep.mubr.bf16.mxu0 0
    %2078 = vmatmul.mubr.bf16.gmra.mxu0 %v1936
    %v2079 = vpop.f32.mrf.mxu0
    %v2080 = vadd.f32 0.0, %v2079
    %v2081 = vpop.f32.mrf.mxu0
    %v2082 = vpop.f32.mrf.mxu0
    %v2083 = vadd.f32 0.0, %v2082
    %v2084 = vpop.f32.mrf.mxu0
    %2085 = vmatprep.mubr.bf16.mxu0 0
    %2086 = vmatmul.mubr.bf16.gmra.mxu0 %v1937
    %v2087 = vpop.f32.mrf.mxu0
    %v2088 = vadd.f32 0.0, %v2087
    %v2089 = vpop.f32.mrf.mxu0
    %v2090 = vpop.f32.mrf.mxu0
    %v2091 = vadd.f32 0.0, %v2090
    %v2092 = vpop.f32.mrf.mxu0
    %2093 = vmatprep.mubr.bf16.mxu0 0
    %2094 = vmatmul.mubr.bf16.gmra.mxu0 %v1938
    %v2095 = vpop.f32.mrf.mxu0
    %v2096 = vadd.f32 0.0, %v2095
    %v2097 = vpop.f32.mrf.mxu0
    %v2098 = vpop.f32.mrf.mxu0
    %v2099 = vadd.f32 0.0, %v2098
    %v2100 = vpop.f32.mrf.mxu0
    %2101 = vmatprep.mubr.bf16.mxu0 0
    %2102 = vmatmul.mubr.bf16.gmra.mxu0 %v1939
    %v2103 = vpop.f32.mrf.mxu0
    %v2104 = vadd.f32 0.0, %v2103
    %v2105 = vpop.f32.mrf.mxu0
    %v2106 = vpop.f32.mrf.mxu0
    %v2107 = vadd.f32 0.0, %v2106
    %v2108 = vpop.f32.mrf.mxu0
    %2109 = vmatprep.mubr.bf16.mxu0 0
    %2110 = vmatmul.mubr.bf16.gmra.mxu0 %v1940
    %v2111 = vpop.f32.mrf.mxu0
    %v2112 = vadd.f32 0.0, %v2111
    %v2113 = vpop.f32.mrf.mxu0
    %v2114 = vpop.f32.mrf.mxu0
    %v2115 = vadd.f32 0.0, %v2114
    %v2116 = vpop.f32.mrf.mxu0
    %2117 = vmatprep.mubr.bf16.mxu0 0
    %2118 = vmatmul.mubr.bf16.gmra.mxu0 %v1941
    %v2119 = vpop.f32.mrf.mxu0
    %v2120 = vadd.f32 0.0, %v2119
    %v2121 = vpop.f32.mrf.mxu0
    %v2122 = vpop.f32.mrf.mxu0
    %v2123 = vadd.f32 0.0, %v2122
    %v2124 = vpop.f32.mrf.mxu0
    %2125 = vmatprep.mubr.bf16.mxu0 0
    %2126 = vmatmul.mubr.bf16.gmra.mxu0 %v1942
    %v2127 = vpop.f32.mrf.mxu0
    %v2128 = vadd.f32 0.0, %v2127
    %v2129 = vpop.f32.mrf.mxu0
    %v2130 = vpop.f32.mrf.mxu0
    %v2131 = vadd.f32 0.0, %v2130
    %v2132 = vpop.f32.mrf.mxu0
    %2133 = vmatprep.mubr.bf16.mxu0 0
    %2134 = vmatmul.mubr.bf16.gmra.mxu0 %v1943
    %v2135 = vpop.f32.mrf.mxu0
    %v2136 = vadd.f32 0.0, %v2135
    %v2137 = vpop.f32.mrf.mxu0
    %v2138 = vpop.f32.mrf.mxu0
    %v2139 = vadd.f32 0.0, %v2138
    %v2140 = vpop.f32.mrf.mxu0
    %2141 = vmatprep.mubr.bf16.mxu0 0
    %2142 = vmatmul.mubr.bf16.gmra.mxu0 %v1944
    %v2143 = vpop.f32.mrf.mxu0
    %v2144 = vadd.f32 0.0, %v2143
    %v2145 = vpop.f32.mrf.mxu0
    %v2146 = vpop.f32.mrf.mxu0
    %v2147 = vadd.f32 0.0, %v2146
    %v2148 = vpop.f32.mrf.mxu0
    %2149 = vmatprep.mubr.bf16.mxu0 0
    %2150 = vmatmul.mubr.bf16.gmra.mxu0 %v1945
    %v2151 = vpop.f32.mrf.mxu0
    %v2152 = vadd.f32 0.0, %v2151
    %v2153 = vpop.f32.mrf.mxu0
    %v2154 = vpop.f32.mrf.mxu0
    %v2155 = vadd.f32 0.0, %v2154
    %v2156 = vpop.f32.mrf.mxu0
    %2157 = vmatprep.mubr.bf16.mxu0 0
    %2158 = vmatmul.mubr.bf16.gmra.mxu0 %v1946
    %v2159 = vpop.f32.mrf.mxu0
    %v2160 = vadd.f32 0.0, %v2159
    %v2161 = vpop.f32.mrf.mxu0
    %v2162 = vpop.f32.mrf.mxu0
    %v2163 = vadd.f32 0.0, %v2162
    %v2164 = vpop.f32.mrf.mxu0
    %2165 = vmatprep.mubr.bf16.mxu0 0
    %2166 = vmatmul.mubr.bf16.gmra.mxu0 %v1947
    %v2167 = vpop.f32.mrf.mxu0
    %v2168 = vadd.f32 0.0, %v2167
    %v2169 = vpop.f32.mrf.mxu0
    %v2170 = vpop.f32.mrf.mxu0
    %v2171 = vadd.f32 0.0, %v2170
    %v2172 = vpop.f32.mrf.mxu0
    %2173 = vdwg.mxu0
    %v2174 = vadd.f32 %v1625, %v2048
    %v2175 = vadd.f32 %v1626, %v2051
    %v2176 = vadd.f32 %v1627, %v2056
    %v2177 = vadd.f32 %v1628, %v2059
    %v2178 = vadd.f32 %v1629, %v2064
    %v2179 = vadd.f32 %v1630, %v2067
    %v2180 = vadd.f32 %v1631, %v2072
    %v2181 = vadd.f32 %v1632, %v2075
    %v2182 = vadd.f32 %v1633, %v2080
    %v2183 = vadd.f32 %v1634, %v2083
    %v2184 = vadd.f32 %v1635, %v2088
    %v2185 = vadd.f32 %v1636, %v2091
    %v2186 = vadd.f32 %v1637, %v2096
    %v2187 = vadd.f32 %v1638, %v2099
    %v2188 = vadd.f32 %v1639, %v2104
    %v2189 = vadd.f32 %v1640, %v2107
    %v2190 = vadd.f32 %v1641, %v2112
    %v2191 = vadd.f32 %v1642, %v2115
    %v2192 = vadd.f32 %v1643, %v2120
    %v2193 = vadd.f32 %v1644, %v2123
    %v2194 = vadd.f32 %v1645, %v2128
    %v2195 = vadd.f32 %v1646, %v2131
    %v2196 = vadd.f32 %v1647, %v2136
    %v2197 = vadd.f32 %v1648, %v2139
    %v2198 = vadd.f32 %v1649, %v2144
    %v2199 = vadd.f32 %v1650, %v2147
    %v2200 = vadd.f32 %v1651, %v2152
    %v2201 = vadd.f32 %v1652, %v2155
    %v2202 = vadd.f32 %v1653, %v2160
    %v2203 = vadd.f32 %v1654, %v2163
    %v2204 = vadd.f32 %v1655, %v2168
    %v2205 = vadd.f32 %v1656, %v2171
    %s2206 = scalar_lea.vmem [#allocation2], 64
    %v2207 = vld [vmem:[%s2206] sm:$0xff]
    %v2208 = vld [vmem:[%s2206 + $0x8] sm:$0xff]
    %v2209 = vlaneseq
    %v2210 = vshrl.u32 %v2209, 7
    %v2211 = vsub.s32 0, %v2210
    %v2212 = vrot.slane %v2207, %v2211
    %2214 = vbcast.lane.b32.xlu0 %v2212, 256
    %v2215 = vpop.permute.xlu0 %2214
    %s2217 = sor.u32 256, 8
    %2218 = vbcast.lane.b32.xlu0 %v2212, %s2217
    %v2219 = vpop.permute.xlu0 %2218
    %v2220 = vlaneseq
    %v2221 = vshrl.u32 %v2220, 7
    %v2222 = vsub.s32 1, %v2221
    %v2223 = vrot.slane %v2207, %v2222
    %2225 = vbcast.lane.b32.xlu0 %v2223, 256
    %v2226 = vpop.permute.xlu0 %2225
    %s2228 = sor.u32 256, 8
    %2229 = vbcast.lane.b32.xlu0 %v2223, %s2228
    %v2230 = vpop.permute.xlu0 %2229
    %v2231 = vlaneseq
    %v2232 = vshrl.u32 %v2231, 7
    %v2233 = vsub.s32 2, %v2232
    %v2234 = vrot.slane %v2207, %v2233
    %2236 = vbcast.lane.b32.xlu0 %v2234, 256
    %v2237 = vpop.permute.xlu0 %2236
    %s2239 = sor.u32 256, 8
    %2240 = vbcast.lane.b32.xlu0 %v2234, %s2239
    %v2241 = vpop.permute.xlu0 %2240
    %v2242 = vlaneseq
    %v2243 = vshrl.u32 %v2242, 7
    %v2244 = vsub.s32 3, %v2243
    %v2245 = vrot.slane %v2207, %v2244
    %2247 = vbcast.lane.b32.xlu0 %v2245, 256
    %v2248 = vpop.permute.xlu0 %2247
    %s2250 = sor.u32 256, 8
    %2251 = vbcast.lane.b32.xlu0 %v2245, %s2250
    %v2252 = vpop.permute.xlu0 %2251
    %v2253 = vlaneseq
    %v2254 = vshrl.u32 %v2253, 7
    %v2255 = vsub.s32 4, %v2254
    %v2256 = vrot.slane %v2207, %v2255
    %2258 = vbcast.lane.b32.xlu0 %v2256, 256
    %v2259 = vpop.permute.xlu0 %2258
    %s2261 = sor.u32 256, 8
    %2262 = vbcast.lane.b32.xlu0 %v2256, %s2261
    %v2263 = vpop.permute.xlu0 %2262
    %v2264 = vlaneseq
    %v2265 = vshrl.u32 %v2264, 7
    %v2266 = vsub.s32 5, %v2265
    %v2267 = vrot.slane %v2207, %v2266
    %2269 = vbcast.lane.b32.xlu0 %v2267, 256
    %v2270 = vpop.permute.xlu0 %2269
    %s2272 = sor.u32 256, 8
    %2273 = vbcast.lane.b32.xlu0 %v2267, %s2272
    %v2274 = vpop.permute.xlu0 %2273
    %v2275 = vlaneseq
    %v2276 = vshrl.u32 %v2275, 7
    %v2277 = vsub.s32 6, %v2276
    %v2278 = vrot.slane %v2207, %v2277
    %2280 = vbcast.lane.b32.xlu0 %v2278, 256
    %v2281 = vpop.permute.xlu0 %2280
    %s2283 = sor.u32 256, 8
    %2284 = vbcast.lane.b32.xlu0 %v2278, %s2283
    %v2285 = vpop.permute.xlu0 %2284
    %v2286 = vlaneseq
    %v2287 = vshrl.u32 %v2286, 7
    %v2288 = vsub.s32 7, %v2287
    %v2289 = vrot.slane %v2207, %v2288
    %2291 = vbcast.lane.b32.xlu0 %v2289, 256
    %v2292 = vpop.permute.xlu0 %2291
    %s2294 = sor.u32 256, 8
    %2295 = vbcast.lane.b32.xlu0 %v2289, %s2294
    %v2296 = vpop.permute.xlu0 %2295
    %v2297 = vlaneseq
    %v2298 = vshrl.u32 %v2297, 7
    %v2299 = vsub.s32 0, %v2298
    %v2300 = vrot.slane %v2208, %v2299
    %2302 = vbcast.lane.b32.xlu0 %v2300, 256
    %v2303 = vpop.permute.xlu0 %2302
    %s2305 = sor.u32 256, 8
    %2306 = vbcast.lane.b32.xlu0 %v2300, %s2305
    %v2307 = vpop.permute.xlu0 %2306
    %v2308 = vlaneseq
    %v2309 = vshrl.u32 %v2308, 7
    %v2310 = vsub.s32 1, %v2309
    %v2311 = vrot.slane %v2208, %v2310
    %2313 = vbcast.lane.b32.xlu0 %v2311, 256
    %v2314 = vpop.permute.xlu0 %2313
    %s2316 = sor.u32 256, 8
    %2317 = vbcast.lane.b32.xlu0 %v2311, %s2316
    %v2318 = vpop.permute.xlu0 %2317
    %v2319 = vlaneseq
    %v2320 = vshrl.u32 %v2319, 7
    %v2321 = vsub.s32 2, %v2320
    %v2322 = vrot.slane %v2208, %v2321
    %2324 = vbcast.lane.b32.xlu0 %v2322, 256
    %v2325 = vpop.permute.xlu0 %2324
    %s2327 = sor.u32 256, 8
    %2328 = vbcast.lane.b32.xlu0 %v2322, %s2327
    %v2329 = vpop.permute.xlu0 %2328
    %v2330 = vlaneseq
    %v2331 = vshrl.u32 %v2330, 7
    %v2332 = vsub.s32 3, %v2331
    %v2333 = vrot.slane %v2208, %v2332
    %2335 = vbcast.lane.b32.xlu0 %v2333, 256
    %v2336 = vpop.permute.xlu0 %2335
    %s2338 = sor.u32 256, 8
    %2339 = vbcast.lane.b32.xlu0 %v2333, %s2338
    %v2340 = vpop.permute.xlu0 %2339
    %v2341 = vlaneseq
    %v2342 = vshrl.u32 %v2341, 7
    %v2343 = vsub.s32 4, %v2342
    %v2344 = vrot.slane %v2208, %v2343
    %2346 = vbcast.lane.b32.xlu0 %v2344, 256
    %v2347 = vpop.permute.xlu0 %2346
    %s2349 = sor.u32 256, 8
    %2350 = vbcast.lane.b32.xlu0 %v2344, %s2349
    %v2351 = vpop.permute.xlu0 %2350
    %v2352 = vlaneseq
    %v2353 = vshrl.u32 %v2352, 7
    %v2354 = vsub.s32 5, %v2353
    %v2355 = vrot.slane %v2208, %v2354
    %2357 = vbcast.lane.b32.xlu0 %v2355, 256
    %v2358 = vpop.permute.xlu0 %2357
    %s2360 = sor.u32 256, 8
    %2361 = vbcast.lane.b32.xlu0 %v2355, %s2360
    %v2362 = vpop.permute.xlu0 %2361
    %v2363 = vlaneseq
    %v2364 = vshrl.u32 %v2363, 7
    %v2365 = vsub.s32 6, %v2364
    %v2366 = vrot.slane %v2208, %v2365
    %2368 = vbcast.lane.b32.xlu0 %v2366, 256
    %v2369 = vpop.permute.xlu0 %2368
    %s2371 = sor.u32 256, 8
    %2372 = vbcast.lane.b32.xlu0 %v2366, %s2371
    %v2373 = vpop.permute.xlu0 %2372
    %v2374 = vlaneseq
    %v2375 = vshrl.u32 %v2374, 7
    %v2376 = vsub.s32 7, %v2375
    %v2377 = vrot.slane %v2208, %v2376
    %2379 = vbcast.lane.b32.xlu0 %v2377, 256
    %v2380 = vpop.permute.xlu0 %2379
    %s2382 = sor.u32 256, 8
    %2383 = vbcast.lane.b32.xlu0 %v2377, %s2382
    %v2384 = vpop.permute.xlu0 %2383
    %vm2385 = vcmp.eq.s32.totalorder %v2215, %v75
    %vm2386 = vcmp.eq.s32.totalorder %v2219, %v75
    %vm2387 = vcmp.eq.s32.totalorder %v2226, %v75
    %vm2388 = vcmp.eq.s32.totalorder %v2230, %v75
    %vm2389 = vcmp.eq.s32.totalorder %v2237, %v75
    %vm2390 = vcmp.eq.s32.totalorder %v2241, %v75
    %vm2391 = vcmp.eq.s32.totalorder %v2248, %v75
    %vm2392 = vcmp.eq.s32.totalorder %v2252, %v75
    %vm2393 = vcmp.eq.s32.totalorder %v2259, %v75
    %vm2394 = vcmp.eq.s32.totalorder %v2263, %v75
    %vm2395 = vcmp.eq.s32.totalorder %v2270, %v75
    %vm2396 = vcmp.eq.s32.totalorder %v2274, %v75
    %vm2397 = vcmp.eq.s32.totalorder %v2281, %v75
    %vm2398 = vcmp.eq.s32.totalorder %v2285, %v75
    %vm2399 = vcmp.eq.s32.totalorder %v2292, %v75
    %vm2400 = vcmp.eq.s32.totalorder %v2296, %v75
    %vm2401 = vcmp.eq.s32.totalorder %v2303, %v75
    %vm2402 = vcmp.eq.s32.totalorder %v2307, %v75
    %vm2403 = vcmp.eq.s32.totalorder %v2314, %v75
    %vm2404 = vcmp.eq.s32.totalorder %v2318, %v75
    %vm2405 = vcmp.eq.s32.totalorder %v2325, %v75
    %vm2406 = vcmp.eq.s32.totalorder %v2329, %v75
    %vm2407 = vcmp.eq.s32.totalorder %v2336, %v75
    %vm2408 = vcmp.eq.s32.totalorder %v2340, %v75
    %vm2409 = vcmp.eq.s32.totalorder %v2347, %v75
    %vm2410 = vcmp.eq.s32.totalorder %v2351, %v75
    %vm2411 = vcmp.eq.s32.totalorder %v2358, %v75
    %vm2412 = vcmp.eq.s32.totalorder %v2362, %v75
    %vm2413 = vcmp.eq.s32.totalorder %v2369, %v75
    %vm2414 = vcmp.eq.s32.totalorder %v2373, %v75
    %vm2415 = vcmp.eq.s32.totalorder %v2380, %v75
    %vm2416 = vcmp.eq.s32.totalorder %v2384, %v75
    %v2417 = vsel %vm2385, 1, 0
    %v2418 = vsel %vm2386, 1, 0
    %v2419 = vsel %vm2387, 1, 0
    %v2420 = vsel %vm2388, 1, 0
    %v2421 = vsel %vm2389, 1, 0
    %v2422 = vsel %vm2390, 1, 0
    %v2423 = vsel %vm2391, 1, 0
    %v2424 = vsel %vm2392, 1, 0
    %v2425 = vsel %vm2393, 1, 0
    %v2426 = vsel %vm2394, 1, 0
    %v2427 = vsel %vm2395, 1, 0
    %v2428 = vsel %vm2396, 1, 0
    %v2429 = vsel %vm2397, 1, 0
    %v2430 = vsel %vm2398, 1, 0
    %v2431 = vsel %vm2399, 1, 0
    %v2432 = vsel %vm2400, 1, 0
    %v2433 = vsel %vm2401, 1, 0
    %v2434 = vsel %vm2402, 1, 0
    %v2435 = vsel %vm2403, 1, 0
    %v2436 = vsel %vm2404, 1, 0
    %v2437 = vsel %vm2405, 1, 0
    %v2438 = vsel %vm2406, 1, 0
    %v2439 = vsel %vm2407, 1, 0
    %v2440 = vsel %vm2408, 1, 0
    %v2441 = vsel %vm2409, 1, 0
    %v2442 = vsel %vm2410, 1, 0
    %v2443 = vsel %vm2411, 1, 0
    %v2444 = vsel %vm2412, 1, 0
    %v2445 = vsel %vm2413, 1, 0
    %v2446 = vsel %vm2414, 1, 0
    %v2447 = vsel %vm2415, 1, 0
    %v2448 = vsel %vm2416, 1, 0
    %v2449 = vcvt.s32.f32 %v2417
    %v2450 = vcvt.s32.f32 %v2418
    %v2451 = vcvt.s32.f32 %v2419
    %v2452 = vcvt.s32.f32 %v2420
    %v2453 = vcvt.s32.f32 %v2421
    %v2454 = vcvt.s32.f32 %v2422
    %v2455 = vcvt.s32.f32 %v2423
    %v2456 = vcvt.s32.f32 %v2424
    %v2457 = vcvt.s32.f32 %v2425
    %v2458 = vcvt.s32.f32 %v2426
    %v2459 = vcvt.s32.f32 %v2427
    %v2460 = vcvt.s32.f32 %v2428
    %v2461 = vcvt.s32.f32 %v2429
    %v2462 = vcvt.s32.f32 %v2430
    %v2463 = vcvt.s32.f32 %v2431
    %v2464 = vcvt.s32.f32 %v2432
    %v2465 = vcvt.s32.f32 %v2433
    %v2466 = vcvt.s32.f32 %v2434
    %v2467 = vcvt.s32.f32 %v2435
    %v2468 = vcvt.s32.f32 %v2436
    %v2469 = vcvt.s32.f32 %v2437
    %v2470 = vcvt.s32.f32 %v2438
    %v2471 = vcvt.s32.f32 %v2439
    %v2472 = vcvt.s32.f32 %v2440
    %v2473 = vcvt.s32.f32 %v2441
    %v2474 = vcvt.s32.f32 %v2442
    %v2475 = vcvt.s32.f32 %v2443
    %v2476 = vcvt.s32.f32 %v2444
    %v2477 = vcvt.s32.f32 %v2445
    %v2478 = vcvt.s32.f32 %v2446
    %v2479 = vcvt.s32.f32 %v2447
    %v2480 = vcvt.s32.f32 %v2448
    %v2481 = vpack.c.bf16 %v2450, %v2449
    %v2482 = vpack.c.bf16 %v2452, %v2451
    %v2483 = vpack.c.bf16 %v2454, %v2453
    %v2484 = vpack.c.bf16 %v2456, %v2455
    %v2485 = vpack.c.bf16 %v2458, %v2457
    %v2486 = vpack.c.bf16 %v2460, %v2459
    %v2487 = vpack.c.bf16 %v2462, %v2461
    %v2488 = vpack.c.bf16 %v2464, %v2463
    %v2489 = vpack.c.bf16 %v2466, %v2465
    %v2490 = vpack.c.bf16 %v2468, %v2467
    %v2491 = vpack.c.bf16 %v2470, %v2469
    %v2492 = vpack.c.bf16 %v2472, %v2471
    %v2493 = vpack.c.bf16 %v2474, %v2473
    %v2494 = vpack.c.bf16 %v2476, %v2475
    %v2495 = vpack.c.bf16 %v2478, %v2477
    %v2496 = vpack.c.bf16 %v2480, %v2479
    %s2497 = scalar_lea.vmem [#allocation5], 256
    %v2498 = vld [vmem:[%s2497] sm:$0xf]
    %v2499 = vld [vmem:[%s2497 + $0x4] sm:$0xf]
    %v2500 = vld [vmem:[%s2497 + $0x8] sm:$0xf]
    %v2501 = vld [vmem:[%s2497 + $0xc] sm:$0xf]
    %v2502 = vld [vmem:[%s2497 + $0x10] sm:$0xf]
    %v2503 = vld [vmem:[%s2497 + $0x14] sm:$0xf]
    %v2504 = vld [vmem:[%s2497 + $0x18] sm:$0xf]
    %v2505 = vld [vmem:[%s2497 + $0x1c] sm:$0xf]
    %v2506 = vld [vmem:[%s2497 + $0x20] sm:$0xf]
    %v2507 = vld [vmem:[%s2497 + $0x24] sm:$0xf]
    %v2508 = vld [vmem:[%s2497 + $0x28] sm:$0xf]
    %v2509 = vld [vmem:[%s2497 + $0x2c] sm:$0xf]
    %v2510 = vld [vmem:[%s2497 + $0x30] sm:$0xf]
    %v2511 = vld [vmem:[%s2497 + $0x34] sm:$0xf]
    %v2512 = vld [vmem:[%s2497 + $0x38] sm:$0xf]
    %v2513 = vld [vmem:[%s2497 + $0x3c] sm:$0xf]
    %v2530 = vunpack.c.l.b16 %v2498
    %v2531 = vunpack.c.l.b16 %v2499
    %v2532 = vunpack.c.l.b16 %v2500
    %v2533 = vunpack.c.l.b16 %v2501
    %v2534 = vunpack.c.l.b16 %v2502
    %v2535 = vunpack.c.l.b16 %v2503
    %v2536 = vunpack.c.l.b16 %v2504
    %v2537 = vunpack.c.l.b16 %v2505
    %v2538 = vunpack.c.l.b16 %v2506
    %v2539 = vunpack.c.l.b16 %v2507
    %v2540 = vunpack.c.l.b16 %v2508
    %v2541 = vunpack.c.l.b16 %v2509
    %v2542 = vunpack.c.l.b16 %v2510
    %v2543 = vunpack.c.l.b16 %v2511
    %v2544 = vunpack.c.l.b16 %v2512
    %v2545 = vunpack.c.l.b16 %v2513
    %v2546 = vpack.c.b16 %v2531, %v2530
    %v2547 = vpack.c.b16 %v2533, %v2532
    %v2548 = vpack.c.b16 %v2535, %v2534
    %v2549 = vpack.c.b16 %v2537, %v2536
    %v2550 = vpack.c.b16 %v2539, %v2538
    %v2551 = vpack.c.b16 %v2541, %v2540
    %v2552 = vpack.c.b16 %v2543, %v2542
    %v2553 = vpack.c.b16 %v2545, %v2544
    %2562 = vmatprep.subr.bf16.mxu0 0
    %2563 = vmatpush1.bf16.msra.mxu0 %v2553
    %2564 = vmatprep.subr.bf16.mxu0 0
    %2565 = vmatpush1.bf16.msra.mxu0 %v2552
    %2566 = vmatprep.subr.bf16.mxu0 0
    %2567 = vmatpush1.bf16.msra.mxu0 %v2551
    %2568 = vmatprep.subr.bf16.mxu0 0
    %2569 = vmatpush1.bf16.msra.mxu0 %v2550
    %2570 = vmatprep.subr.bf16.mxu0 0
    %2571 = vmatpush1.bf16.msra.mxu0 %v2549
    %2572 = vmatprep.subr.bf16.mxu0 0
    %2573 = vmatpush1.bf16.msra.mxu0 %v2548
    %2574 = vmatprep.subr.bf16.mxu0 0
    %2575 = vmatpush1.bf16.msra.mxu0 %v2547
    %2576 = vmatprep.subr.bf16.mxu0 0
    %2577 = vmatpush1.bf16.msra.mxu0 %v2546
    %2578 = vmatprep.subr.bf16.mxu0 0
    %2579 = vmatpush2.bf16.msra.mxu0 0
    %2580 = vmatprep.subr.bf16.mxu0 0
    %2581 = vmatpush2.bf16.msra.mxu0 0
    %2582 = vmatprep.subr.bf16.mxu0 0
    %2583 = vmatpush2.bf16.msra.mxu0 0
    %2584 = vmatprep.subr.bf16.mxu0 0
    %2585 = vmatpush2.bf16.msra.mxu0 0
    %2586 = vmatprep.subr.bf16.mxu0 0
    %2587 = vmatpush2.bf16.msra.mxu0 0
    %2588 = vmatprep.subr.bf16.mxu0 0
    %2589 = vmatpush2.bf16.msra.mxu0 0
    %2590 = vmatprep.subr.bf16.mxu0 0
    %2591 = vmatpush2.bf16.msra.mxu0 0
    %2592 = vmatprep.subr.bf16.mxu0 0
    %2593 = vmatpush2.bf16.msra.mxu0 0
    %2594 = vmatprep.mubr.bf16.mxu0 0
    %2595 = vmatmul.mubr.bf16.gmra.mxu0 %v2481
    %v2596 = vpop.f32.mrf.mxu0
    %v2597 = vadd.f32 0.0, %v2596
    %v2598 = vpop.f32.mrf.mxu0
    %v2599 = vpop.f32.mrf.mxu0
    %v2600 = vadd.f32 0.0, %v2599
    %v2601 = vpop.f32.mrf.mxu0
    %2602 = vmatprep.mubr.bf16.mxu0 0
    %2603 = vmatmul.mubr.bf16.gmra.mxu0 %v2482
    %v2604 = vpop.f32.mrf.mxu0
    %v2605 = vadd.f32 0.0, %v2604
    %v2606 = vpop.f32.mrf.mxu0
    %v2607 = vpop.f32.mrf.mxu0
    %v2608 = vadd.f32 0.0, %v2607
    %v2609 = vpop.f32.mrf.mxu0
    %2610 = vmatprep.mubr.bf16.mxu0 0
    %2611 = vmatmul.mubr.bf16.gmra.mxu0 %v2483
    %v2612 = vpop.f32.mrf.mxu0
    %v2613 = vadd.f32 0.0, %v2612
    %v2614 = vpop.f32.mrf.mxu0
    %v2615 = vpop.f32.mrf.mxu0
    %v2616 = vadd.f32 0.0, %v2615
    %v2617 = vpop.f32.mrf.mxu0
    %2618 = vmatprep.mubr.bf16.mxu0 0
    %2619 = vmatmul.mubr.bf16.gmra.mxu0 %v2484
    %v2620 = vpop.f32.mrf.mxu0
    %v2621 = vadd.f32 0.0, %v2620
    %v2622 = vpop.f32.mrf.mxu0
    %v2623 = vpop.f32.mrf.mxu0
    %v2624 = vadd.f32 0.0, %v2623
    %v2625 = vpop.f32.mrf.mxu0
    %2626 = vmatprep.mubr.bf16.mxu0 0
    %2627 = vmatmul.mubr.bf16.gmra.mxu0 %v2485
    %v2628 = vpop.f32.mrf.mxu0
    %v2629 = vadd.f32 0.0, %v2628
    %v2630 = vpop.f32.mrf.mxu0
    %v2631 = vpop.f32.mrf.mxu0
    %v2632 = vadd.f32 0.0, %v2631
    %v2633 = vpop.f32.mrf.mxu0
    %2634 = vmatprep.mubr.bf16.mxu0 0
    %2635 = vmatmul.mubr.bf16.gmra.mxu0 %v2486
    %v2636 = vpop.f32.mrf.mxu0
    %v2637 = vadd.f32 0.0, %v2636
    %v2638 = vpop.f32.mrf.mxu0
    %v2639 = vpop.f32.mrf.mxu0
    %v2640 = vadd.f32 0.0, %v2639
    %v2641 = vpop.f32.mrf.mxu0
    %2642 = vmatprep.mubr.bf16.mxu0 0
    %2643 = vmatmul.mubr.bf16.gmra.mxu0 %v2487
    %v2644 = vpop.f32.mrf.mxu0
    %v2645 = vadd.f32 0.0, %v2644
    %v2646 = vpop.f32.mrf.mxu0
    %v2647 = vpop.f32.mrf.mxu0
    %v2648 = vadd.f32 0.0, %v2647
    %v2649 = vpop.f32.mrf.mxu0
    %2650 = vmatprep.mubr.bf16.mxu0 0
    %2651 = vmatmul.mubr.bf16.gmra.mxu0 %v2488
    %v2652 = vpop.f32.mrf.mxu0
    %v2653 = vadd.f32 0.0, %v2652
    %v2654 = vpop.f32.mrf.mxu0
    %v2655 = vpop.f32.mrf.mxu0
    %v2656 = vadd.f32 0.0, %v2655
    %v2657 = vpop.f32.mrf.mxu0
    %2658 = vmatprep.mubr.bf16.mxu0 0
    %2659 = vmatmul.mubr.bf16.gmra.mxu0 %v2489
    %v2660 = vpop.f32.mrf.mxu0
    %v2661 = vadd.f32 0.0, %v2660
    %v2662 = vpop.f32.mrf.mxu0
    %v2663 = vpop.f32.mrf.mxu0
    %v2664 = vadd.f32 0.0, %v2663
    %v2665 = vpop.f32.mrf.mxu0
    %2666 = vmatprep.mubr.bf16.mxu0 0
    %2667 = vmatmul.mubr.bf16.gmra.mxu0 %v2490
    %v2668 = vpop.f32.mrf.mxu0
    %v2669 = vadd.f32 0.0, %v2668
    %v2670 = vpop.f32.mrf.mxu0
    %v2671 = vpop.f32.mrf.mxu0
    %v2672 = vadd.f32 0.0, %v2671
    %v2673 = vpop.f32.mrf.mxu0
    %2674 = vmatprep.mubr.bf16.mxu0 0
    %2675 = vmatmul.mubr.bf16.gmra.mxu0 %v2491
    %v2676 = vpop.f32.mrf.mxu0
    %v2677 = vadd.f32 0.0, %v2676
    %v2678 = vpop.f32.mrf.mxu0
    %v2679 = vpop.f32.mrf.mxu0
    %v2680 = vadd.f32 0.0, %v2679
    %v2681 = vpop.f32.mrf.mxu0
    %2682 = vmatprep.mubr.bf16.mxu0 0
    %2683 = vmatmul.mubr.bf16.gmra.mxu0 %v2492
    %v2684 = vpop.f32.mrf.mxu0
    %v2685 = vadd.f32 0.0, %v2684
    %v2686 = vpop.f32.mrf.mxu0
    %v2687 = vpop.f32.mrf.mxu0
    %v2688 = vadd.f32 0.0, %v2687
    %v2689 = vpop.f32.mrf.mxu0
    %2690 = vmatprep.mubr.bf16.mxu0 0
    %2691 = vmatmul.mubr.bf16.gmra.mxu0 %v2493
    %v2692 = vpop.f32.mrf.mxu0
    %v2693 = vadd.f32 0.0, %v2692
    %v2694 = vpop.f32.mrf.mxu0
    %v2695 = vpop.f32.mrf.mxu0
    %v2696 = vadd.f32 0.0, %v2695
    %v2697 = vpop.f32.mrf.mxu0
    %2698 = vmatprep.mubr.bf16.mxu0 0
    %2699 = vmatmul.mubr.bf16.gmra.mxu0 %v2494
    %v2700 = vpop.f32.mrf.mxu0
    %v2701 = vadd.f32 0.0, %v2700
    %v2702 = vpop.f32.mrf.mxu0
    %v2703 = vpop.f32.mrf.mxu0
    %v2704 = vadd.f32 0.0, %v2703
    %v2705 = vpop.f32.mrf.mxu0
    %2706 = vmatprep.mubr.bf16.mxu0 0
    %2707 = vmatmul.mubr.bf16.gmra.mxu0 %v2495
    %v2708 = vpop.f32.mrf.mxu0
    %v2709 = vadd.f32 0.0, %v2708
    %v2710 = vpop.f32.mrf.mxu0
    %v2711 = vpop.f32.mrf.mxu0
    %v2712 = vadd.f32 0.0, %v2711
    %v2713 = vpop.f32.mrf.mxu0
    %2714 = vmatprep.mubr.bf16.mxu0 0
    %2715 = vmatmul.mubr.bf16.gmra.mxu0 %v2496
    %v2716 = vpop.f32.mrf.mxu0
    %v2717 = vadd.f32 0.0, %v2716
    %v2718 = vpop.f32.mrf.mxu0
    %v2719 = vpop.f32.mrf.mxu0
    %v2720 = vadd.f32 0.0, %v2719
    %v2721 = vpop.f32.mrf.mxu0
    %2722 = vdwg.mxu0
    %v2723 = vadd.f32 %v2174, %v2597
    %v2724 = vadd.f32 %v2175, %v2600
    %v2725 = vadd.f32 %v2176, %v2605
    %v2726 = vadd.f32 %v2177, %v2608
    %v2727 = vadd.f32 %v2178, %v2613
    %v2728 = vadd.f32 %v2179, %v2616
    %v2729 = vadd.f32 %v2180, %v2621
    %v2730 = vadd.f32 %v2181, %v2624
    %v2731 = vadd.f32 %v2182, %v2629
    %v2732 = vadd.f32 %v2183, %v2632
    %v2733 = vadd.f32 %v2184, %v2637
    %v2734 = vadd.f32 %v2185, %v2640
    %v2735 = vadd.f32 %v2186, %v2645
    %v2736 = vadd.f32 %v2187, %v2648
    %v2737 = vadd.f32 %v2188, %v2653
    %v2738 = vadd.f32 %v2189, %v2656
    %v2739 = vadd.f32 %v2190, %v2661
    %v2740 = vadd.f32 %v2191, %v2664
    %v2741 = vadd.f32 %v2192, %v2669
    %v2742 = vadd.f32 %v2193, %v2672
    %v2743 = vadd.f32 %v2194, %v2677
    %v2744 = vadd.f32 %v2195, %v2680
    %v2745 = vadd.f32 %v2196, %v2685
    %v2746 = vadd.f32 %v2197, %v2688
    %v2747 = vadd.f32 %v2198, %v2693
    %v2748 = vadd.f32 %v2199, %v2696
    %v2749 = vadd.f32 %v2200, %v2701
    %v2750 = vadd.f32 %v2201, %v2704
    %v2751 = vadd.f32 %v2202, %v2709
    %v2752 = vadd.f32 %v2203, %v2712
    %v2753 = vadd.f32 %v2204, %v2717
    %v2754 = vadd.f32 %v2205, %v2720
    %v2755 = vld [vmem:[#allocation8] sm:$0xff]
    %v2756 = vld [vmem:[#allocation8 + $0x8] sm:$0xff]
    %v2757 = vld [vmem:[#allocation8 + $0x10] sm:$0x1]
    %v2758 = vld [vmem:[#allocation8 + $0x11] sm:$0x1]
    %v2759 = vlaneseq
    %v2760 = vshrl.u32 %v2759, 7
    %v2761 = vsub.s32 0, %v2760
    %v2762 = vrot.slane %v2757, %v2761
    %v2763 = vadd.f32 %v2723, %v2762
    %v2764 = vadd.f32 %v2724, %v2762
    %v2765 = vadd.f32 %v2725, %v2762
    %v2766 = vadd.f32 %v2726, %v2762
    %v2767 = vadd.f32 %v2727, %v2762
    %v2768 = vadd.f32 %v2728, %v2762
    %v2769 = vadd.f32 %v2729, %v2762
    %v2770 = vadd.f32 %v2730, %v2762
    %v2771 = vadd.f32 %v2731, %v2762
    %v2772 = vadd.f32 %v2732, %v2762
    %v2773 = vadd.f32 %v2733, %v2762
    %v2774 = vadd.f32 %v2734, %v2762
    %v2775 = vadd.f32 %v2735, %v2762
    %v2776 = vadd.f32 %v2736, %v2762
    %v2777 = vadd.f32 %v2737, %v2762
    %v2778 = vadd.f32 %v2738, %v2762
    %v2779 = vadd.f32 %v2739, %v2762
    %v2780 = vadd.f32 %v2740, %v2762
    %v2781 = vadd.f32 %v2741, %v2762
    %v2782 = vadd.f32 %v2742, %v2762
    %v2783 = vadd.f32 %v2743, %v2762
    %v2784 = vadd.f32 %v2744, %v2762
    %v2785 = vadd.f32 %v2745, %v2762
    %v2786 = vadd.f32 %v2746, %v2762
    %v2787 = vadd.f32 %v2747, %v2762
    %v2788 = vadd.f32 %v2748, %v2762
    %v2789 = vadd.f32 %v2749, %v2762
    %v2790 = vadd.f32 %v2750, %v2762
    %v2791 = vadd.f32 %v2751, %v2762
    %v2792 = vadd.f32 %v2752, %v2762
    %v2793 = vadd.f32 %v2753, %v2762
    %v2794 = vadd.f32 %v2754, %v2762
    %v2795 = vmax.f32 %v2763, 0.0
    %v2796 = vmax.f32 %v2764, 0.0
    %v2797 = vmax.f32 %v2765, 0.0
    %v2798 = vmax.f32 %v2766, 0.0
    %v2799 = vmax.f32 %v2767, 0.0
    %v2800 = vmax.f32 %v2768, 0.0
    %v2801 = vmax.f32 %v2769, 0.0
    %v2802 = vmax.f32 %v2770, 0.0
    %v2803 = vmax.f32 %v2771, 0.0
    %v2804 = vmax.f32 %v2772, 0.0
    %v2805 = vmax.f32 %v2773, 0.0
    %v2806 = vmax.f32 %v2774, 0.0
    %v2807 = vmax.f32 %v2775, 0.0
    %v2808 = vmax.f32 %v2776, 0.0
    %v2809 = vmax.f32 %v2777, 0.0
    %v2810 = vmax.f32 %v2778, 0.0
    %v2811 = vmax.f32 %v2779, 0.0
    %v2812 = vmax.f32 %v2780, 0.0
    %v2813 = vmax.f32 %v2781, 0.0
    %v2814 = vmax.f32 %v2782, 0.0
    %v2815 = vmax.f32 %v2783, 0.0
    %v2816 = vmax.f32 %v2784, 0.0
    %v2817 = vmax.f32 %v2785, 0.0
    %v2818 = vmax.f32 %v2786, 0.0
    %v2819 = vmax.f32 %v2787, 0.0
    %v2820 = vmax.f32 %v2788, 0.0
    %v2821 = vmax.f32 %v2789, 0.0
    %v2822 = vmax.f32 %v2790, 0.0
    %v2823 = vmax.f32 %v2791, 0.0
    %v2824 = vmax.f32 %v2792, 0.0
    %v2825 = vmax.f32 %v2793, 0.0
    %v2826 = vmax.f32 %v2794, 0.0
    %v2827 = vmul.f32 %v2795, %v2755
    %v2828 = vmul.f32 %v2796, %v2756
    %v2829 = vmul.f32 %v2797, %v2755
    %v2830 = vmul.f32 %v2798, %v2756
    %v2831 = vmul.f32 %v2799, %v2755
    %v2832 = vmul.f32 %v2800, %v2756
    %v2833 = vmul.f32 %v2801, %v2755
    %v2834 = vmul.f32 %v2802, %v2756
    %v2835 = vmul.f32 %v2803, %v2755
    %v2836 = vmul.f32 %v2804, %v2756
    %v2837 = vmul.f32 %v2805, %v2755
    %v2838 = vmul.f32 %v2806, %v2756
    %v2839 = vmul.f32 %v2807, %v2755
    %v2840 = vmul.f32 %v2808, %v2756
    %v2841 = vmul.f32 %v2809, %v2755
    %v2842 = vmul.f32 %v2810, %v2756
    %v2843 = vmul.f32 %v2811, %v2755
    %v2844 = vmul.f32 %v2812, %v2756
    %v2845 = vmul.f32 %v2813, %v2755
    %v2846 = vmul.f32 %v2814, %v2756
    %v2847 = vmul.f32 %v2815, %v2755
    %v2848 = vmul.f32 %v2816, %v2756
    %v2849 = vmul.f32 %v2817, %v2755
    %v2850 = vmul.f32 %v2818, %v2756
    %v2851 = vmul.f32 %v2819, %v2755
    %v2852 = vmul.f32 %v2820, %v2756
    %v2853 = vmul.f32 %v2821, %v2755
    %v2854 = vmul.f32 %v2822, %v2756
    %v2855 = vmul.f32 %v2823, %v2755
    %v2856 = vmul.f32 %v2824, %v2756
    %v2857 = vmul.f32 %v2825, %v2755
    %v2858 = vmul.f32 %v2826, %v2756
    %v2859 = vmax.f32 %v2827, %v2828
    %v2860 = vrot.slane %v2859, 4
    %v2861 = vmax.f32 %v2859, %v2860
    %v2862 = vrot.slane %v2861, 2
    %v2863 = vmax.f32 %v2861, %v2862
    %v2864 = vrot.slane %v2863, 1
    %v2865 = vmax.f32 %v2863, %v2864
    %v2866 = vmax.f32 %v2829, %v2830
    %v2867 = vrot.slane %v2866, 4
    %v2868 = vmax.f32 %v2866, %v2867
    %v2869 = vrot.slane %v2868, 2
    %v2870 = vmax.f32 %v2868, %v2869
    %v2871 = vrot.slane %v2870, 1
    %v2872 = vmax.f32 %v2870, %v2871
    %v2873 = vmax.f32 %v2831, %v2832
    %v2874 = vrot.slane %v2873, 4
    %v2875 = vmax.f32 %v2873, %v2874
    %v2876 = vrot.slane %v2875, 2
    %v2877 = vmax.f32 %v2875, %v2876
    %v2878 = vrot.slane %v2877, 1
    %v2879 = vmax.f32 %v2877, %v2878
    %v2880 = vmax.f32 %v2833, %v2834
    %v2881 = vrot.slane %v2880, 4
    %v2882 = vmax.f32 %v2880, %v2881
    %v2883 = vrot.slane %v2882, 2
    %v2884 = vmax.f32 %v2882, %v2883
    %v2885 = vrot.slane %v2884, 1
    %v2886 = vmax.f32 %v2884, %v2885
    %v2887 = vmax.f32 %v2835, %v2836
    %v2888 = vrot.slane %v2887, 4
    %v2889 = vmax.f32 %v2887, %v2888
    %v2890 = vrot.slane %v2889, 2
    %v2891 = vmax.f32 %v2889, %v2890
    %v2892 = vrot.slane %v2891, 1
    %v2893 = vmax.f32 %v2891, %v2892
    %v2894 = vmax.f32 %v2837, %v2838
    %v2895 = vrot.slane %v2894, 4
    %v2896 = vmax.f32 %v2894, %v2895
    %v2897 = vrot.slane %v2896, 2
    %v2898 = vmax.f32 %v2896, %v2897
    %v2899 = vrot.slane %v2898, 1
    %v2900 = vmax.f32 %v2898, %v2899
    %v2901 = vmax.f32 %v2839, %v2840
    %v2902 = vrot.slane %v2901, 4
    %v2903 = vmax.f32 %v2901, %v2902
    %v2904 = vrot.slane %v2903, 2
    %v2905 = vmax.f32 %v2903, %v2904
    %v2906 = vrot.slane %v2905, 1
    %v2907 = vmax.f32 %v2905, %v2906
    %v2908 = vmax.f32 %v2841, %v2842
    %v2909 = vrot.slane %v2908, 4
    %v2910 = vmax.f32 %v2908, %v2909
    %v2911 = vrot.slane %v2910, 2
    %v2912 = vmax.f32 %v2910, %v2911
    %v2913 = vrot.slane %v2912, 1
    %v2914 = vmax.f32 %v2912, %v2913
    %v2915 = vmax.f32 %v2843, %v2844
    %v2916 = vrot.slane %v2915, 4
    %v2917 = vmax.f32 %v2915, %v2916
    %v2918 = vrot.slane %v2917, 2
    %v2919 = vmax.f32 %v2917, %v2918
    %v2920 = vrot.slane %v2919, 1
    %v2921 = vmax.f32 %v2919, %v2920
    %v2922 = vmax.f32 %v2845, %v2846
    %v2923 = vrot.slane %v2922, 4
    %v2924 = vmax.f32 %v2922, %v2923
    %v2925 = vrot.slane %v2924, 2
    %v2926 = vmax.f32 %v2924, %v2925
    %v2927 = vrot.slane %v2926, 1
    %v2928 = vmax.f32 %v2926, %v2927
    %v2929 = vmax.f32 %v2847, %v2848
    %v2930 = vrot.slane %v2929, 4
    %v2931 = vmax.f32 %v2929, %v2930
    %v2932 = vrot.slane %v2931, 2
    %v2933 = vmax.f32 %v2931, %v2932
    %v2934 = vrot.slane %v2933, 1
    %v2935 = vmax.f32 %v2933, %v2934
    %v2936 = vmax.f32 %v2849, %v2850
    %v2937 = vrot.slane %v2936, 4
    %v2938 = vmax.f32 %v2936, %v2937
    %v2939 = vrot.slane %v2938, 2
    %v2940 = vmax.f32 %v2938, %v2939
    %v2941 = vrot.slane %v2940, 1
    %v2942 = vmax.f32 %v2940, %v2941
    %v2943 = vmax.f32 %v2851, %v2852
    %v2944 = vrot.slane %v2943, 4
    %v2945 = vmax.f32 %v2943, %v2944
    %v2946 = vrot.slane %v2945, 2
    %v2947 = vmax.f32 %v2945, %v2946
    %v2948 = vrot.slane %v2947, 1
    %v2949 = vmax.f32 %v2947, %v2948
    %v2950 = vmax.f32 %v2853, %v2854
    %v2951 = vrot.slane %v2950, 4
    %v2952 = vmax.f32 %v2950, %v2951
    %v2953 = vrot.slane %v2952, 2
    %v2954 = vmax.f32 %v2952, %v2953
    %v2955 = vrot.slane %v2954, 1
    %v2956 = vmax.f32 %v2954, %v2955
    %v2957 = vmax.f32 %v2855, %v2856
    %v2958 = vrot.slane %v2957, 4
    %v2959 = vmax.f32 %v2957, %v2958
    %v2960 = vrot.slane %v2959, 2
    %v2961 = vmax.f32 %v2959, %v2960
    %v2962 = vrot.slane %v2961, 1
    %v2963 = vmax.f32 %v2961, %v2962
    %v2964 = vmax.f32 %v2857, %v2858
    %v2965 = vrot.slane %v2964, 4
    %v2966 = vmax.f32 %v2964, %v2965
    %v2967 = vrot.slane %v2966, 2
    %v2968 = vmax.f32 %v2966, %v2967
    %v2969 = vrot.slane %v2968, 1
    %v2970 = vmax.f32 %v2968, %v2969
    %v2971 = vld [vmem:[#allocation7] sm:$0xff]
    %v2972 = vld [vmem:[#allocation7 + $0x8] sm:$0xff]
    %v2973 = vld [vmem:[#allocation7 + $0x10] sm:$0xff]
    %v2974 = vld [vmem:[#allocation7 + $0x18] sm:$0xff]
    %v2975 = vld [vmem:[#allocation7 + $0x20] sm:$0xff]
    %v2976 = vld [vmem:[#allocation7 + $0x28] sm:$0xff]
    %v2977 = vld [vmem:[#allocation7 + $0x30] sm:$0xff]
    %v2978 = vld [vmem:[#allocation7 + $0x38] sm:$0xff]
    %v2979 = vld [vmem:[#allocation7 + $0x40] sm:$0xff]
    %v2980 = vld [vmem:[#allocation7 + $0x48] sm:$0xff]
    %v2981 = vld [vmem:[#allocation7 + $0x50] sm:$0xff]
    %v2982 = vld [vmem:[#allocation7 + $0x58] sm:$0xff]
    %v2983 = vld [vmem:[#allocation7 + $0x60] sm:$0xff]
    %v2984 = vld [vmem:[#allocation7 + $0x68] sm:$0xff]
    %v2985 = vld [vmem:[#allocation7 + $0x70] sm:$0xff]
    %v2986 = vld [vmem:[#allocation7 + $0x78] sm:$0xff]
    %v2987 = vlaneseq
    %v2988 = vshrl.u32 %v2987, 7
    %v2989 = vsub.s32 0, %v2988
    %v2990 = vrot.slane %v2758, %v2989
    %vm3007 = vcmask 1041409
    %v3008 = vsel %vm3007, %v2872, %v2865
    %vm3009 = vcmask 1042434
    %v3010 = vsel %vm3009, %v2879, %v3008
    %vm3011 = vcmask 1043459
    %v3012 = vsel %vm3011, %v2886, %v3010
    %vm3013 = vcmask 1044484
    %v3014 = vsel %vm3013, %v2893, %v3012
    %vm3015 = vcmask 1045509
    %v3016 = vsel %vm3015, %v2900, %v3014
    %vm3017 = vcmask 1046534
    %v3018 = vsel %vm3017, %v2907, %v3016
    %vm3019 = vcmask 1047559
    %v3020 = vsel %vm3019, %v2914, %v3018
    %v3021 = vsel %vm3007, %v2928, %v2921
    %v3022 = vsel %vm3009, %v2935, %v3021
    %v3023 = vsel %vm3011, %v2942, %v3022
    %v3024 = vsel %vm3013, %v2949, %v3023
    %v3025 = vsel %vm3015, %v2956, %v3024
    %v3026 = vsel %vm3017, %v2963, %v3025
    %v3027 = vsel %vm3019, %v2970, %v3026
    %3030 = vmatprep.subr.mxu0 0.0
    %3031 = vmatpush1.msra.mxu0 %v2986
    %3032 = vmatprep.subr.mxu0 0.0
    %3033 = vmatpush1.msra.mxu0 %v2985
    %3034 = vmatprep.subr.mxu0 0.0
    %3035 = vmatpush1.msra.mxu0 %v2984
    %3036 = vmatprep.subr.mxu0 0.0
    %3037 = vmatpush1.msra.mxu0 %v2983
    %3038 = vmatprep.subr.mxu0 0.0
    %3039 = vmatpush1.msra.mxu0 %v2982
    %3040 = vmatprep.subr.mxu0 0.0
    %3041 = vmatpush1.msra.mxu0 %v2981
    %3042 = vmatprep.subr.mxu0 0.0
    %3043 = vmatpush1.msra.mxu0 %v2980
    %3044 = vmatprep.subr.mxu0 0.0
    %3045 = vmatpush1.msra.mxu0 %v2979
    %3046 = vmatprep.subr.mxu0 0.0
    %3047 = vmatpush1.msra.mxu0 %v2978
    %3048 = vmatprep.subr.mxu0 0.0
    %3049 = vmatpush1.msra.mxu0 %v2977
    %3050 = vmatprep.subr.mxu0 0.0
    %3051 = vmatpush1.msra.mxu0 %v2976
    %3052 = vmatprep.subr.mxu0 0.0
    %3053 = vmatpush1.msra.mxu0 %v2975
    %3054 = vmatprep.subr.mxu0 0.0
    %3055 = vmatpush1.msra.mxu0 %v2974
    %3056 = vmatprep.subr.mxu0 0.0
    %3057 = vmatpush1.msra.mxu0 %v2973
    %3058 = vmatprep.subr.mxu0 0.0
    %3059 = vmatpush1.msra.mxu0 %v2972
    %3060 = vmatprep.subr.mxu0 0.0
    %3061 = vmatpush1.msra.mxu0 %v2971
    %3062 = vmatprep.subr.mxu0 0.0
    %3063 = vmatpush2.msra.mxu0 0.0
    %3064 = vmatprep.subr.mxu0 0.0
    %3065 = vmatpush2.msra.mxu0 0.0
    %3066 = vmatprep.subr.mxu0 0.0
    %3067 = vmatpush2.msra.mxu0 0.0
    %3068 = vmatprep.subr.mxu0 0.0
    %3069 = vmatpush2.msra.mxu0 0.0
    %3070 = vmatprep.subr.mxu0 0.0
    %3071 = vmatpush2.msra.mxu0 0.0
    %3072 = vmatprep.subr.mxu0 0.0
    %3073 = vmatpush2.msra.mxu0 0.0
    %3074 = vmatprep.subr.mxu0 0.0
    %3075 = vmatpush2.msra.mxu0 0.0
    %3076 = vmatprep.subr.mxu0 0.0
    %3077 = vmatpush2.msra.mxu0 0.0
    %3078 = vmatprep.subr.mxu0 0.0
    %3079 = vmatpush2.msra.mxu0 0.0
    %3080 = vmatprep.subr.mxu0 0.0
    %3081 = vmatpush2.msra.mxu0 0.0
    %3082 = vmatprep.subr.mxu0 0.0
    %3083 = vmatpush2.msra.mxu0 0.0
    %3084 = vmatprep.subr.mxu0 0.0
    %3085 = vmatpush2.msra.mxu0 0.0
    %3086 = vmatprep.subr.mxu0 0.0
    %3087 = vmatpush2.msra.mxu0 0.0
    %3088 = vmatprep.subr.mxu0 0.0
    %3089 = vmatpush2.msra.mxu0 0.0
    %3090 = vmatprep.subr.mxu0 0.0
    %3091 = vmatpush2.msra.mxu0 0.0
    %3092 = vmatprep.subr.mxu0 0.0
    %3093 = vmatpush2.msra.mxu0 0.0
    %3094 = vmatprep.mubr.f32.mxu0 0.0
    %3095 = vmatmul.mubr.f32.gmra.mxu0 %v3020
    %v3096 = vpop.f32.mrf.mxu0
    %v3097 = vadd.f32 %v2990, %v3096
    %v3098 = vpop.f32.mrf.mxu0
    %3099 = vmatprep.mubr.f32.mxu0 0.0
    %3100 = vmatmul.mubr.f32.gmra.mxu0 %v3027
    %v3101 = vpop.f32.mrf.mxu0
    %v3102 = vadd.f32 %v2990, %v3101
    %v3103 = vpop.f32.mrf.mxu0
    %3104 = vdwg.mxu0
    %3105 = vst [vmem:[#allocation10] sm:$0xff] %v3097
    %3106 = vst [vmem:[#allocation10 + $0x8] sm:$0xff] %v3102
    // Predicated region
    $region34: #{tpu_custom_call.1} parent=1 // pred_check
      _
    $region35: #{tpu_custom_call.1} parent=1 // pred_check_branch
      %3108 = sbr.rel (0) target = $region37
    $region36: #{tpu_custom_call.1} parent=1 // pred_region
      %s3110 = ssub.s32 256, 256
      %3111 = vsyncadd [#allocation4], %s3110
      %s3112 = sshll.u32 [#allocation10], 4
      %s3113 = int_to_ptr.vmem [resolvable:$true] %s3112
      %3118 = dma.vmem_to_hbm [thread:$0]  %s3113, 256, %s4, [#allocation4], 128, 128, 8
    $region37: #{tpu_custom_call.1} parent=1 // pred_fallthru
      _
    // Predicated region
    $region38: #{tpu_custom_call.1} parent=1 // pred_check
      _
    $region39: #{tpu_custom_call.1} parent=1 // pred_check_branch
      %3120 = sbr.rel (0) target = $region41
    $region40: #{tpu_custom_call.1} parent=1 // pred_region
      %3121 = dma.done [#allocation4], 256
    $region41: #{tpu_custom_call.1} parent=1 // pred_fallthru
      _
    %3122 = vsyncpa [#allocation3], 1
    %3123 = vsyncpa [#allocation6], 1
    %3124 = vsyncpa [#allocation9], 1
    %3125 = vsyncpa [#allocation4], 1

// kernel: tpu_custom_call.1
$region0: #{tpu_custom_call.1}
  #allocation0 [shape = 'u32[]', space=smem, size = 0x4, offset = 0x4, fixed_abs, tag = 'smem constant byte address 0x4 - core index']
  #allocation1 [shape = 'u32[144,128]{1,0:T(1,128)}', space=vmem, size = 0x12000, scoped, tag = 'internal scratch']
  %s0 = inlined_call_operand.hbm [shape: s32[5,16,16], index: 0, kind: input, shape index: {}]
  %s1 = inlined_call_operand.hbm [shape: bf16[5,128,128], index: 1, kind: input, shape index: {}]
  %s2 = inlined_call_operand.hbm [shape: f32[128,128], index: 2, kind: input, shape index: {}]
  %s3 = inlined_call_operand.hbm [shape: f32[18,128], index: 3, kind: input, shape index: {}]
  %s4 = inlined_call_operand.hbm [shape: f32[16,128], index: 4, kind: output, shape index: {}]
  %s5 = sld [smem:[#allocation0]]
  $region42: #{tpu_custom_call.1} parent=0
    _
  %s7 = ssub.s32 1, %s5
  %s8 = scalar_select 0, %s7, %s5
  $region1: #{tpu_custom_call.1} parent=0
    #allocation2 [shape = 'u8[40960]{0}', space=vmem, size = 0xa000, scoped, tag = 'input window, operand 0, single buffered']
    #allocation3 [shape = 's32[1]{0}', space=sflag, size = 0x4, scoped, tag = 'scoped memory for tpu_custom_call.1']
    #allocation4 [shape = 's32[1]{0}', space=sflag, size = 0x4, scoped, tag = 'scoped memory for tpu_custom_call.1']
    #allocation5 [shape = 'u8[163840]{0}', space=vmem, size = 0x28000, scoped, tag = 'input window, operand 1, single buffered']
    #allocation6 [shape = 's32[1]{0}', space=sflag, size = 0x4, scoped, tag = 'scoped memory for tpu_custom_call.1']
    #allocation7 [shape = 'u8[65536]{0}', space=vmem, size = 0x10000, scoped, tag = 'input window, operand 2, single buffered']
    #allocation8 [shape = 'u8[12288]{0}', space=vmem, size = 0x3000, scoped, tag = 'input window, operand 3, single buffered']
    #allocation9 [shape = 's32[1]{0}', space=sflag, size = 0x4, scoped, tag = 'scoped memory for tpu_custom_call.1']
    #allocation10 [shape = 'u8[8192]{0}', space=vmem, size = 0x2000, scoped, tag = 'output window, operand 0, single buffered']
    %9 = vsyncpa [#allocation3], 0
    %10 = vsyncpa [#allocation6], 0
    %11 = vsyncpa [#allocation9], 0
    %12 = vsyncpa [#allocation4], 0
    // Predicated region
    $region2: #{tpu_custom_call.1} parent=1 // pred_check
      _
    $region3: #{tpu_custom_call.1} parent=1 // pred_check_branch
      %14 = sbr.rel (0) target = $region5
    $region4: #{tpu_custom_call.1} parent=1 // pred_region
      %s16 = ssub.s32 1280, 1280
      %17 = vsyncadd [#allocation3], %s16
      %s18 = sshll.u32 [#allocation2], 4
      %s19 = int_to_ptr.vmem [resolvable:$true] %s18
      %24 = dma.hbm_to_vmem [thread:$0]  %s0, 1280, %s19, [#allocation3], 128, 128, 8
    $region5: #{tpu_custom_call.1} parent=1 // pred_fallthru
      _
    // Predicated region
    $region6: #{tpu_custom_call.1} parent=1 // pred_check
      _
    $region7: #{tpu_custom_call.1} parent=1 // pred_check_branch
      %26 = sbr.rel (0) target = $region9
    $region8: #{tpu_custom_call.1} parent=1 // pred_region
      %s28 = ssub.s32 5120, 5120
      %29 = vsyncadd [#allocation6], %s28
      %s30 = sshll.u32 [#allocation5], 4
      %s31 = int_to_ptr.vmem [resolvable:$true] %s30
      %36 = dma.hbm_to_vmem [thread:$0]  %s1, 5120, %s31, [#allocation6], 64, 64, 4
    $region9: #{tpu_custom_call.1} parent=1 // pred_fallthru
      _
    // Predicated region
    $region10: #{tpu_custom_call.1} parent=1 // pred_check
      _
    $region11: #{tpu_custom_call.1} parent=1 // pred_check_branch
      %38 = sbr.rel (0) target = $region13
    $region12: #{tpu_custom_call.1} parent=1 // pred_region
      %s40 = ssub.s32 2048, 2048
      %41 = vsyncadd [#allocation6], %s40
      %s42 = sshll.u32 [#allocation7], 4
      %s43 = int_to_ptr.vmem [resolvable:$true] %s42
      %48 = dma.hbm_to_vmem [thread:$0]  %s2, 2048, %s43, [#allocation6], 128, 128, 8
    $region13: #{tpu_custom_call.1} parent=1 // pred_fallthru
      _
    // Predicated region
    $region14: #{tpu_custom_call.1} parent=1 // pred_check
      _
    $region15: #{tpu_custom_call.1} parent=1 // pred_check_branch
      %50 = sbr.rel (0) target = $region17
    $region16: #{tpu_custom_call.1} parent=1 // pred_region
      %s52 = ssub.s32 384, 384
      %53 = vsyncadd [#allocation9], %s52
      %s54 = sshll.u32 [#allocation8], 4
      %s55 = int_to_ptr.vmem [resolvable:$true] %s54
      %60 = dma.hbm_to_vmem [thread:$0]  %s3, 384, %s55, [#allocation9], 128, 128, 8
    $region17: #{tpu_custom_call.1} parent=1 // pred_fallthru
      _
    // Predicated region
    $region18: #{tpu_custom_call.1} parent=1 // pred_check
      _
    $region19: #{tpu_custom_call.1} parent=1 // pred_check_branch
      %62 = sbr.rel (0) target = $region21
    $region20: #{tpu_custom_call.1} parent=1 // pred_region
      %63 = dma.done [#allocation3], 1280
    $region21: #{tpu_custom_call.1} parent=1 // pred_fallthru
      _
    // Predicated region
    $region22: #{tpu_custom_call.1} parent=1 // pred_check
      _
    $region23: #{tpu_custom_call.1} parent=1 // pred_check_branch
      %65 = sbr.rel (0) target = $region25
    $region24: #{tpu_custom_call.1} parent=1 // pred_region
      %66 = dma.done [#allocation6], 5120
    $region25: #{tpu_custom_call.1} parent=1 // pred_fallthru
      _
    // Predicated region
    $region26: #{tpu_custom_call.1} parent=1 // pred_check
      _
    $region27: #{tpu_custom_call.1} parent=1 // pred_check_branch
      %68 = sbr.rel (0) target = $region29
    $region28: #{tpu_custom_call.1} parent=1 // pred_region
      %69 = dma.done [#allocation6], 2048
    $region29: #{tpu_custom_call.1} parent=1 // pred_fallthru
      _
    // Predicated region
    $region30: #{tpu_custom_call.1} parent=1 // pred_check
      _
    $region31: #{tpu_custom_call.1} parent=1 // pred_check_branch
      %71 = sbr.rel (0) target = $region33
    $region32: #{tpu_custom_call.1} parent=1 // pred_region
      %72 = dma.done [#allocation9], 384
    $region33: #{tpu_custom_call.1} parent=1 // pred_fallthru
      _
    %v74 = vlaneseq
    %v75 = vand.u32 %v74, 127
    %v76 = vld [vmem:[#allocation2] sm:$0xff]
    %v77 = vld [vmem:[#allocation2 + $0x8] sm:$0xff]
    %v78 = vlaneseq
    %v79 = vshrl.u32 %v78, 7
    %v80 = vsub.s32 0, %v79
    %v81 = vrot.slane %v76, %v80
    %83 = vbcast.lane.b32.xlu0 %v81, 256
    %v84 = vpop.permute.xlu0 %83
    %s86 = sor.u32 256, 8
    %87 = vbcast.lane.b32.xlu0 %v81, %s86
    %v88 = vpop.permute.xlu0 %87
    %v89 = vlaneseq
    %v90 = vshrl.u32 %v89, 7
    %v91 = vsub.s32 1, %v90
    %v92 = vrot.slane %v76, %v91
    %94 = vbcast.lane.b32.xlu0 %v92, 256
    %v95 = vpop.permute.xlu0 %94
    %s97 = sor.u32 256, 8
    %98 = vbcast.lane.b32.xlu0 %v92, %s97
    %v99 = vpop.permute.xlu0 %98
    %v100 = vlaneseq
    %v101 = vshrl.u32 %v100, 7
    %v102 = vsub.s32 2, %v101
    %v103 = vrot.slane %v76, %v102
    %105 = vbcast.lane.b32.xlu0 %v103, 256
    %v106 = vpop.permute.xlu0 %105
    %s108 = sor.u32 256, 8
    %109 = vbcast.lane.b32.xlu0 %v103, %s108
    %v110 = vpop.permute.xlu0 %109
    %v111 = vlaneseq
    %v112 = vshrl.u32 %v111, 7
    %v113 = vsub.s32 3, %v112
    %v114 = vrot.slane %v76, %v113
    %116 = vbcast.lane.b32.xlu0 %v114, 256
    %v117 = vpop.permute.xlu0 %116
    %s119 = sor.u32 256, 8
    %120 = vbcast.lane.b32.xlu0 %v114, %s119
    %v121 = vpop.permute.xlu0 %120
    %v122 = vlaneseq
    %v123 = vshrl.u32 %v122, 7
    %v124 = vsub.s32 4, %v123
    %v125 = vrot.slane %v76, %v124
    %127 = vbcast.lane.b32.xlu0 %v125, 256
    %v128 = vpop.permute.xlu0 %127
    %s130 = sor.u32 256, 8
    %131 = vbcast.lane.b32.xlu0 %v125, %s130
    %v132 = vpop.permute.xlu0 %131
    %v133 = vlaneseq
    %v134 = vshrl.u32 %v133, 7
    %v135 = vsub.s32 5, %v134
    %v136 = vrot.slane %v76, %v135
    %138 = vbcast.lane.b32.xlu0 %v136, 256
    %v139 = vpop.permute.xlu0 %138
    %s141 = sor.u32 256, 8
    %142 = vbcast.lane.b32.xlu0 %v136, %s141
    %v143 = vpop.permute.xlu0 %142
    %v144 = vlaneseq
    %v145 = vshrl.u32 %v144, 7
    %v146 = vsub.s32 6, %v145
    %v147 = vrot.slane %v76, %v146
    %149 = vbcast.lane.b32.xlu0 %v147, 256
    %v150 = vpop.permute.xlu0 %149
    %s152 = sor.u32 256, 8
    %153 = vbcast.lane.b32.xlu0 %v147, %s152
    %v154 = vpop.permute.xlu0 %153
    %v155 = vlaneseq
    %v156 = vshrl.u32 %v155, 7
    %v157 = vsub.s32 7, %v156
    %v158 = vrot.slane %v76, %v157
    %160 = vbcast.lane.b32.xlu0 %v158, 256
    %v161 = vpop.permute.xlu0 %160
    %s163 = sor.u32 256, 8
    %164 = vbcast.lane.b32.xlu0 %v158, %s163
    %v165 = vpop.permute.xlu0 %164
    %v166 = vlaneseq
    %v167 = vshrl.u32 %v166, 7
    %v168 = vsub.s32 0, %v167
    %v169 = vrot.slane %v77, %v168
    %171 = vbcast.lane.b32.xlu0 %v169, 256
    %v172 = vpop.permute.xlu0 %171
    %s174 = sor.u32 256, 8
    %175 = vbcast.lane.b32.xlu0 %v169, %s174
    %v176 = vpop.permute.xlu0 %175
    %v177 = vlaneseq
    %v178 = vshrl.u32 %v177, 7
    %v179 = vsub.s32 1, %v178
    %v180 = vrot.slane %v77, %v179
    %182 = vbcast.lane.b32.xlu0 %v180, 256
    %v183 = vpop.permute.xlu0 %182
    %s185 = sor.u32 256, 8
    %186 = vbcast.lane.b32.xlu0 %v180, %s185
    %v187 = vpop.permute.xlu0 %186
    %v188 = vlaneseq
    %v189 = vshrl.u32 %v188, 7
    %v190 = vsub.s32 2, %v189
    %v191 = vrot.slane %v77, %v190
    %193 = vbcast.lane.b32.xlu0 %v191, 256
    %v194 = vpop.permute.xlu0 %193
    %s196 = sor.u32 256, 8
    %197 = vbcast.lane.b32.xlu0 %v191, %s196
    %v198 = vpop.permute.xlu0 %197
    %v199 = vlaneseq
    %v200 = vshrl.u32 %v199, 7
    %v201 = vsub.s32 3, %v200
    %v202 = vrot.slane %v77, %v201
    %204 = vbcast.lane.b32.xlu0 %v202, 256
    %v205 = vpop.permute.xlu0 %204
    %s207 = sor.u32 256, 8
    %208 = vbcast.lane.b32.xlu0 %v202, %s207
    %v209 = vpop.permute.xlu0 %208
    %v210 = vlaneseq
    %v211 = vshrl.u32 %v210, 7
    %v212 = vsub.s32 4, %v211
    %v213 = vrot.slane %v77, %v212
    %215 = vbcast.lane.b32.xlu0 %v213, 256
    %v216 = vpop.permute.xlu0 %215
    %s218 = sor.u32 256, 8
    %219 = vbcast.lane.b32.xlu0 %v213, %s218
    %v220 = vpop.permute.xlu0 %219
    %v221 = vlaneseq
    %v222 = vshrl.u32 %v221, 7
    %v223 = vsub.s32 5, %v222
    %v224 = vrot.slane %v77, %v223
    %226 = vbcast.lane.b32.xlu0 %v224, 256
    %v227 = vpop.permute.xlu0 %226
    %s229 = sor.u32 256, 8
    %230 = vbcast.lane.b32.xlu0 %v224, %s229
    %v231 = vpop.permute.xlu0 %230
    %v232 = vlaneseq
    %v233 = vshrl.u32 %v232, 7
    %v234 = vsub.s32 6, %v233
    %v235 = vrot.slane %v77, %v234
    %237 = vbcast.lane.b32.xlu0 %v235, 256
    %v238 = vpop.permute.xlu0 %237
    %s240 = sor.u32 256, 8
    %241 = vbcast.lane.b32.xlu0 %v235, %s240
    %v242 = vpop.permute.xlu0 %241
    %v243 = vlaneseq
    %v244 = vshrl.u32 %v243, 7
    %v245 = vsub.s32 7, %v244
    %v246 = vrot.slane %v77, %v245
    %248 = vbcast.lane.b32.xlu0 %v246, 256
    %v249 = vpop.permute.xlu0 %248
    %s251 = sor.u32 256, 8
    %252 = vbcast.lane.b32.xlu0 %v246, %s251
    %v253 = vpop.permute.xlu0 %252
    %vm254 = vcmp.eq.s32.totalorder %v84, %v75
    %vm255 = vcmp.eq.s32.totalorder %v88, %v75
    %vm256 = vcmp.eq.s32.totalorder %v95, %v75
    %vm257 = vcmp.eq.s32.totalorder %v99, %v75
    %vm258 = vcmp.eq.s32.totalorder %v106, %v75
    %vm259 = vcmp.eq.s32.totalorder %v110, %v75
    %vm260 = vcmp.eq.s32.totalorder %v117, %v75
    %vm261 = vcmp.eq.s32.totalorder %v121, %v75
    %vm262 = vcmp.eq.s32.totalorder %v128, %v75
    %vm263 = vcmp.eq.s32.totalorder %v132, %v75
    %vm264 = vcmp.eq.s32.totalorder %v139, %v75
    %vm265 = vcmp.eq.s32.totalorder %v143, %v75
    %vm266 = vcmp.eq.s32.totalorder %v150, %v75
    %vm267 = vcmp.eq.s32.totalorder %v154, %v75
    %vm268 = vcmp.eq.s32.totalorder %v161, %v75
    %vm269 = vcmp.eq.s32.totalorder %v165, %v75
    %vm270 = vcmp.eq.s32.totalorder %v172, %v75
    %vm271 = vcmp.eq.s32.totalorder %v176, %v75
    %vm272 = vcmp.eq.s32.totalorder %v183, %v75
    %vm273 = vcmp.eq.s32.totalorder %v187, %v75
    %vm274 = vcmp.eq.s32.totalorder %v194, %v75
    %vm275 = vcmp.eq.s32.totalorder %v198, %v75
    %vm276 = vcmp.eq.s32.totalorder %v205, %v75
    %vm277 = vcmp.eq.s32.totalorder %v209, %v75
    %vm278 = vcmp.eq.s32.totalorder %v216, %v75
    %vm279 = vcmp.eq.s32.totalorder %v220, %v75
    %vm280 = vcmp.eq.s32.totalorder %v227, %v75
    %vm281 = vcmp.eq.s32.totalorder %v231, %v75
    %vm282 = vcmp.eq.s32.totalorder %v238, %v75
    %vm283 = vcmp.eq.s32.totalorder %v242, %v75
    %vm284 = vcmp.eq.s32.totalorder %v249, %v75
    %vm285 = vcmp.eq.s32.totalorder %v253, %v75
    %v286 = vsel %vm254, 1, 0
    %v287 = vsel %vm255, 1, 0
    %v288 = vsel %vm256, 1, 0
    %v289 = vsel %vm257, 1, 0
    %v290 = vsel %vm258, 1, 0
    %v291 = vsel %vm259, 1, 0
    %v292 = vsel %vm260, 1, 0
    %v293 = vsel %vm261, 1, 0
    %v294 = vsel %vm262, 1, 0
    %v295 = vsel %vm263, 1, 0
    %v296 = vsel %vm264, 1, 0
    %v297 = vsel %vm265, 1, 0
    %v298 = vsel %vm266, 1, 0
    %v299 = vsel %vm267, 1, 0
    %v300 = vsel %vm268, 1, 0
    %v301 = vsel %vm269, 1, 0
    %v302 = vsel %vm270, 1, 0
    %v303 = vsel %vm271, 1, 0
    %v304 = vsel %vm272, 1, 0
    %v305 = vsel %vm273, 1, 0
    %v306 = vsel %vm274, 1, 0
    %v307 = vsel %vm275, 1, 0
    %v308 = vsel %vm276, 1, 0
    %v309 = vsel %vm277, 1, 0
    %v310 = vsel %vm278, 1, 0
    %v311 = vsel %vm279, 1, 0
    %v312 = vsel %vm280, 1, 0
    %v313 = vsel %vm281, 1, 0
    %v314 = vsel %vm282, 1, 0
    %v315 = vsel %vm283, 1, 0
    %v316 = vsel %vm284, 1, 0
    %v317 = vsel %vm285, 1, 0
    %v318 = vcvt.s32.f32 %v286
    %v319 = vcvt.s32.f32 %v287
    %v320 = vcvt.s32.f32 %v288
    %v321 = vcvt.s32.f32 %v289
    %v322 = vcvt.s32.f32 %v290
    %v323 = vcvt.s32.f32 %v291
    %v324 = vcvt.s32.f32 %v292
    %v325 = vcvt.s32.f32 %v293
    %v326 = vcvt.s32.f32 %v294
    %v327 = vcvt.s32.f32 %v295
    %v328 = vcvt.s32.f32 %v296
    %v329 = vcvt.s32.f32 %v297
    %v330 = vcvt.s32.f32 %v298
    %v331 = vcvt.s32.f32 %v299
    %v332 = vcvt.s32.f32 %v300
    %v333 = vcvt.s32.f32 %v301
    %v334 = vcvt.s32.f32 %v302
    %v335 = vcvt.s32.f32 %v303
    %v336 = vcvt.s32.f32 %v304
    %v337 = vcvt.s32.f32 %v305
    %v338 = vcvt.s32.f32 %v306
    %v339 = vcvt.s32.f32 %v307
    %v340 = vcvt.s32.f32 %v308
    %v341 = vcvt.s32.f32 %v309
    %v342 = vcvt.s32.f32 %v310
    %v343 = vcvt.s32.f32 %v311
    %v344 = vcvt.s32.f32 %v312
    %v345 = vcvt.s32.f32 %v313
    %v346 = vcvt.s32.f32 %v314
    %v347 = vcvt.s32.f32 %v315
    %v348 = vcvt.s32.f32 %v316
    %v349 = vcvt.s32.f32 %v317
    %v350 = vpack.c.bf16 %v319, %v318
    %v351 = vpack.c.bf16 %v321, %v320
    %v352 = vpack.c.bf16 %v323, %v322
    %v353 = vpack.c.bf16 %v325, %v324
    %v354 = vpack.c.bf16 %v327, %v326
    %v355 = vpack.c.bf16 %v329, %v328
    %v356 = vpack.c.bf16 %v331, %v330
    %v357 = vpack.c.bf16 %v333, %v332
    %v358 = vpack.c.bf16 %v335, %v334
    %v359 = vpack.c.bf16 %v337, %v336
    %v360 = vpack.c.bf16 %v339, %v338
    %v361 = vpack.c.bf16 %v341, %v340
    %v362 = vpack.c.bf16 %v343, %v342
    %v363 = vpack.c.bf16 %v345, %v344
    %v364 = vpack.c.bf16 %v347, %v346
    %v365 = vpack.c.bf16 %v349, %v348
    %v366 = vld [vmem:[#allocation5] sm:$0xf]
    %v367 = vld [vmem:[#allocation5 + $0x4] sm:$0xf]
    %v368 = vld [vmem:[#allocation5 + $0x8] sm:$0xf]
    %v369 = vld [vmem:[#allocation5 + $0xc] sm:$0xf]
    %v370 = vld [vmem:[#allocation5 + $0x10] sm:$0xf]
    %v371 = vld [vmem:[#allocation5 + $0x14] sm:$0xf]
    %v372 = vld [vmem:[#allocation5 + $0x18] sm:$0xf]
    %v373 = vld [vmem:[#allocation5 + $0x1c] sm:$0xf]
    %v374 = vld [vmem:[#allocation5 + $0x20] sm:$0xf]
    %v375 = vld [vmem:[#allocation5 + $0x24] sm:$0xf]
    %v376 = vld [vmem:[#allocation5 + $0x28] sm:$0xf]
    %v377 = vld [vmem:[#allocation5 + $0x2c] sm:$0xf]
    %v378 = vld [vmem:[#allocation5 + $0x30] sm:$0xf]
    %v379 = vld [vmem:[#allocation5 + $0x34] sm:$0xf]
    %v380 = vld [vmem:[#allocation5 + $0x38] sm:$0xf]
    %v381 = vld [vmem:[#allocation5 + $0x3c] sm:$0xf]
    %s382 = scalar_lea.vmem [#allocation2], 16
    %v383 = vld [vmem:[%s382] sm:$0xff]
    %v384 = vld [vmem:[%s382 + $0x8] sm:$0xff]
    %v385 = vlaneseq
    %v386 = vshrl.u32 %v385, 7
    %v387 = vsub.s32 0, %v386
    %v388 = vrot.slane %v383, %v387
    %390 = vbcast.lane.b32.xlu0 %v388, 256
    %v391 = vpop.permute.xlu0 %390
    %s393 = sor.u32 256, 8
    %394 = vbcast.lane.b32.xlu0 %v388, %s393
    %v395 = vpop.permute.xlu0 %394
    %v396 = vlaneseq
    %v397 = vshrl.u32 %v396, 7
    %v398 = vsub.s32 1, %v397
    %v399 = vrot.slane %v383, %v398
    %401 = vbcast.lane.b32.xlu0 %v399, 256
    %v402 = vpop.permute.xlu0 %401
    %s404 = sor.u32 256, 8
    %405 = vbcast.lane.b32.xlu0 %v399, %s404
    %v406 = vpop.permute.xlu0 %405
    %v407 = vlaneseq
    %v408 = vshrl.u32 %v407, 7
    %v409 = vsub.s32 2, %v408
    %v410 = vrot.slane %v383, %v409
    %412 = vbcast.lane.b32.xlu0 %v410, 256
    %v413 = vpop.permute.xlu0 %412
    %s415 = sor.u32 256, 8
    %416 = vbcast.lane.b32.xlu0 %v410, %s415
    %v417 = vpop.permute.xlu0 %416
    %v418 = vlaneseq
    %v419 = vshrl.u32 %v418, 7
    %v420 = vsub.s32 3, %v419
    %v421 = vrot.slane %v383, %v420
    %423 = vbcast.lane.b32.xlu0 %v421, 256
    %v424 = vpop.permute.xlu0 %423
    %s426 = sor.u32 256, 8
    %427 = vbcast.lane.b32.xlu0 %v421, %s426
    %v428 = vpop.permute.xlu0 %427
    %v429 = vlaneseq
    %v430 = vshrl.u32 %v429, 7
    %v431 = vsub.s32 4, %v430
    %v432 = vrot.slane %v383, %v431
    %434 = vbcast.lane.b32.xlu0 %v432, 256
    %v435 = vpop.permute.xlu0 %434
    %s437 = sor.u32 256, 8
    %438 = vbcast.lane.b32.xlu0 %v432, %s437
    %v439 = vpop.permute.xlu0 %438
    %v440 = vlaneseq
    %v441 = vshrl.u32 %v440, 7
    %v442 = vsub.s32 5, %v441
    %v443 = vrot.slane %v383, %v442
    %445 = vbcast.lane.b32.xlu0 %v443, 256
    %v446 = vpop.permute.xlu0 %445
    %s448 = sor.u32 256, 8
    %449 = vbcast.lane.b32.xlu0 %v443, %s448
    %v450 = vpop.permute.xlu0 %449
    %v451 = vlaneseq
    %v452 = vshrl.u32 %v451, 7
    %v453 = vsub.s32 6, %v452
    %v454 = vrot.slane %v383, %v453
    %456 = vbcast.lane.b32.xlu0 %v454, 256
    %v457 = vpop.permute.xlu0 %456
    %s459 = sor.u32 256, 8
    %460 = vbcast.lane.b32.xlu0 %v454, %s459
    %v461 = vpop.permute.xlu0 %460
    %v462 = vlaneseq
    %v463 = vshrl.u32 %v462, 7
    %v464 = vsub.s32 7, %v463
    %v465 = vrot.slane %v383, %v464
    %467 = vbcast.lane.b32.xlu0 %v465, 256
    %v468 = vpop.permute.xlu0 %467
    %s470 = sor.u32 256, 8
    %471 = vbcast.lane.b32.xlu0 %v465, %s470
    %v472 = vpop.permute.xlu0 %471
    %v473 = vlaneseq
    %v474 = vshrl.u32 %v473, 7
    %v475 = vsub.s32 0, %v474
    %v476 = vrot.slane %v384, %v475
    %478 = vbcast.lane.b32.xlu0 %v476, 256
    %v479 = vpop.permute.xlu0 %478
    %s481 = sor.u32 256, 8
    %482 = vbcast.lane.b32.xlu0 %v476, %s481
    %v483 = vpop.permute.xlu0 %482
    %v484 = vlaneseq
    %v485 = vshrl.u32 %v484, 7
    %v486 = vsub.s32 1, %v485
    %v487 = vrot.slane %v384, %v486
    %489 = vbcast.lane.b32.xlu0 %v487, 256
    %v490 = vpop.permute.xlu0 %489
    %s492 = sor.u32 256, 8
    %493 = vbcast.lane.b32.xlu0 %v487, %s492
    %v494 = vpop.permute.xlu0 %493
    %v495 = vlaneseq
    %v496 = vshrl.u32 %v495, 7
    %v497 = vsub.s32 2, %v496
    %v498 = vrot.slane %v384, %v497
    %500 = vbcast.lane.b32.xlu0 %v498, 256
    %v501 = vpop.permute.xlu0 %500
    %s503 = sor.u32 256, 8
    %504 = vbcast.lane.b32.xlu0 %v498, %s503
    %v505 = vpop.permute.xlu0 %504
    %v506 = vlaneseq
    %v507 = vshrl.u32 %v506, 7
    %v508 = vsub.s32 3, %v507
    %v509 = vrot.slane %v384, %v508
    %511 = vbcast.lane.b32.xlu0 %v509, 256
    %v512 = vpop.permute.xlu0 %511
    %s514 = sor.u32 256, 8
    %515 = vbcast.lane.b32.xlu0 %v509, %s514
    %v516 = vpop.permute.xlu0 %515
    %v517 = vlaneseq
    %v518 = vshrl.u32 %v517, 7
    %v519 = vsub.s32 4, %v518
    %v520 = vrot.slane %v384, %v519
    %522 = vbcast.lane.b32.xlu0 %v520, 256
    %v523 = vpop.permute.xlu0 %522
    %s525 = sor.u32 256, 8
    %526 = vbcast.lane.b32.xlu0 %v520, %s525
    %v527 = vpop.permute.xlu0 %526
    %v528 = vlaneseq
    %v529 = vshrl.u32 %v528, 7
    %v530 = vsub.s32 5, %v529
    %v531 = vrot.slane %v384, %v530
    %533 = vbcast.lane.b32.xlu0 %v531, 256
    %v534 = vpop.permute.xlu0 %533
    %s536 = sor.u32 256, 8
    %537 = vbcast.lane.b32.xlu0 %v531, %s536
    %v538 = vpop.permute.xlu0 %537
    %v539 = vlaneseq
    %v540 = vshrl.u32 %v539, 7
    %v541 = vsub.s32 6, %v540
    %v542 = vrot.slane %v384, %v541
    %544 = vbcast.lane.b32.xlu0 %v542, 256
    %v545 = vpop.permute.xlu0 %544
    %s547 = sor.u32 256, 8
    %548 = vbcast.lane.b32.xlu0 %v542, %s547
    %v549 = vpop.permute.xlu0 %548
    %v550 = vlaneseq
    %v551 = vshrl.u32 %v550, 7
    %v552 = vsub.s32 7, %v551
    %v553 = vrot.slane %v384, %v552
    %555 = vbcast.lane.b32.xlu0 %v553, 256
    %v556 = vpop.permute.xlu0 %555
    %s558 = sor.u32 256, 8
    %559 = vbcast.lane.b32.xlu0 %v553, %s558
    %v560 = vpop.permute.xlu0 %559
    %vm561 = vcmp.eq.s32.totalorder %v391, %v75
    %vm562 = vcmp.eq.s32.totalorder %v395, %v75
    %vm563 = vcmp.eq.s32.totalorder %v402, %v75
    %vm564 = vcmp.eq.s32.totalorder %v406, %v75
    %vm565 = vcmp.eq.s32.totalorder %v413, %v75
    %vm566 = vcmp.eq.s32.totalorder %v417, %v75
    %vm567 = vcmp.eq.s32.totalorder %v424, %v75
    %vm568 = vcmp.eq.s32.totalorder %v428, %v75
    %vm569 = vcmp.eq.s32.totalorder %v435, %v75
    %vm570 = vcmp.eq.s32.totalorder %v439, %v75
    %vm571 = vcmp.eq.s32.totalorder %v446, %v75
    %vm572 = vcmp.eq.s32.totalorder %v450, %v75
    %vm573 = vcmp.eq.s32.totalorder %v457, %v75
    %vm574 = vcmp.eq.s32.totalorder %v461, %v75
    %vm575 = vcmp.eq.s32.totalorder %v468, %v75
    %vm576 = vcmp.eq.s32.totalorder %v472, %v75
    %vm577 = vcmp.eq.s32.totalorder %v479, %v75
    %vm578 = vcmp.eq.s32.totalorder %v483, %v75
    %vm579 = vcmp.eq.s32.totalorder %v490, %v75
    %vm580 = vcmp.eq.s32.totalorder %v494, %v75
    %vm581 = vcmp.eq.s32.totalorder %v501, %v75
    %vm582 = vcmp.eq.s32.totalorder %v505, %v75
    %vm583 = vcmp.eq.s32.totalorder %v512, %v75
    %vm584 = vcmp.eq.s32.totalorder %v516, %v75
    %vm585 = vcmp.eq.s32.totalorder %v523, %v75
    %vm586 = vcmp.eq.s32.totalorder %v527, %v75
    %vm587 = vcmp.eq.s32.totalorder %v534, %v75
    %vm588 = vcmp.eq.s32.totalorder %v538, %v75
    %vm589 = vcmp.eq.s32.totalorder %v545, %v75
    %vm590 = vcmp.eq.s32.totalorder %v549, %v75
    %vm591 = vcmp.eq.s32.totalorder %v556, %v75
    %vm592 = vcmp.eq.s32.totalorder %v560, %v75
    %v593 = vsel %vm561, 1, 0
    %v594 = vsel %vm562, 1, 0
    %v595 = vsel %vm563, 1, 0
    %v596 = vsel %vm564, 1, 0
    %v597 = vsel %vm565, 1, 0
    %v598 = vsel %vm566, 1, 0
    %v599 = vsel %vm567, 1, 0
    %v600 = vsel %vm568, 1, 0
    %v601 = vsel %vm569, 1, 0
    %v602 = vsel %vm570, 1, 0
    %v603 = vsel %vm571, 1, 0
    %v604 = vsel %vm572, 1, 0
    %v605 = vsel %vm573, 1, 0
    %v606 = vsel %vm574, 1, 0
    %v607 = vsel %vm575, 1, 0
    %v608 = vsel %vm576, 1, 0
    %v609 = vsel %vm577, 1, 0
    %v610 = vsel %vm578, 1, 0
    %v611 = vsel %vm579, 1, 0
    %v612 = vsel %vm580, 1, 0
    %v613 = vsel %vm581, 1, 0
    %v614 = vsel %vm582, 1, 0
    %v615 = vsel %vm583, 1, 0
    %v616 = vsel %vm584, 1, 0
    %v617 = vsel %vm585, 1, 0
    %v618 = vsel %vm586, 1, 0
    %v619 = vsel %vm587, 1, 0
    %v620 = vsel %vm588, 1, 0
    %v621 = vsel %vm589, 1, 0
    %v622 = vsel %vm590, 1, 0
    %v623 = vsel %vm591, 1, 0
    %v624 = vsel %vm592, 1, 0
    %v625 = vcvt.s32.f32 %v593
    %v626 = vcvt.s32.f32 %v594
    %v627 = vcvt.s32.f32 %v595
    %v628 = vcvt.s32.f32 %v596
    %v629 = vcvt.s32.f32 %v597
    %v630 = vcvt.s32.f32 %v598
    %v631 = vcvt.s32.f32 %v599
    %v632 = vcvt.s32.f32 %v600
    %v633 = vcvt.s32.f32 %v601
    %v634 = vcvt.s32.f32 %v602
    %v635 = vcvt.s32.f32 %v603
    %v636 = vcvt.s32.f32 %v604
    %v637 = vcvt.s32.f32 %v605
    %v638 = vcvt.s32.f32 %v606
    %v639 = vcvt.s32.f32 %v607
    %v640 = vcvt.s32.f32 %v608
    %v641 = vcvt.s32.f32 %v609
    %v642 = vcvt.s32.f32 %v610
    %v643 = vcvt.s32.f32 %v611
    %v644 = vcvt.s32.f32 %v612
    %v645 = vcvt.s32.f32 %v613
    %v646 = vcvt.s32.f32 %v614
    %v647 = vcvt.s32.f32 %v615
    %v648 = vcvt.s32.f32 %v616
    %v649 = vcvt.s32.f32 %v617
    %v650 = vcvt.s32.f32 %v618
    %v651 = vcvt.s32.f32 %v619
    %v652 = vcvt.s32.f32 %v620
    %v653 = vcvt.s32.f32 %v621
    %v654 = vcvt.s32.f32 %v622
    %v655 = vcvt.s32.f32 %v623
    %v656 = vcvt.s32.f32 %v624
    %v657 = vpack.c.bf16 %v626, %v625
    %v658 = vpack.c.bf16 %v628, %v627
    %v659 = vpack.c.bf16 %v630, %v629
    %v660 = vpack.c.bf16 %v632, %v631
    %v661 = vpack.c.bf16 %v634, %v633
    %v662 = vpack.c.bf16 %v636, %v635
    %v663 = vpack.c.bf16 %v638, %v637
    %v664 = vpack.c.bf16 %v640, %v639
    %v665 = vpack.c.bf16 %v642, %v641
    %v666 = vpack.c.bf16 %v644, %v643
    %v667 = vpack.c.bf16 %v646, %v645
    %v668 = vpack.c.bf16 %v648, %v647
    %v669 = vpack.c.bf16 %v650, %v649
    %v670 = vpack.c.bf16 %v652, %v651
    %v671 = vpack.c.bf16 %v654, %v653
    %v672 = vpack.c.bf16 %v656, %v655
    %s673 = scalar_lea.vmem [#allocation5], 64
    %v674 = vld [vmem:[%s673] sm:$0xf]
    %v675 = vld [vmem:[%s673 + $0x4] sm:$0xf]
    %v676 = vld [vmem:[%s673 + $0x8] sm:$0xf]
    %v677 = vld [vmem:[%s673 + $0xc] sm:$0xf]
    %v678 = vld [vmem:[%s673 + $0x10] sm:$0xf]
    %v679 = vld [vmem:[%s673 + $0x14] sm:$0xf]
    %v680 = vld [vmem:[%s673 + $0x18] sm:$0xf]
    %v681 = vld [vmem:[%s673 + $0x1c] sm:$0xf]
    %v682 = vld [vmem:[%s673 + $0x20] sm:$0xf]
    %v683 = vld [vmem:[%s673 + $0x24] sm:$0xf]
    %v684 = vld [vmem:[%s673 + $0x28] sm:$0xf]
    %v685 = vld [vmem:[%s673 + $0x2c] sm:$0xf]
    %v686 = vld [vmem:[%s673 + $0x30] sm:$0xf]
    %v687 = vld [vmem:[%s673 + $0x34] sm:$0xf]
    %v688 = vld [vmem:[%s673 + $0x38] sm:$0xf]
    %v689 = vld [vmem:[%s673 + $0x3c] sm:$0xf]
    %v706 = vunpack.c.l.b16 %v674
    %v707 = vunpack.c.l.b16 %v675
    %v708 = vunpack.c.l.b16 %v676
    %v709 = vunpack.c.l.b16 %v677
    %v710 = vunpack.c.l.b16 %v678
    %v711 = vunpack.c.l.b16 %v679
    %v712 = vunpack.c.l.b16 %v680
    %v713 = vunpack.c.l.b16 %v681
    %v714 = vunpack.c.l.b16 %v682
    %v715 = vunpack.c.l.b16 %v683
    %v716 = vunpack.c.l.b16 %v684
    %v717 = vunpack.c.l.b16 %v685
    %v718 = vunpack.c.l.b16 %v686
    %v719 = vunpack.c.l.b16 %v687
    %v720 = vunpack.c.l.b16 %v688
    %v721 = vunpack.c.l.b16 %v689
    %v722 = vpack.c.b16 %v707, %v706
    %v723 = vpack.c.b16 %v709, %v708
    %v724 = vpack.c.b16 %v711, %v710
    %v725 = vpack.c.b16 %v713, %v712
    %v726 = vpack.c.b16 %v715, %v714
    %v727 = vpack.c.b16 %v717, %v716
    %v728 = vpack.c.b16 %v719, %v718
    %v729 = vpack.c.b16 %v721, %v720
    %738 = vmatprep.subr.bf16.mxu0 0
    %739 = vmatpush1.bf16.msra.mxu0 %v729
    %740 = vmatprep.subr.bf16.mxu0 0
    %741 = vmatpush1.bf16.msra.mxu0 %v728
    %742 = vmatprep.subr.bf16.mxu0 0
    %743 = vmatpush1.bf16.msra.mxu0 %v727
    %744 = vmatprep.subr.bf16.mxu0 0
    %745 = vmatpush1.bf16.msra.mxu0 %v726
    %746 = vmatprep.subr.bf16.mxu0 0
    %747 = vmatpush1.bf16.msra.mxu0 %v725
    %748 = vmatprep.subr.bf16.mxu0 0
    %749 = vmatpush1.bf16.msra.mxu0 %v724
    %750 = vmatprep.subr.bf16.mxu0 0
    %751 = vmatpush1.bf16.msra.mxu0 %v723
    %752 = vmatprep.subr.bf16.mxu0 0
    %753 = vmatpush1.bf16.msra.mxu0 %v722
    %754 = vmatprep.subr.bf16.mxu0 0
    %755 = vmatpush2.bf16.msra.mxu0 0
    %756 = vmatprep.subr.bf16.mxu0 0
    %757 = vmatpush2.bf16.msra.mxu0 0
    %758 = vmatprep.subr.bf16.mxu0 0
    %759 = vmatpush2.bf16.msra.mxu0 0
    %760 = vmatprep.subr.bf16.mxu0 0
    %761 = vmatpush2.bf16.msra.mxu0 0
    %762 = vmatprep.subr.bf16.mxu0 0
    %763 = vmatpush2.bf16.msra.mxu0 0
    %764 = vmatprep.subr.bf16.mxu0 0
    %765 = vmatpush2.bf16.msra.mxu0 0
    %766 = vmatprep.subr.bf16.mxu0 0
    %767 = vmatpush2.bf16.msra.mxu0 0
    %768 = vmatprep.subr.bf16.mxu0 0
    %769 = vmatpush2.bf16.msra.mxu0 0
    %770 = vmatprep.mubr.bf16.mxu0 0
    %771 = vmatmul.mubr.bf16.gmra.mxu0 %v657
    %v772 = vpop.f32.mrf.mxu0
    %v773 = vadd.f32 0.0, %v772
    %v774 = vpop.f32.mrf.mxu0
    %v775 = vpop.f32.mrf.mxu0
    %v776 = vadd.f32 0.0, %v775
    %v777 = vpop.f32.mrf.mxu0
    %778 = vmatprep.mubr.bf16.mxu0 0
    %779 = vmatmul.mubr.bf16.gmra.mxu0 %v658
    %v780 = vpop.f32.mrf.mxu0
    %v781 = vadd.f32 0.0, %v780
    %v782 = vpop.f32.mrf.mxu0
    %v783 = vpop.f32.mrf.mxu0
    %v784 = vadd.f32 0.0, %v783
    %v785 = vpop.f32.mrf.mxu0
    %786 = vmatprep.mubr.bf16.mxu0 0
    %787 = vmatmul.mubr.bf16.gmra.mxu0 %v659
    %v788 = vpop.f32.mrf.mxu0
    %v789 = vadd.f32 0.0, %v788
    %v790 = vpop.f32.mrf.mxu0
    %v791 = vpop.f32.mrf.mxu0
    %v792 = vadd.f32 0.0, %v791
    %v793 = vpop.f32.mrf.mxu0
    %794 = vmatprep.mubr.bf16.mxu0 0
    %795 = vmatmul.mubr.bf16.gmra.mxu0 %v660
    %v796 = vpop.f32.mrf.mxu0
    %v797 = vadd.f32 0.0, %v796
    %v798 = vpop.f32.mrf.mxu0
    %v799 = vpop.f32.mrf.mxu0
    %v800 = vadd.f32 0.0, %v799
    %v801 = vpop.f32.mrf.mxu0
    %802 = vmatprep.mubr.bf16.mxu0 0
    %803 = vmatmul.mubr.bf16.gmra.mxu0 %v661
    %v804 = vpop.f32.mrf.mxu0
    %v805 = vadd.f32 0.0, %v804
    %v806 = vpop.f32.mrf.mxu0
    %v807 = vpop.f32.mrf.mxu0
    %v808 = vadd.f32 0.0, %v807
    %v809 = vpop.f32.mrf.mxu0
    %810 = vmatprep.mubr.bf16.mxu0 0
    %811 = vmatmul.mubr.bf16.gmra.mxu0 %v662
    %v812 = vpop.f32.mrf.mxu0
    %v813 = vadd.f32 0.0, %v812
    %v814 = vpop.f32.mrf.mxu0
    %v815 = vpop.f32.mrf.mxu0
    %v816 = vadd.f32 0.0, %v815
    %v817 = vpop.f32.mrf.mxu0
    %818 = vmatprep.mubr.bf16.mxu0 0
    %819 = vmatmul.mubr.bf16.gmra.mxu0 %v663
    %v820 = vpop.f32.mrf.mxu0
    %v821 = vadd.f32 0.0, %v820
    %v822 = vpop.f32.mrf.mxu0
    %v823 = vpop.f32.mrf.mxu0
    %v824 = vadd.f32 0.0, %v823
    %v825 = vpop.f32.mrf.mxu0
    %826 = vmatprep.mubr.bf16.mxu0 0
    %827 = vmatmul.mubr.bf16.gmra.mxu0 %v664
    %v828 = vpop.f32.mrf.mxu0
    %v829 = vadd.f32 0.0, %v828
    %v830 = vpop.f32.mrf.mxu0
    %v831 = vpop.f32.mrf.mxu0
    %v832 = vadd.f32 0.0, %v831
    %v833 = vpop.f32.mrf.mxu0
    %834 = vmatprep.mubr.bf16.mxu0 0
    %835 = vmatmul.mubr.bf16.gmra.mxu0 %v665
    %v836 = vpop.f32.mrf.mxu0
    %v837 = vadd.f32 0.0, %v836
    %v838 = vpop.f32.mrf.mxu0
    %v839 = vpop.f32.mrf.mxu0
    %v840 = vadd.f32 0.0, %v839
    %v841 = vpop.f32.mrf.mxu0
    %842 = vmatprep.mubr.bf16.mxu0 0
    %843 = vmatmul.mubr.bf16.gmra.mxu0 %v666
    %v844 = vpop.f32.mrf.mxu0
    %v845 = vadd.f32 0.0, %v844
    %v846 = vpop.f32.mrf.mxu0
    %v847 = vpop.f32.mrf.mxu0
    %v848 = vadd.f32 0.0, %v847
    %v849 = vpop.f32.mrf.mxu0
    %850 = vmatprep.mubr.bf16.mxu0 0
    %851 = vmatmul.mubr.bf16.gmra.mxu0 %v667
    %v852 = vpop.f32.mrf.mxu0
    %v853 = vadd.f32 0.0, %v852
    %v854 = vpop.f32.mrf.mxu0
    %v855 = vpop.f32.mrf.mxu0
    %v856 = vadd.f32 0.0, %v855
    %v857 = vpop.f32.mrf.mxu0
    %858 = vmatprep.mubr.bf16.mxu0 0
    %859 = vmatmul.mubr.bf16.gmra.mxu0 %v668
    %v860 = vpop.f32.mrf.mxu0
    %v861 = vadd.f32 0.0, %v860
    %v862 = vpop.f32.mrf.mxu0
    %v863 = vpop.f32.mrf.mxu0
    %v864 = vadd.f32 0.0, %v863
    %v865 = vpop.f32.mrf.mxu0
    %866 = vmatprep.mubr.bf16.mxu0 0
    %867 = vmatmul.mubr.bf16.gmra.mxu0 %v669
    %v868 = vpop.f32.mrf.mxu0
    %v869 = vadd.f32 0.0, %v868
    %v870 = vpop.f32.mrf.mxu0
    %v871 = vpop.f32.mrf.mxu0
    %v872 = vadd.f32 0.0, %v871
    %v873 = vpop.f32.mrf.mxu0
    %874 = vmatprep.mubr.bf16.mxu0 0
    %875 = vmatmul.mubr.bf16.gmra.mxu0 %v670
    %v876 = vpop.f32.mrf.mxu0
    %v877 = vadd.f32 0.0, %v876
    %v878 = vpop.f32.mrf.mxu0
    %v879 = vpop.f32.mrf.mxu0
    %v880 = vadd.f32 0.0, %v879
    %v881 = vpop.f32.mrf.mxu0
    %882 = vmatprep.mubr.bf16.mxu0 0
    %883 = vmatmul.mubr.bf16.gmra.mxu0 %v671
    %v884 = vpop.f32.mrf.mxu0
    %v885 = vadd.f32 0.0, %v884
    %v886 = vpop.f32.mrf.mxu0
    %v887 = vpop.f32.mrf.mxu0
    %v888 = vadd.f32 0.0, %v887
    %v889 = vpop.f32.mrf.mxu0
    %890 = vmatprep.mubr.bf16.mxu0 0
    %891 = vmatmul.mubr.bf16.gmra.mxu0 %v672
    %v892 = vpop.f32.mrf.mxu0
    %v893 = vadd.f32 0.0, %v892
    %v894 = vpop.f32.mrf.mxu0
    %v895 = vpop.f32.mrf.mxu0
    %v896 = vadd.f32 0.0, %v895
    %v897 = vpop.f32.mrf.mxu0
    %898 = vdwg.mxu0
    %v915 = vunpack.c.l.b16 %v366
    %v916 = vunpack.c.l.b16 %v367
    %v917 = vunpack.c.l.b16 %v368
    %v918 = vunpack.c.l.b16 %v369
    %v919 = vunpack.c.l.b16 %v370
    %v920 = vunpack.c.l.b16 %v371
    %v921 = vunpack.c.l.b16 %v372
    %v922 = vunpack.c.l.b16 %v373
    %v923 = vunpack.c.l.b16 %v374
    %v924 = vunpack.c.l.b16 %v375
    %v925 = vunpack.c.l.b16 %v376
    %v926 = vunpack.c.l.b16 %v377
    %v927 = vunpack.c.l.b16 %v378
    %v928 = vunpack.c.l.b16 %v379
    %v929 = vunpack.c.l.b16 %v380
    %v930 = vunpack.c.l.b16 %v381
    %v931 = vpack.c.b16 %v916, %v915
    %v932 = vpack.c.b16 %v918, %v917
    %v933 = vpack.c.b16 %v920, %v919
    %v934 = vpack.c.b16 %v922, %v921
    %v935 = vpack.c.b16 %v924, %v923
    %v936 = vpack.c.b16 %v926, %v925
    %v937 = vpack.c.b16 %v928, %v927
    %v938 = vpack.c.b16 %v930, %v929
    %947 = vmatprep.subr.bf16.mxu0 0
    %948 = vmatpush1.bf16.msra.mxu0 %v938
    %949 = vmatprep.subr.bf16.mxu0 0
    %950 = vmatpush1.bf16.msra.mxu0 %v937
    %951 = vmatprep.subr.bf16.mxu0 0
    %952 = vmatpush1.bf16.msra.mxu0 %v936
    %953 = vmatprep.subr.bf16.mxu0 0
    %954 = vmatpush1.bf16.msra.mxu0 %v935
    %955 = vmatprep.subr.bf16.mxu0 0
    %956 = vmatpush1.bf16.msra.mxu0 %v934
    %957 = vmatprep.subr.bf16.mxu0 0
    %958 = vmatpush1.bf16.msra.mxu0 %v933
    %959 = vmatprep.subr.bf16.mxu0 0
    %960 = vmatpush1.bf16.msra.mxu0 %v932
    %961 = vmatprep.subr.bf16.mxu0 0
    %962 = vmatpush1.bf16.msra.mxu0 %v931
    %963 = vmatprep.subr.bf16.mxu0 0
    %964 = vmatpush2.bf16.msra.mxu0 0
    %965 = vmatprep.subr.bf16.mxu0 0
    %966 = vmatpush2.bf16.msra.mxu0 0
    %967 = vmatprep.subr.bf16.mxu0 0
    %968 = vmatpush2.bf16.msra.mxu0 0
    %969 = vmatprep.subr.bf16.mxu0 0
    %970 = vmatpush2.bf16.msra.mxu0 0
    %971 = vmatprep.subr.bf16.mxu0 0
    %972 = vmatpush2.bf16.msra.mxu0 0
    %973 = vmatprep.subr.bf16.mxu0 0
    %974 = vmatpush2.bf16.msra.mxu0 0
    %975 = vmatprep.subr.bf16.mxu0 0
    %976 = vmatpush2.bf16.msra.mxu0 0
    %977 = vmatprep.subr.bf16.mxu0 0
    %978 = vmatpush2.bf16.msra.mxu0 0
    %979 = vmatprep.mubr.bf16.mxu0 0
    %980 = vmatmul.mubr.bf16.gmra.mxu0 %v350
    %v981 = vpop.f32.mrf.mxu0
    %v982 = vadd.f32 %v773, %v981
    %v983 = vpop.f32.mrf.mxu0
    %v984 = vpop.f32.mrf.mxu0
    %v985 = vadd.f32 %v776, %v984
    %v986 = vpop.f32.mrf.mxu0
    %987 = vmatprep.mubr.bf16.mxu0 0
    %988 = vmatmul.mubr.bf16.gmra.mxu0 %v351
    %v989 = vpop.f32.mrf.mxu0
    %v990 = vadd.f32 %v781, %v989
    %v991 = vpop.f32.mrf.mxu0
    %v992 = vpop.f32.mrf.mxu0
    %v993 = vadd.f32 %v784, %v992
    %v994 = vpop.f32.mrf.mxu0
    %995 = vmatprep.mubr.bf16.mxu0 0
    %996 = vmatmul.mubr.bf16.gmra.mxu0 %v352
    %v997 = vpop.f32.mrf.mxu0
    %v998 = vadd.f32 %v789, %v997
    %v999 = vpop.f32.mrf.mxu0
    %v1000 = vpop.f32.mrf.mxu0
    %v1001 = vadd.f32 %v792, %v1000
    %v1002 = vpop.f32.mrf.mxu0
    %1003 = vmatprep.mubr.bf16.mxu0 0
    %1004 = vmatmul.mubr.bf16.gmra.mxu0 %v353
    %v1005 = vpop.f32.mrf.mxu0
    %v1006 = vadd.f32 %v797, %v1005
    %v1007 = vpop.f32.mrf.mxu0
    %v1008 = vpop.f32.mrf.mxu0
    %v1009 = vadd.f32 %v800, %v1008
    %v1010 = vpop.f32.mrf.mxu0
    %1011 = vmatprep.mubr.bf16.mxu0 0
    %1012 = vmatmul.mubr.bf16.gmra.mxu0 %v354
    %v1013 = vpop.f32.mrf.mxu0
    %v1014 = vadd.f32 %v805, %v1013
    %v1015 = vpop.f32.mrf.mxu0
    %v1016 = vpop.f32.mrf.mxu0
    %v1017 = vadd.f32 %v808, %v1016
    %v1018 = vpop.f32.mrf.mxu0
    %1019 = vmatprep.mubr.bf16.mxu0 0
    %1020 = vmatmul.mubr.bf16.gmra.mxu0 %v355
    %v1021 = vpop.f32.mrf.mxu0
    %v1022 = vadd.f32 %v813, %v1021
    %v1023 = vpop.f32.mrf.mxu0
    %v1024 = vpop.f32.mrf.mxu0
    %v1025 = vadd.f32 %v816, %v1024
    %v1026 = vpop.f32.mrf.mxu0
    %1027 = vmatprep.mubr.bf16.mxu0 0
    %1028 = vmatmul.mubr.bf16.gmra.mxu0 %v356
    %v1029 = vpop.f32.mrf.mxu0
    %v1030 = vadd.f32 %v821, %v1029
    %v1031 = vpop.f32.mrf.mxu0
    %v1032 = vpop.f32.mrf.mxu0
    %v1033 = vadd.f32 %v824, %v1032
    %v1034 = vpop.f32.mrf.mxu0
    %1035 = vmatprep.mubr.bf16.mxu0 0
    %1036 = vmatmul.mubr.bf16.gmra.mxu0 %v357
    %v1037 = vpop.f32.mrf.mxu0
    %v1038 = vadd.f32 %v829, %v1037
    %v1039 = vpop.f32.mrf.mxu0
    %v1040 = vpop.f32.mrf.mxu0
    %v1041 = vadd.f32 %v832, %v1040
    %v1042 = vpop.f32.mrf.mxu0
    %1043 = vmatprep.mubr.bf16.mxu0 0
    %1044 = vmatmul.mubr.bf16.gmra.mxu0 %v358
    %v1045 = vpop.f32.mrf.mxu0
    %v1046 = vadd.f32 %v837, %v1045
    %v1047 = vpop.f32.mrf.mxu0
    %v1048 = vpop.f32.mrf.mxu0
    %v1049 = vadd.f32 %v840, %v1048
    %v1050 = vpop.f32.mrf.mxu0
    %1051 = vmatprep.mubr.bf16.mxu0 0
    %1052 = vmatmul.mubr.bf16.gmra.mxu0 %v359
    %v1053 = vpop.f32.mrf.mxu0
    %v1054 = vadd.f32 %v845, %v1053
    %v1055 = vpop.f32.mrf.mxu0
    %v1056 = vpop.f32.mrf.mxu0
    %v1057 = vadd.f32 %v848, %v1056
    %v1058 = vpop.f32.mrf.mxu0
    %1059 = vmatprep.mubr.bf16.mxu0 0
    %1060 = vmatmul.mubr.bf16.gmra.mxu0 %v360
    %v1061 = vpop.f32.mrf.mxu0
    %v1062 = vadd.f32 %v853, %v1061
    %v1063 = vpop.f32.mrf.mxu0
    %v1064 = vpop.f32.mrf.mxu0
    %v1065 = vadd.f32 %v856, %v1064
    %v1066 = vpop.f32.mrf.mxu0
    %1067 = vmatprep.mubr.bf16.mxu0 0
    %1068 = vmatmul.mubr.bf16.gmra.mxu0 %v361
    %v1069 = vpop.f32.mrf.mxu0
    %v1070 = vadd.f32 %v861, %v1069
    %v1071 = vpop.f32.mrf.mxu0
    %v1072 = vpop.f32.mrf.mxu0
    %v1073 = vadd.f32 %v864, %v1072
    %v1074 = vpop.f32.mrf.mxu0
    %1075 = vmatprep.mubr.bf16.mxu0 0
    %1076 = vmatmul.mubr.bf16.gmra.mxu0 %v362
    %v1077 = vpop.f32.mrf.mxu0
    %v1078 = vadd.f32 %v869, %v1077
    %v1079 = vpop.f32.mrf.mxu0
    %v1080 = vpop.f32.mrf.mxu0
    %v1081 = vadd.f32 %v872, %v1080
    %v1082 = vpop.f32.mrf.mxu0
    %1083 = vmatprep.mubr.bf16.mxu0 0
    %1084 = vmatmul.mubr.bf16.gmra.mxu0 %v363
    %v1085 = vpop.f32.mrf.mxu0
    %v1086 = vadd.f32 %v877, %v1085
    %v1087 = vpop.f32.mrf.mxu0
    %v1088 = vpop.f32.mrf.mxu0
    %v1089 = vadd.f32 %v880, %v1088
    %v1090 = vpop.f32.mrf.mxu0
    %1091 = vmatprep.mubr.bf16.mxu0 0
    %1092 = vmatmul.mubr.bf16.gmra.mxu0 %v364
    %v1093 = vpop.f32.mrf.mxu0
    %v1094 = vadd.f32 %v885, %v1093
    %v1095 = vpop.f32.mrf.mxu0
    %v1096 = vpop.f32.mrf.mxu0
    %v1097 = vadd.f32 %v888, %v1096
    %v1098 = vpop.f32.mrf.mxu0
    %1099 = vmatprep.mubr.bf16.mxu0 0
    %1100 = vmatmul.mubr.bf16.gmra.mxu0 %v365
    %v1101 = vpop.f32.mrf.mxu0
    %v1102 = vadd.f32 %v893, %v1101
    %v1103 = vpop.f32.mrf.mxu0
    %v1104 = vpop.f32.mrf.mxu0
    %v1105 = vadd.f32 %v896, %v1104
    %v1106 = vpop.f32.mrf.mxu0
    %1107 = vdwg.mxu0
    %s1108 = scalar_lea.vmem [#allocation2], 32
    %v1109 = vld [vmem:[%s1108] sm:$0xff]
    %v1110 = vld [vmem:[%s1108 + $0x8] sm:$0xff]
    %v1111 = vlaneseq
    %v1112 = vshrl.u32 %v1111, 7
    %v1113 = vsub.s32 0, %v1112
    %v1114 = vrot.slane %v1109, %v1113
    %1116 = vbcast.lane.b32.xlu0 %v1114, 256
    %v1117 = vpop.permute.xlu0 %1116
    %s1119 = sor.u32 256, 8
    %1120 = vbcast.lane.b32.xlu0 %v1114, %s1119
    %v1121 = vpop.permute.xlu0 %1120
    %v1122 = vlaneseq
    %v1123 = vshrl.u32 %v1122, 7
    %v1124 = vsub.s32 1, %v1123
    %v1125 = vrot.slane %v1109, %v1124
    %1127 = vbcast.lane.b32.xlu0 %v1125, 256
    %v1128 = vpop.permute.xlu0 %1127
    %s1130 = sor.u32 256, 8
    %1131 = vbcast.lane.b32.xlu0 %v1125, %s1130
    %v1132 = vpop.permute.xlu0 %1131
    %v1133 = vlaneseq
    %v1134 = vshrl.u32 %v1133, 7
    %v1135 = vsub.s32 2, %v1134
    %v1136 = vrot.slane %v1109, %v1135
    %1138 = vbcast.lane.b32.xlu0 %v1136, 256
    %v1139 = vpop.permute.xlu0 %1138
    %s1141 = sor.u32 256, 8
    %1142 = vbcast.lane.b32.xlu0 %v1136, %s1141
    %v1143 = vpop.permute.xlu0 %1142
    %v1144 = vlaneseq
    %v1145 = vshrl.u32 %v1144, 7
    %v1146 = vsub.s32 3, %v1145
    %v1147 = vrot.slane %v1109, %v1146
    %1149 = vbcast.lane.b32.xlu0 %v1147, 256
    %v1150 = vpop.permute.xlu0 %1149
    %s1152 = sor.u32 256, 8
    %1153 = vbcast.lane.b32.xlu0 %v1147, %s1152
    %v1154 = vpop.permute.xlu0 %1153
    %v1155 = vlaneseq
    %v1156 = vshrl.u32 %v1155, 7
    %v1157 = vsub.s32 4, %v1156
    %v1158 = vrot.slane %v1109, %v1157
    %1160 = vbcast.lane.b32.xlu0 %v1158, 256
    %v1161 = vpop.permute.xlu0 %1160
    %s1163 = sor.u32 256, 8
    %1164 = vbcast.lane.b32.xlu0 %v1158, %s1163
    %v1165 = vpop.permute.xlu0 %1164
    %v1166 = vlaneseq
    %v1167 = vshrl.u32 %v1166, 7
    %v1168 = vsub.s32 5, %v1167
    %v1169 = vrot.slane %v1109, %v1168
    %1171 = vbcast.lane.b32.xlu0 %v1169, 256
    %v1172 = vpop.permute.xlu0 %1171
    %s1174 = sor.u32 256, 8
    %1175 = vbcast.lane.b32.xlu0 %v1169, %s1174
    %v1176 = vpop.permute.xlu0 %1175
    %v1177 = vlaneseq
    %v1178 = vshrl.u32 %v1177, 7
    %v1179 = vsub.s32 6, %v1178
    %v1180 = vrot.slane %v1109, %v1179
    %1182 = vbcast.lane.b32.xlu0 %v1180, 256
    %v1183 = vpop.permute.xlu0 %1182
    %s1185 = sor.u32 256, 8
    %1186 = vbcast.lane.b32.xlu0 %v1180, %s1185
    %v1187 = vpop.permute.xlu0 %1186
    %v1188 = vlaneseq
    %v1189 = vshrl.u32 %v1188, 7
    %v1190 = vsub.s32 7, %v1189
    %v1191 = vrot.slane %v1109, %v1190
    %1193 = vbcast.lane.b32.xlu0 %v1191, 256
    %v1194 = vpop.permute.xlu0 %1193
    %s1196 = sor.u32 256, 8
    %1197 = vbcast.lane.b32.xlu0 %v1191, %s1196
    %v1198 = vpop.permute.xlu0 %1197
    %v1199 = vlaneseq
    %v1200 = vshrl.u32 %v1199, 7
    %v1201 = vsub.s32 0, %v1200
    %v1202 = vrot.slane %v1110, %v1201
    %1204 = vbcast.lane.b32.xlu0 %v1202, 256
    %v1205 = vpop.permute.xlu0 %1204
    %s1207 = sor.u32 256, 8
    %1208 = vbcast.lane.b32.xlu0 %v1202, %s1207
    %v1209 = vpop.permute.xlu0 %1208
    %v1210 = vlaneseq
    %v1211 = vshrl.u32 %v1210, 7
    %v1212 = vsub.s32 1, %v1211
    %v1213 = vrot.slane %v1110, %v1212
    %1215 = vbcast.lane.b32.xlu0 %v1213, 256
    %v1216 = vpop.permute.xlu0 %1215
    %s1218 = sor.u32 256, 8
    %1219 = vbcast.lane.b32.xlu0 %v1213, %s1218
    %v1220 = vpop.permute.xlu0 %1219
    %v1221 = vlaneseq
    %v1222 = vshrl.u32 %v1221, 7
    %v1223 = vsub.s32 2, %v1222
    %v1224 = vrot.slane %v1110, %v1223
    %1226 = vbcast.lane.b32.xlu0 %v1224, 256
    %v1227 = vpop.permute.xlu0 %1226
    %s1229 = sor.u32 256, 8
    %1230 = vbcast.lane.b32.xlu0 %v1224, %s1229
    %v1231 = vpop.permute.xlu0 %1230
    %v1232 = vlaneseq
    %v1233 = vshrl.u32 %v1232, 7
    %v1234 = vsub.s32 3, %v1233
    %v1235 = vrot.slane %v1110, %v1234
    %1237 = vbcast.lane.b32.xlu0 %v1235, 256
    %v1238 = vpop.permute.xlu0 %1237
    %s1240 = sor.u32 256, 8
    %1241 = vbcast.lane.b32.xlu0 %v1235, %s1240
    %v1242 = vpop.permute.xlu0 %1241
    %v1243 = vlaneseq
    %v1244 = vshrl.u32 %v1243, 7
    %v1245 = vsub.s32 4, %v1244
    %v1246 = vrot.slane %v1110, %v1245
    %1248 = vbcast.lane.b32.xlu0 %v1246, 256
    %v1249 = vpop.permute.xlu0 %1248
    %s1251 = sor.u32 256, 8
    %1252 = vbcast.lane.b32.xlu0 %v1246, %s1251
    %v1253 = vpop.permute.xlu0 %1252
    %v1254 = vlaneseq
    %v1255 = vshrl.u32 %v1254, 7
    %v1256 = vsub.s32 5, %v1255
    %v1257 = vrot.slane %v1110, %v1256
    %1259 = vbcast.lane.b32.xlu0 %v1257, 256
    %v1260 = vpop.permute.xlu0 %1259
    %s1262 = sor.u32 256, 8
    %1263 = vbcast.lane.b32.xlu0 %v1257, %s1262
    %v1264 = vpop.permute.xlu0 %1263
    %v1265 = vlaneseq
    %v1266 = vshrl.u32 %v1265, 7
    %v1267 = vsub.s32 6, %v1266
    %v1268 = vrot.slane %v1110, %v1267
    %1270 = vbcast.lane.b32.xlu0 %v1268, 256
    %v1271 = vpop.permute.xlu0 %1270
    %s1273 = sor.u32 256, 8
    %1274 = vbcast.lane.b32.xlu0 %v1268, %s1273
    %v1275 = vpop.permute.xlu0 %1274
    %v1276 = vlaneseq
    %v1277 = vshrl.u32 %v1276, 7
    %v1278 = vsub.s32 7, %v1277
    %v1279 = vrot.slane %v1110, %v1278
    %1281 = vbcast.lane.b32.xlu0 %v1279, 256
    %v1282 = vpop.permute.xlu0 %1281
    %s1284 = sor.u32 256, 8
    %1285 = vbcast.lane.b32.xlu0 %v1279, %s1284
    %v1286 = vpop.permute.xlu0 %1285
    %vm1287 = vcmp.eq.s32.totalorder %v1117, %v75
    %vm1288 = vcmp.eq.s32.totalorder %v1121, %v75
    %vm1289 = vcmp.eq.s32.totalorder %v1128, %v75
    %vm1290 = vcmp.eq.s32.totalorder %v1132, %v75
    %vm1291 = vcmp.eq.s32.totalorder %v1139, %v75
    %vm1292 = vcmp.eq.s32.totalorder %v1143, %v75
    %vm1293 = vcmp.eq.s32.totalorder %v1150, %v75
    %vm1294 = vcmp.eq.s32.totalorder %v1154, %v75
    %vm1295 = vcmp.eq.s32.totalorder %v1161, %v75
    %vm1296 = vcmp.eq.s32.totalorder %v1165, %v75
    %vm1297 = vcmp.eq.s32.totalorder %v1172, %v75
    %vm1298 = vcmp.eq.s32.totalorder %v1176, %v75
    %vm1299 = vcmp.eq.s32.totalorder %v1183, %v75
    %vm1300 = vcmp.eq.s32.totalorder %v1187, %v75
    %vm1301 = vcmp.eq.s32.totalorder %v1194, %v75
    %vm1302 = vcmp.eq.s32.totalorder %v1198, %v75
    %vm1303 = vcmp.eq.s32.totalorder %v1205, %v75
    %vm1304 = vcmp.eq.s32.totalorder %v1209, %v75
    %vm1305 = vcmp.eq.s32.totalorder %v1216, %v75
    %vm1306 = vcmp.eq.s32.totalorder %v1220, %v75
    %vm1307 = vcmp.eq.s32.totalorder %v1227, %v75
    %vm1308 = vcmp.eq.s32.totalorder %v1231, %v75
    %vm1309 = vcmp.eq.s32.totalorder %v1238, %v75
    %vm1310 = vcmp.eq.s32.totalorder %v1242, %v75
    %vm1311 = vcmp.eq.s32.totalorder %v1249, %v75
    %vm1312 = vcmp.eq.s32.totalorder %v1253, %v75
    %vm1313 = vcmp.eq.s32.totalorder %v1260, %v75
    %vm1314 = vcmp.eq.s32.totalorder %v1264, %v75
    %vm1315 = vcmp.eq.s32.totalorder %v1271, %v75
    %vm1316 = vcmp.eq.s32.totalorder %v1275, %v75
    %vm1317 = vcmp.eq.s32.totalorder %v1282, %v75
    %vm1318 = vcmp.eq.s32.totalorder %v1286, %v75
    %v1319 = vsel %vm1287, 1, 0
    %v1320 = vsel %vm1288, 1, 0
    %v1321 = vsel %vm1289, 1, 0
    %v1322 = vsel %vm1290, 1, 0
    %v1323 = vsel %vm1291, 1, 0
    %v1324 = vsel %vm1292, 1, 0
    %v1325 = vsel %vm1293, 1, 0
    %v1326 = vsel %vm1294, 1, 0
    %v1327 = vsel %vm1295, 1, 0
    %v1328 = vsel %vm1296, 1, 0
    %v1329 = vsel %vm1297, 1, 0
    %v1330 = vsel %vm1298, 1, 0
    %v1331 = vsel %vm1299, 1, 0
    %v1332 = vsel %vm1300, 1, 0
    %v1333 = vsel %vm1301, 1, 0
    %v1334 = vsel %vm1302, 1, 0
    %v1335 = vsel %vm1303, 1, 0
    %v1336 = vsel %vm1304, 1, 0
    %v1337 = vsel %vm1305, 1, 0
    %v1338 = vsel %vm1306, 1, 0
    %v1339 = vsel %vm1307, 1, 0
    %v1340 = vsel %vm1308, 1, 0
    %v1341 = vsel %vm1309, 1, 0
    %v1342 = vsel %vm1310, 1, 0
    %v1343 = vsel %vm1311, 1, 0
    %v1344 = vsel %vm1312, 1, 0
    %v1345 = vsel %vm1313, 1, 0
    %v1346 = vsel %vm1314, 1, 0
    %v1347 = vsel %vm1315, 1, 0
    %v1348 = vsel %vm1316, 1, 0
    %v1349 = vsel %vm1317, 1, 0
    %v1350 = vsel %vm1318, 1, 0
    %v1351 = vcvt.s32.f32 %v1319
    %v1352 = vcvt.s32.f32 %v1320
    %v1353 = vcvt.s32.f32 %v1321
    %v1354 = vcvt.s32.f32 %v1322
    %v1355 = vcvt.s32.f32 %v1323
    %v1356 = vcvt.s32.f32 %v1324
    %v1357 = vcvt.s32.f32 %v1325
    %v1358 = vcvt.s32.f32 %v1326
    %v1359 = vcvt.s32.f32 %v1327
    %v1360 = vcvt.s32.f32 %v1328
    %v1361 = vcvt.s32.f32 %v1329
    %v1362 = vcvt.s32.f32 %v1330
    %v1363 = vcvt.s32.f32 %v1331
    %v1364 = vcvt.s32.f32 %v1332
    %v1365 = vcvt.s32.f32 %v1333
    %v1366 = vcvt.s32.f32 %v1334
    %v1367 = vcvt.s32.f32 %v1335
    %v1368 = vcvt.s32.f32 %v1336
    %v1369 = vcvt.s32.f32 %v1337
    %v1370 = vcvt.s32.f32 %v1338
    %v1371 = vcvt.s32.f32 %v1339
    %v1372 = vcvt.s32.f32 %v1340
    %v1373 = vcvt.s32.f32 %v1341
    %v1374 = vcvt.s32.f32 %v1342
    %v1375 = vcvt.s32.f32 %v1343
    %v1376 = vcvt.s32.f32 %v1344
    %v1377 = vcvt.s32.f32 %v1345
    %v1378 = vcvt.s32.f32 %v1346
    %v1379 = vcvt.s32.f32 %v1347
    %v1380 = vcvt.s32.f32 %v1348
    %v1381 = vcvt.s32.f32 %v1349
    %v1382 = vcvt.s32.f32 %v1350
    %v1383 = vpack.c.bf16 %v1352, %v1351
    %v1384 = vpack.c.bf16 %v1354, %v1353
    %v1385 = vpack.c.bf16 %v1356, %v1355
    %v1386 = vpack.c.bf16 %v1358, %v1357
    %v1387 = vpack.c.bf16 %v1360, %v1359
    %v1388 = vpack.c.bf16 %v1362, %v1361
    %v1389 = vpack.c.bf16 %v1364, %v1363
    %v1390 = vpack.c.bf16 %v1366, %v1365
    %v1391 = vpack.c.bf16 %v1368, %v1367
    %v1392 = vpack.c.bf16 %v1370, %v1369
    %v1393 = vpack.c.bf16 %v1372, %v1371
    %v1394 = vpack.c.bf16 %v1374, %v1373
    %v1395 = vpack.c.bf16 %v1376, %v1375
    %v1396 = vpack.c.bf16 %v1378, %v1377
    %v1397 = vpack.c.bf16 %v1380, %v1379
    %v1398 = vpack.c.bf16 %v1382, %v1381
    %s1399 = scalar_lea.vmem [#allocation5], 128
    %v1400 = vld [vmem:[%s1399] sm:$0xf]
    %v1401 = vld [vmem:[%s1399 + $0x4] sm:$0xf]
    %v1402 = vld [vmem:[%s1399 + $0x8] sm:$0xf]
    %v1403 = vld [vmem:[%s1399 + $0xc] sm:$0xf]
    %v1404 = vld [vmem:[%s1399 + $0x10] sm:$0xf]
    %v1405 = vld [vmem:[%s1399 + $0x14] sm:$0xf]
    %v1406 = vld [vmem:[%s1399 + $0x18] sm:$0xf]
    %v1407 = vld [vmem:[%s1399 + $0x1c] sm:$0xf]
    %v1408 = vld [vmem:[%s1399 + $0x20] sm:$0xf]
    %v1409 = vld [vmem:[%s1399 + $0x24] sm:$0xf]
    %v1410 = vld [vmem:[%s1399 + $0x28] sm:$0xf]
    %v1411 = vld [vmem:[%s1399 + $0x2c] sm:$0xf]
    %v1412 = vld [vmem:[%s1399 + $0x30] sm:$0xf]
    %v1413 = vld [vmem:[%s1399 + $0x34] sm:$0xf]
    %v1414 = vld [vmem:[%s1399 + $0x38] sm:$0xf]
    %v1415 = vld [vmem:[%s1399 + $0x3c] sm:$0xf]
    %v1432 = vunpack.c.l.b16 %v1400
    %v1433 = vunpack.c.l.b16 %v1401
    %v1434 = vunpack.c.l.b16 %v1402
    %v1435 = vunpack.c.l.b16 %v1403
    %v1436 = vunpack.c.l.b16 %v1404
    %v1437 = vunpack.c.l.b16 %v1405
    %v1438 = vunpack.c.l.b16 %v1406
    %v1439 = vunpack.c.l.b16 %v1407
    %v1440 = vunpack.c.l.b16 %v1408
    %v1441 = vunpack.c.l.b16 %v1409
    %v1442 = vunpack.c.l.b16 %v1410
    %v1443 = vunpack.c.l.b16 %v1411
    %v1444 = vunpack.c.l.b16 %v1412
    %v1445 = vunpack.c.l.b16 %v1413
    %v1446 = vunpack.c.l.b16 %v1414
    %v1447 = vunpack.c.l.b16 %v1415
    %v1448 = vpack.c.b16 %v1433, %v1432
    %v1449 = vpack.c.b16 %v1435, %v1434
    %v1450 = vpack.c.b16 %v1437, %v1436
    %v1451 = vpack.c.b16 %v1439, %v1438
    %v1452 = vpack.c.b16 %v1441, %v1440
    %v1453 = vpack.c.b16 %v1443, %v1442
    %v1454 = vpack.c.b16 %v1445, %v1444
    %v1455 = vpack.c.b16 %v1447, %v1446
    %1464 = vmatprep.subr.bf16.mxu0 0
    %1465 = vmatpush1.bf16.msra.mxu0 %v1455
    %1466 = vmatprep.subr.bf16.mxu0 0
    %1467 = vmatpush1.bf16.msra.mxu0 %v1454
    %1468 = vmatprep.subr.bf16.mxu0 0
    %1469 = vmatpush1.bf16.msra.mxu0 %v1453
    %1470 = vmatprep.subr.bf16.mxu0 0
    %1471 = vmatpush1.bf16.msra.mxu0 %v1452
    %1472 = vmatprep.subr.bf16.mxu0 0
    %1473 = vmatpush1.bf16.msra.mxu0 %v1451
    %1474 = vmatprep.subr.bf16.mxu0 0
    %1475 = vmatpush1.bf16.msra.mxu0 %v1450
    %1476 = vmatprep.subr.bf16.mxu0 0
    %1477 = vmatpush1.bf16.msra.mxu0 %v1449
    %1478 = vmatprep.subr.bf16.mxu0 0
    %1479 = vmatpush1.bf16.msra.mxu0 %v1448
    %1480 = vmatprep.subr.bf16.mxu0 0
    %1481 = vmatpush2.bf16.msra.mxu0 0
    %1482 = vmatprep.subr.bf16.mxu0 0
    %1483 = vmatpush2.bf16.msra.mxu0 0
    %1484 = vmatprep.subr.bf16.mxu0 0
    %1485 = vmatpush2.bf16.msra.mxu0 0
    %1486 = vmatprep.subr.bf16.mxu0 0
    %1487 = vmatpush2.bf16.msra.mxu0 0
    %1488 = vmatprep.subr.bf16.mxu0 0
    %1489 = vmatpush2.bf16.msra.mxu0 0
    %1490 = vmatprep.subr.bf16.mxu0 0
    %1491 = vmatpush2.bf16.msra.mxu0 0
    %1492 = vmatprep.subr.bf16.mxu0 0
    %1493 = vmatpush2.bf16.msra.mxu0 0
    %1494 = vmatprep.subr.bf16.mxu0 0
    %1495 = vmatpush2.bf16.msra.mxu0 0
    %1496 = vmatprep.mubr.bf16.mxu0 0
    %1497 = vmatmul.mubr.bf16.gmra.mxu0 %v1383
    %v1498 = vpop.f32.mrf.mxu0
    %v1499 = vadd.f32 0.0, %v1498
    %v1500 = vpop.f32.mrf.mxu0
    %v1501 = vpop.f32.mrf.mxu0
    %v1502 = vadd.f32 0.0, %v1501
    %v1503 = vpop.f32.mrf.mxu0
    %1504 = vmatprep.mubr.bf16.mxu0 0
    %1505 = vmatmul.mubr.bf16.gmra.mxu0 %v1384
    %v1506 = vpop.f32.mrf.mxu0
    %v1507 = vadd.f32 0.0, %v1506
    %v1508 = vpop.f32.mrf.mxu0
    %v1509 = vpop.f32.mrf.mxu0
    %v1510 = vadd.f32 0.0, %v1509
    %v1511 = vpop.f32.mrf.mxu0
    %1512 = vmatprep.mubr.bf16.mxu0 0
    %1513 = vmatmul.mubr.bf16.gmra.mxu0 %v1385
    %v1514 = vpop.f32.mrf.mxu0
    %v1515 = vadd.f32 0.0, %v1514
    %v1516 = vpop.f32.mrf.mxu0
    %v1517 = vpop.f32.mrf.mxu0
    %v1518 = vadd.f32 0.0, %v1517
    %v1519 = vpop.f32.mrf.mxu0
    %1520 = vmatprep.mubr.bf16.mxu0 0
    %1521 = vmatmul.mubr.bf16.gmra.mxu0 %v1386
    %v1522 = vpop.f32.mrf.mxu0
    %v1523 = vadd.f32 0.0, %v1522
    %v1524 = vpop.f32.mrf.mxu0
    %v1525 = vpop.f32.mrf.mxu0
    %v1526 = vadd.f32 0.0, %v1525
    %v1527 = vpop.f32.mrf.mxu0
    %1528 = vmatprep.mubr.bf16.mxu0 0
    %1529 = vmatmul.mubr.bf16.gmra.mxu0 %v1387
    %v1530 = vpop.f32.mrf.mxu0
    %v1531 = vadd.f32 0.0, %v1530
    %v1532 = vpop.f32.mrf.mxu0
    %v1533 = vpop.f32.mrf.mxu0
    %v1534 = vadd.f32 0.0, %v1533
    %v1535 = vpop.f32.mrf.mxu0
    %1536 = vmatprep.mubr.bf16.mxu0 0
    %1537 = vmatmul.mubr.bf16.gmra.mxu0 %v1388
    %v1538 = vpop.f32.mrf.mxu0
    %v1539 = vadd.f32 0.0, %v1538
    %v1540 = vpop.f32.mrf.mxu0
    %v1541 = vpop.f32.mrf.mxu0
    %v1542 = vadd.f32 0.0, %v1541
    %v1543 = vpop.f32.mrf.mxu0
    %1544 = vmatprep.mubr.bf16.mxu0 0
    %1545 = vmatmul.mubr.bf16.gmra.mxu0 %v1389
    %v1546 = vpop.f32.mrf.mxu0
    %v1547 = vadd.f32 0.0, %v1546
    %v1548 = vpop.f32.mrf.mxu0
    %v1549 = vpop.f32.mrf.mxu0
    %v1550 = vadd.f32 0.0, %v1549
    %v1551 = vpop.f32.mrf.mxu0
    %1552 = vmatprep.mubr.bf16.mxu0 0
    %1553 = vmatmul.mubr.bf16.gmra.mxu0 %v1390
    %v1554 = vpop.f32.mrf.mxu0
    %v1555 = vadd.f32 0.0, %v1554
    %v1556 = vpop.f32.mrf.mxu0
    %v1557 = vpop.f32.mrf.mxu0
    %v1558 = vadd.f32 0.0, %v1557
    %v1559 = vpop.f32.mrf.mxu0
    %1560 = vmatprep.mubr.bf16.mxu0 0
    %1561 = vmatmul.mubr.bf16.gmra.mxu0 %v1391
    %v1562 = vpop.f32.mrf.mxu0
    %v1563 = vadd.f32 0.0, %v1562
    %v1564 = vpop.f32.mrf.mxu0
    %v1565 = vpop.f32.mrf.mxu0
    %v1566 = vadd.f32 0.0, %v1565
    %v1567 = vpop.f32.mrf.mxu0
    %1568 = vmatprep.mubr.bf16.mxu0 0
    %1569 = vmatmul.mubr.bf16.gmra.mxu0 %v1392
    %v1570 = vpop.f32.mrf.mxu0
    %v1571 = vadd.f32 0.0, %v1570
    %v1572 = vpop.f32.mrf.mxu0
    %v1573 = vpop.f32.mrf.mxu0
    %v1574 = vadd.f32 0.0, %v1573
    %v1575 = vpop.f32.mrf.mxu0
    %1576 = vmatprep.mubr.bf16.mxu0 0
    %1577 = vmatmul.mubr.bf16.gmra.mxu0 %v1393
    %v1578 = vpop.f32.mrf.mxu0
    %v1579 = vadd.f32 0.0, %v1578
    %v1580 = vpop.f32.mrf.mxu0
    %v1581 = vpop.f32.mrf.mxu0
    %v1582 = vadd.f32 0.0, %v1581
    %v1583 = vpop.f32.mrf.mxu0
    %1584 = vmatprep.mubr.bf16.mxu0 0
    %1585 = vmatmul.mubr.bf16.gmra.mxu0 %v1394
    %v1586 = vpop.f32.mrf.mxu0
    %v1587 = vadd.f32 0.0, %v1586
    %v1588 = vpop.f32.mrf.mxu0
    %v1589 = vpop.f32.mrf.mxu0
    %v1590 = vadd.f32 0.0, %v1589
    %v1591 = vpop.f32.mrf.mxu0
    %1592 = vmatprep.mubr.bf16.mxu0 0
    %1593 = vmatmul.mubr.bf16.gmra.mxu0 %v1395
    %v1594 = vpop.f32.mrf.mxu0
    %v1595 = vadd.f32 0.0, %v1594
    %v1596 = vpop.f32.mrf.mxu0
    %v1597 = vpop.f32.mrf.mxu0
    %v1598 = vadd.f32 0.0, %v1597
    %v1599 = vpop.f32.mrf.mxu0
    %1600 = vmatprep.mubr.bf16.mxu0 0
    %1601 = vmatmul.mubr.bf16.gmra.mxu0 %v1396
    %v1602 = vpop.f32.mrf.mxu0
    %v1603 = vadd.f32 0.0, %v1602
    %v1604 = vpop.f32.mrf.mxu0
    %v1605 = vpop.f32.mrf.mxu0
    %v1606 = vadd.f32 0.0, %v1605
    %v1607 = vpop.f32.mrf.mxu0
    %1608 = vmatprep.mubr.bf16.mxu0 0
    %1609 = vmatmul.mubr.bf16.gmra.mxu0 %v1397
    %v1610 = vpop.f32.mrf.mxu0
    %v1611 = vadd.f32 0.0, %v1610
    %v1612 = vpop.f32.mrf.mxu0
    %v1613 = vpop.f32.mrf.mxu0
    %v1614 = vadd.f32 0.0, %v1613
    %v1615 = vpop.f32.mrf.mxu0
    %1616 = vmatprep.mubr.bf16.mxu0 0
    %1617 = vmatmul.mubr.bf16.gmra.mxu0 %v1398
    %v1618 = vpop.f32.mrf.mxu0
    %v1619 = vadd.f32 0.0, %v1618
    %v1620 = vpop.f32.mrf.mxu0
    %v1621 = vpop.f32.mrf.mxu0
    %v1622 = vadd.f32 0.0, %v1621
    %v1623 = vpop.f32.mrf.mxu0
    %1624 = vdwg.mxu0
    %v1625 = vadd.f32 %v982, %v1499
    %v1626 = vadd.f32 %v985, %v1502
    %v1627 = vadd.f32 %v990, %v1507
    %v1628 = vadd.f32 %v993, %v1510
    %v1629 = vadd.f32 %v998, %v1515
    %v1630 = vadd.f32 %v1001, %v1518
    %v1631 = vadd.f32 %v1006, %v1523
    %v1632 = vadd.f32 %v1009, %v1526
    %v1633 = vadd.f32 %v1014, %v1531
    %v1634 = vadd.f32 %v1017, %v1534
    %v1635 = vadd.f32 %v1022, %v1539
    %v1636 = vadd.f32 %v1025, %v1542
    %v1637 = vadd.f32 %v1030, %v1547
    %v1638 = vadd.f32 %v1033, %v1550
    %v1639 = vadd.f32 %v1038, %v1555
    %v1640 = vadd.f32 %v1041, %v1558
    %v1641 = vadd.f32 %v1046, %v1563
    %v1642 = vadd.f32 %v1049, %v1566
    %v1643 = vadd.f32 %v1054, %v1571
    %v1644 = vadd.f32 %v1057, %v1574
    %v1645 = vadd.f32 %v1062, %v1579
    %v1646 = vadd.f32 %v1065, %v1582
    %v1647 = vadd.f32 %v1070, %v1587
    %v1648 = vadd.f32 %v1073, %v1590
    %v1649 = vadd.f32 %v1078, %v1595
    %v1650 = vadd.f32 %v1081, %v1598
    %v1651 = vadd.f32 %v1086, %v1603
    %v1652 = vadd.f32 %v1089, %v1606
    %v1653 = vadd.f32 %v1094, %v1611
    %v1654 = vadd.f32 %v1097, %v1614
    %v1655 = vadd.f32 %v1102, %v1619
    %v1656 = vadd.f32 %v1105, %v1622
    %s1657 = scalar_lea.vmem [#allocation2], 48
    %v1658 = vld [vmem:[%s1657] sm:$0xff]
    %v1659 = vld [vmem:[%s1657 + $0x8] sm:$0xff]
    %v1660 = vlaneseq
    %v1661 = vshrl.u32 %v1660, 7
    %v1662 = vsub.s32 0, %v1661
    %v1663 = vrot.slane %v1658, %v1662
    %1665 = vbcast.lane.b32.xlu0 %v1663, 256
    %v1666 = vpop.permute.xlu0 %1665
    %s1668 = sor.u32 256, 8
    %1669 = vbcast.lane.b32.xlu0 %v1663, %s1668
    %v1670 = vpop.permute.xlu0 %1669
    %v1671 = vlaneseq
    %v1672 = vshrl.u32 %v1671, 7
    %v1673 = vsub.s32 1, %v1672
    %v1674 = vrot.slane %v1658, %v1673
    %1676 = vbcast.lane.b32.xlu0 %v1674, 256
    %v1677 = vpop.permute.xlu0 %1676
    %s1679 = sor.u32 256, 8
    %1680 = vbcast.lane.b32.xlu0 %v1674, %s1679
    %v1681 = vpop.permute.xlu0 %1680
    %v1682 = vlaneseq
    %v1683 = vshrl.u32 %v1682, 7
    %v1684 = vsub.s32 2, %v1683
    %v1685 = vrot.slane %v1658, %v1684
    %1687 = vbcast.lane.b32.xlu0 %v1685, 256
    %v1688 = vpop.permute.xlu0 %1687
    %s1690 = sor.u32 256, 8
    %1691 = vbcast.lane.b32.xlu0 %v1685, %s1690
    %v1692 = vpop.permute.xlu0 %1691
    %v1693 = vlaneseq
    %v1694 = vshrl.u32 %v1693, 7
    %v1695 = vsub.s32 3, %v1694
    %v1696 = vrot.slane %v1658, %v1695
    %1698 = vbcast.lane.b32.xlu0 %v1696, 256
    %v1699 = vpop.permute.xlu0 %1698
    %s1701 = sor.u32 256, 8
    %1702 = vbcast.lane.b32.xlu0 %v1696, %s1701
    %v1703 = vpop.permute.xlu0 %1702
    %v1704 = vlaneseq
    %v1705 = vshrl.u32 %v1704, 7
    %v1706 = vsub.s32 4, %v1705
    %v1707 = vrot.slane %v1658, %v1706
    %1709 = vbcast.lane.b32.xlu0 %v1707, 256
    %v1710 = vpop.permute.xlu0 %1709
    %s1712 = sor.u32 256, 8
    %1713 = vbcast.lane.b32.xlu0 %v1707, %s1712
    %v1714 = vpop.permute.xlu0 %1713
    %v1715 = vlaneseq
    %v1716 = vshrl.u32 %v1715, 7
    %v1717 = vsub.s32 5, %v1716
    %v1718 = vrot.slane %v1658, %v1717
    %1720 = vbcast.lane.b32.xlu0 %v1718, 256
    %v1721 = vpop.permute.xlu0 %1720
    %s1723 = sor.u32 256, 8
    %1724 = vbcast.lane.b32.xlu0 %v1718, %s1723
    %v1725 = vpop.permute.xlu0 %1724
    %v1726 = vlaneseq
    %v1727 = vshrl.u32 %v1726, 7
    %v1728 = vsub.s32 6, %v1727
    %v1729 = vrot.slane %v1658, %v1728
    %1731 = vbcast.lane.b32.xlu0 %v1729, 256
    %v1732 = vpop.permute.xlu0 %1731
    %s1734 = sor.u32 256, 8
    %1735 = vbcast.lane.b32.xlu0 %v1729, %s1734
    %v1736 = vpop.permute.xlu0 %1735
    %v1737 = vlaneseq
    %v1738 = vshrl.u32 %v1737, 7
    %v1739 = vsub.s32 7, %v1738
    %v1740 = vrot.slane %v1658, %v1739
    %1742 = vbcast.lane.b32.xlu0 %v1740, 256
    %v1743 = vpop.permute.xlu0 %1742
    %s1745 = sor.u32 256, 8
    %1746 = vbcast.lane.b32.xlu0 %v1740, %s1745
    %v1747 = vpop.permute.xlu0 %1746
    %v1748 = vlaneseq
    %v1749 = vshrl.u32 %v1748, 7
    %v1750 = vsub.s32 0, %v1749
    %v1751 = vrot.slane %v1659, %v1750
    %1753 = vbcast.lane.b32.xlu0 %v1751, 256
    %v1754 = vpop.permute.xlu0 %1753
    %s1756 = sor.u32 256, 8
    %1757 = vbcast.lane.b32.xlu0 %v1751, %s1756
    %v1758 = vpop.permute.xlu0 %1757
    %v1759 = vlaneseq
    %v1760 = vshrl.u32 %v1759, 7
    %v1761 = vsub.s32 1, %v1760
    %v1762 = vrot.slane %v1659, %v1761
    %1764 = vbcast.lane.b32.xlu0 %v1762, 256
    %v1765 = vpop.permute.xlu0 %1764
    %s1767 = sor.u32 256, 8
    %1768 = vbcast.lane.b32.xlu0 %v1762, %s1767
    %v1769 = vpop.permute.xlu0 %1768
    %v1770 = vlaneseq
    %v1771 = vshrl.u32 %v1770, 7
    %v1772 = vsub.s32 2, %v1771
    %v1773 = vrot.slane %v1659, %v1772
    %1775 = vbcast.lane.b32.xlu0 %v1773, 256
    %v1776 = vpop.permute.xlu0 %1775
    %s1778 = sor.u32 256, 8
    %1779 = vbcast.lane.b32.xlu0 %v1773, %s1778
    %v1780 = vpop.permute.xlu0 %1779
    %v1781 = vlaneseq
    %v1782 = vshrl.u32 %v1781, 7
    %v1783 = vsub.s32 3, %v1782
    %v1784 = vrot.slane %v1659, %v1783
    %1786 = vbcast.lane.b32.xlu0 %v1784, 256
    %v1787 = vpop.permute.xlu0 %1786
    %s1789 = sor.u32 256, 8
    %1790 = vbcast.lane.b32.xlu0 %v1784, %s1789
    %v1791 = vpop.permute.xlu0 %1790
    %v1792 = vlaneseq
    %v1793 = vshrl.u32 %v1792, 7
    %v1794 = vsub.s32 4, %v1793
    %v1795 = vrot.slane %v1659, %v1794
    %1797 = vbcast.lane.b32.xlu0 %v1795, 256
    %v1798 = vpop.permute.xlu0 %1797
    %s1800 = sor.u32 256, 8
    %1801 = vbcast.lane.b32.xlu0 %v1795, %s1800
    %v1802 = vpop.permute.xlu0 %1801
    %v1803 = vlaneseq
    %v1804 = vshrl.u32 %v1803, 7
    %v1805 = vsub.s32 5, %v1804
    %v1806 = vrot.slane %v1659, %v1805
    %1808 = vbcast.lane.b32.xlu0 %v1806, 256
    %v1809 = vpop.permute.xlu0 %1808
    %s1811 = sor.u32 256, 8
    %1812 = vbcast.lane.b32.xlu0 %v1806, %s1811
    %v1813 = vpop.permute.xlu0 %1812
    %v1814 = vlaneseq
    %v1815 = vshrl.u32 %v1814, 7
    %v1816 = vsub.s32 6, %v1815
    %v1817 = vrot.slane %v1659, %v1816
    %1819 = vbcast.lane.b32.xlu0 %v1817, 256
    %v1820 = vpop.permute.xlu0 %1819
    %s1822 = sor.u32 256, 8
    %1823 = vbcast.lane.b32.xlu0 %v1817, %s1822
    %v1824 = vpop.permute.xlu0 %1823
    %v1825 = vlaneseq
    %v1826 = vshrl.u32 %v1825, 7
    %v1827 = vsub.s32 7, %v1826
    %v1828 = vrot.slane %v1659, %v1827
    %1830 = vbcast.lane.b32.xlu0 %v1828, 256
    %v1831 = vpop.permute.xlu0 %1830
    %s1833 = sor.u32 256, 8
    %1834 = vbcast.lane.b32.xlu0 %v1828, %s1833
    %v1835 = vpop.permute.xlu0 %1834
    %vm1836 = vcmp.eq.s32.totalorder %v1666, %v75
    %vm1837 = vcmp.eq.s32.totalorder %v1670, %v75
    %vm1838 = vcmp.eq.s32.totalorder %v1677, %v75
    %vm1839 = vcmp.eq.s32.totalorder %v1681, %v75
    %vm1840 = vcmp.eq.s32.totalorder %v1688, %v75
    %vm1841 = vcmp.eq.s32.totalorder %v1692, %v75
    %vm1842 = vcmp.eq.s32.totalorder %v1699, %v75
    %vm1843 = vcmp.eq.s32.totalorder %v1703, %v75
    %vm1844 = vcmp.eq.s32.totalorder %v1710, %v75
    %vm1845 = vcmp.eq.s32.totalorder %v1714, %v75
    %vm1846 = vcmp.eq.s32.totalorder %v1721, %v75
    %vm1847 = vcmp.eq.s32.totalorder %v1725, %v75
    %vm1848 = vcmp.eq.s32.totalorder %v1732, %v75
    %vm1849 = vcmp.eq.s32.totalorder %v1736, %v75
    %vm1850 = vcmp.eq.s32.totalorder %v1743, %v75
    %vm1851 = vcmp.eq.s32.totalorder %v1747, %v75
    %vm1852 = vcmp.eq.s32.totalorder %v1754, %v75
    %vm1853 = vcmp.eq.s32.totalorder %v1758, %v75
    %vm1854 = vcmp.eq.s32.totalorder %v1765, %v75
    %vm1855 = vcmp.eq.s32.totalorder %v1769, %v75
    %vm1856 = vcmp.eq.s32.totalorder %v1776, %v75
    %vm1857 = vcmp.eq.s32.totalorder %v1780, %v75
    %vm1858 = vcmp.eq.s32.totalorder %v1787, %v75
    %vm1859 = vcmp.eq.s32.totalorder %v1791, %v75
    %vm1860 = vcmp.eq.s32.totalorder %v1798, %v75
    %vm1861 = vcmp.eq.s32.totalorder %v1802, %v75
    %vm1862 = vcmp.eq.s32.totalorder %v1809, %v75
    %vm1863 = vcmp.eq.s32.totalorder %v1813, %v75
    %vm1864 = vcmp.eq.s32.totalorder %v1820, %v75
    %vm1865 = vcmp.eq.s32.totalorder %v1824, %v75
    %vm1866 = vcmp.eq.s32.totalorder %v1831, %v75
    %vm1867 = vcmp.eq.s32.totalorder %v1835, %v75
    %v1868 = vsel %vm1836, 1, 0
    %v1869 = vsel %vm1837, 1, 0
    %v1870 = vsel %vm1838, 1, 0
    %v1871 = vsel %vm1839, 1, 0
    %v1872 = vsel %vm1840, 1, 0
    %v1873 = vsel %vm1841, 1, 0
    %v1874 = vsel %vm1842, 1, 0
    %v1875 = vsel %vm1843, 1, 0
    %v1876 = vsel %vm1844, 1, 0
    %v1877 = vsel %vm1845, 1, 0
    %v1878 = vsel %vm1846, 1, 0
    %v1879 = vsel %vm1847, 1, 0
    %v1880 = vsel %vm1848, 1, 0
    %v1881 = vsel %vm1849, 1, 0
    %v1882 = vsel %vm1850, 1, 0
    %v1883 = vsel %vm1851, 1, 0
    %v1884 = vsel %vm1852, 1, 0
    %v1885 = vsel %vm1853, 1, 0
    %v1886 = vsel %vm1854, 1, 0
    %v1887 = vsel %vm1855, 1, 0
    %v1888 = vsel %vm1856, 1, 0
    %v1889 = vsel %vm1857, 1, 0
    %v1890 = vsel %vm1858, 1, 0
    %v1891 = vsel %vm1859, 1, 0
    %v1892 = vsel %vm1860, 1, 0
    %v1893 = vsel %vm1861, 1, 0
    %v1894 = vsel %vm1862, 1, 0
    %v1895 = vsel %vm1863, 1, 0
    %v1896 = vsel %vm1864, 1, 0
    %v1897 = vsel %vm1865, 1, 0
    %v1898 = vsel %vm1866, 1, 0
    %v1899 = vsel %vm1867, 1, 0
    %v1900 = vcvt.s32.f32 %v1868
    %v1901 = vcvt.s32.f32 %v1869
    %v1902 = vcvt.s32.f32 %v1870
    %v1903 = vcvt.s32.f32 %v1871
    %v1904 = vcvt.s32.f32 %v1872
    %v1905 = vcvt.s32.f32 %v1873
    %v1906 = vcvt.s32.f32 %v1874
    %v1907 = vcvt.s32.f32 %v1875
    %v1908 = vcvt.s32.f32 %v1876
    %v1909 = vcvt.s32.f32 %v1877
    %v1910 = vcvt.s32.f32 %v1878
    %v1911 = vcvt.s32.f32 %v1879
    %v1912 = vcvt.s32.f32 %v1880
    %v1913 = vcvt.s32.f32 %v1881
    %v1914 = vcvt.s32.f32 %v1882
    %v1915 = vcvt.s32.f32 %v1883
    %v1916 = vcvt.s32.f32 %v1884
    %v1917 = vcvt.s32.f32 %v1885
    %v1918 = vcvt.s32.f32 %v1886
    %v1919 = vcvt.s32.f32 %v1887
    %v1920 = vcvt.s32.f32 %v1888
    %v1921 = vcvt.s32.f32 %v1889
    %v1922 = vcvt.s32.f32 %v1890
    %v1923 = vcvt.s32.f32 %v1891
    %v1924 = vcvt.s32.f32 %v1892
    %v1925 = vcvt.s32.f32 %v1893
    %v1926 = vcvt.s32.f32 %v1894
    %v1927 = vcvt.s32.f32 %v1895
    %v1928 = vcvt.s32.f32 %v1896
    %v1929 = vcvt.s32.f32 %v1897
    %v1930 = vcvt.s32.f32 %v1898
    %v1931 = vcvt.s32.f32 %v1899
    %v1932 = vpack.c.bf16 %v1901, %v1900
    %v1933 = vpack.c.bf16 %v1903, %v1902
    %v1934 = vpack.c.bf16 %v1905, %v1904
    %v1935 = vpack.c.bf16 %v1907, %v1906
    %v1936 = vpack.c.bf16 %v1909, %v1908
    %v1937 = vpack.c.bf16 %v1911, %v1910
    %v1938 = vpack.c.bf16 %v1913, %v1912
    %v1939 = vpack.c.bf16 %v1915, %v1914
    %v1940 = vpack.c.bf16 %v1917, %v1916
    %v1941 = vpack.c.bf16 %v1919, %v1918
    %v1942 = vpack.c.bf16 %v1921, %v1920
    %v1943 = vpack.c.bf16 %v1923, %v1922
    %v1944 = vpack.c.bf16 %v1925, %v1924
    %v1945 = vpack.c.bf16 %v1927, %v1926
    %v1946 = vpack.c.bf16 %v1929, %v1928
    %v1947 = vpack.c.bf16 %v1931, %v1930
    %s1948 = scalar_lea.vmem [#allocation5], 192
    %v1949 = vld [vmem:[%s1948] sm:$0xf]
    %v1950 = vld [vmem:[%s1948 + $0x4] sm:$0xf]
    %v1951 = vld [vmem:[%s1948 + $0x8] sm:$0xf]
    %v1952 = vld [vmem:[%s1948 + $0xc] sm:$0xf]
    %v1953 = vld [vmem:[%s1948 + $0x10] sm:$0xf]
    %v1954 = vld [vmem:[%s1948 + $0x14] sm:$0xf]
    %v1955 = vld [vmem:[%s1948 + $0x18] sm:$0xf]
    %v1956 = vld [vmem:[%s1948 + $0x1c] sm:$0xf]
    %v1957 = vld [vmem:[%s1948 + $0x20] sm:$0xf]
    %v1958 = vld [vmem:[%s1948 + $0x24] sm:$0xf]
    %v1959 = vld [vmem:[%s1948 + $0x28] sm:$0xf]
    %v1960 = vld [vmem:[%s1948 + $0x2c] sm:$0xf]
    %v1961 = vld [vmem:[%s1948 + $0x30] sm:$0xf]
    %v1962 = vld [vmem:[%s1948 + $0x34] sm:$0xf]
    %v1963 = vld [vmem:[%s1948 + $0x38] sm:$0xf]
    %v1964 = vld [vmem:[%s1948 + $0x3c] sm:$0xf]
    %v1981 = vunpack.c.l.b16 %v1949
    %v1982 = vunpack.c.l.b16 %v1950
    %v1983 = vunpack.c.l.b16 %v1951
    %v1984 = vunpack.c.l.b16 %v1952
    %v1985 = vunpack.c.l.b16 %v1953
    %v1986 = vunpack.c.l.b16 %v1954
    %v1987 = vunpack.c.l.b16 %v1955
    %v1988 = vunpack.c.l.b16 %v1956
    %v1989 = vunpack.c.l.b16 %v1957
    %v1990 = vunpack.c.l.b16 %v1958
    %v1991 = vunpack.c.l.b16 %v1959
    %v1992 = vunpack.c.l.b16 %v1960
    %v1993 = vunpack.c.l.b16 %v1961
    %v1994 = vunpack.c.l.b16 %v1962
    %v1995 = vunpack.c.l.b16 %v1963
    %v1996 = vunpack.c.l.b16 %v1964
    %v1997 = vpack.c.b16 %v1982, %v1981
    %v1998 = vpack.c.b16 %v1984, %v1983
    %v1999 = vpack.c.b16 %v1986, %v1985
    %v2000 = vpack.c.b16 %v1988, %v1987
    %v2001 = vpack.c.b16 %v1990, %v1989
    %v2002 = vpack.c.b16 %v1992, %v1991
    %v2003 = vpack.c.b16 %v1994, %v1993
    %v2004 = vpack.c.b16 %v1996, %v1995
    %2013 = vmatprep.subr.bf16.mxu0 0
    %2014 = vmatpush1.bf16.msra.mxu0 %v2004
    %2015 = vmatprep.subr.bf16.mxu0 0
    %2016 = vmatpush1.bf16.msra.mxu0 %v2003
    %2017 = vmatprep.subr.bf16.mxu0 0
    %2018 = vmatpush1.bf16.msra.mxu0 %v2002
    %2019 = vmatprep.subr.bf16.mxu0 0
    %2020 = vmatpush1.bf16.msra.mxu0 %v2001
    %2021 = vmatprep.subr.bf16.mxu0 0
    %2022 = vmatpush1.bf16.msra.mxu0 %v2000
    %2023 = vmatprep.subr.bf16.mxu0 0
    %2024 = vmatpush1.bf16.msra.mxu0 %v1999
    %2025 = vmatprep.subr.bf16.mxu0 0
    %2026 = vmatpush1.bf16.msra.mxu0 %v1998
    %2027 = vmatprep.subr.bf16.mxu0 0
    %2028 = vmatpush1.bf16.msra.mxu0 %v1997
    %2029 = vmatprep.subr.bf16.mxu0 0
    %2030 = vmatpush2.bf16.msra.mxu0 0
    %2031 = vmatprep.subr.bf16.mxu0 0
    %2032 = vmatpush2.bf16.msra.mxu0 0
    %2033 = vmatprep.subr.bf16.mxu0 0
    %2034 = vmatpush2.bf16.msra.mxu0 0
    %2035 = vmatprep.subr.bf16.mxu0 0
    %2036 = vmatpush2.bf16.msra.mxu0 0
    %2037 = vmatprep.subr.bf16.mxu0 0
    %2038 = vmatpush2.bf16.msra.mxu0 0
    %2039 = vmatprep.subr.bf16.mxu0 0
    %2040 = vmatpush2.bf16.msra.mxu0 0
    %2041 = vmatprep.subr.bf16.mxu0 0
    %2042 = vmatpush2.bf16.msra.mxu0 0
    %2043 = vmatprep.subr.bf16.mxu0 0
    %2044 = vmatpush2.bf16.msra.mxu0 0
    %2045 = vmatprep.mubr.bf16.mxu0 0
    %2046 = vmatmul.mubr.bf16.gmra.mxu0 %v1932
    %v2047 = vpop.f32.mrf.mxu0
    %v2048 = vadd.f32 0.0, %v2047
    %v2049 = vpop.f32.mrf.mxu0
    %v2050 = vpop.f32.mrf.mxu0
    %v2051 = vadd.f32 0.0, %v2050
    %v2052 = vpop.f32.mrf.mxu0
    %2053 = vmatprep.mubr.bf16.mxu0 0
    %2054 = vmatmul.mubr.bf16.gmra.mxu0 %v1933
    %v2055 = vpop.f32.mrf.mxu0
    %v2056 = vadd.f32 0.0, %v2055
    %v2057 = vpop.f32.mrf.mxu0
    %v2058 = vpop.f32.mrf.mxu0
    %v2059 = vadd.f32 0.0, %v2058
    %v2060 = vpop.f32.mrf.mxu0
    %2061 = vmatprep.mubr.bf16.mxu0 0
    %2062 = vmatmul.mubr.bf16.gmra.mxu0 %v1934
    %v2063 = vpop.f32.mrf.mxu0
    %v2064 = vadd.f32 0.0, %v2063
    %v2065 = vpop.f32.mrf.mxu0
    %v2066 = vpop.f32.mrf.mxu0
    %v2067 = vadd.f32 0.0, %v2066
    %v2068 = vpop.f32.mrf.mxu0
    %2069 = vmatprep.mubr.bf16.mxu0 0
    %2070 = vmatmul.mubr.bf16.gmra.mxu0 %v1935
    %v2071 = vpop.f32.mrf.mxu0
    %v2072 = vadd.f32 0.0, %v2071
    %v2073 = vpop.f32.mrf.mxu0
    %v2074 = vpop.f32.mrf.mxu0
    %v2075 = vadd.f32 0.0, %v2074
    %v2076 = vpop.f32.mrf.mxu0
    %2077 = vmatprep.mubr.bf16.mxu0 0
    %2078 = vmatmul.mubr.bf16.gmra.mxu0 %v1936
    %v2079 = vpop.f32.mrf.mxu0
    %v2080 = vadd.f32 0.0, %v2079
    %v2081 = vpop.f32.mrf.mxu0
    %v2082 = vpop.f32.mrf.mxu0
    %v2083 = vadd.f32 0.0, %v2082
    %v2084 = vpop.f32.mrf.mxu0
    %2085 = vmatprep.mubr.bf16.mxu0 0
    %2086 = vmatmul.mubr.bf16.gmra.mxu0 %v1937
    %v2087 = vpop.f32.mrf.mxu0
    %v2088 = vadd.f32 0.0, %v2087
    %v2089 = vpop.f32.mrf.mxu0
    %v2090 = vpop.f32.mrf.mxu0
    %v2091 = vadd.f32 0.0, %v2090
    %v2092 = vpop.f32.mrf.mxu0
    %2093 = vmatprep.mubr.bf16.mxu0 0
    %2094 = vmatmul.mubr.bf16.gmra.mxu0 %v1938
    %v2095 = vpop.f32.mrf.mxu0
    %v2096 = vadd.f32 0.0, %v2095
    %v2097 = vpop.f32.mrf.mxu0
    %v2098 = vpop.f32.mrf.mxu0
    %v2099 = vadd.f32 0.0, %v2098
    %v2100 = vpop.f32.mrf.mxu0
    %2101 = vmatprep.mubr.bf16.mxu0 0
    %2102 = vmatmul.mubr.bf16.gmra.mxu0 %v1939
    %v2103 = vpop.f32.mrf.mxu0
    %v2104 = vadd.f32 0.0, %v2103
    %v2105 = vpop.f32.mrf.mxu0
    %v2106 = vpop.f32.mrf.mxu0
    %v2107 = vadd.f32 0.0, %v2106
    %v2108 = vpop.f32.mrf.mxu0
    %2109 = vmatprep.mubr.bf16.mxu0 0
    %2110 = vmatmul.mubr.bf16.gmra.mxu0 %v1940
    %v2111 = vpop.f32.mrf.mxu0
    %v2112 = vadd.f32 0.0, %v2111
    %v2113 = vpop.f32.mrf.mxu0
    %v2114 = vpop.f32.mrf.mxu0
    %v2115 = vadd.f32 0.0, %v2114
    %v2116 = vpop.f32.mrf.mxu0
    %2117 = vmatprep.mubr.bf16.mxu0 0
    %2118 = vmatmul.mubr.bf16.gmra.mxu0 %v1941
    %v2119 = vpop.f32.mrf.mxu0
    %v2120 = vadd.f32 0.0, %v2119
    %v2121 = vpop.f32.mrf.mxu0
    %v2122 = vpop.f32.mrf.mxu0
    %v2123 = vadd.f32 0.0, %v2122
    %v2124 = vpop.f32.mrf.mxu0
    %2125 = vmatprep.mubr.bf16.mxu0 0
    %2126 = vmatmul.mubr.bf16.gmra.mxu0 %v1942
    %v2127 = vpop.f32.mrf.mxu0
    %v2128 = vadd.f32 0.0, %v2127
    %v2129 = vpop.f32.mrf.mxu0
    %v2130 = vpop.f32.mrf.mxu0
    %v2131 = vadd.f32 0.0, %v2130
    %v2132 = vpop.f32.mrf.mxu0
    %2133 = vmatprep.mubr.bf16.mxu0 0
    %2134 = vmatmul.mubr.bf16.gmra.mxu0 %v1943
    %v2135 = vpop.f32.mrf.mxu0
    %v2136 = vadd.f32 0.0, %v2135
    %v2137 = vpop.f32.mrf.mxu0
    %v2138 = vpop.f32.mrf.mxu0
    %v2139 = vadd.f32 0.0, %v2138
    %v2140 = vpop.f32.mrf.mxu0
    %2141 = vmatprep.mubr.bf16.mxu0 0
    %2142 = vmatmul.mubr.bf16.gmra.mxu0 %v1944
    %v2143 = vpop.f32.mrf.mxu0
    %v2144 = vadd.f32 0.0, %v2143
    %v2145 = vpop.f32.mrf.mxu0
    %v2146 = vpop.f32.mrf.mxu0
    %v2147 = vadd.f32 0.0, %v2146
    %v2148 = vpop.f32.mrf.mxu0
    %2149 = vmatprep.mubr.bf16.mxu0 0
    %2150 = vmatmul.mubr.bf16.gmra.mxu0 %v1945
    %v2151 = vpop.f32.mrf.mxu0
    %v2152 = vadd.f32 0.0, %v2151
    %v2153 = vpop.f32.mrf.mxu0
    %v2154 = vpop.f32.mrf.mxu0
    %v2155 = vadd.f32 0.0, %v2154
    %v2156 = vpop.f32.mrf.mxu0
    %2157 = vmatprep.mubr.bf16.mxu0 0
    %2158 = vmatmul.mubr.bf16.gmra.mxu0 %v1946
    %v2159 = vpop.f32.mrf.mxu0
    %v2160 = vadd.f32 0.0, %v2159
    %v2161 = vpop.f32.mrf.mxu0
    %v2162 = vpop.f32.mrf.mxu0
    %v2163 = vadd.f32 0.0, %v2162
    %v2164 = vpop.f32.mrf.mxu0
    %2165 = vmatprep.mubr.bf16.mxu0 0
    %2166 = vmatmul.mubr.bf16.gmra.mxu0 %v1947
    %v2167 = vpop.f32.mrf.mxu0
    %v2168 = vadd.f32 0.0, %v2167
    %v2169 = vpop.f32.mrf.mxu0
    %v2170 = vpop.f32.mrf.mxu0
    %v2171 = vadd.f32 0.0, %v2170
    %v2172 = vpop.f32.mrf.mxu0
    %2173 = vdwg.mxu0
    %v2174 = vadd.f32 %v1625, %v2048
    %v2175 = vadd.f32 %v1626, %v2051
    %v2176 = vadd.f32 %v1627, %v2056
    %v2177 = vadd.f32 %v1628, %v2059
    %v2178 = vadd.f32 %v1629, %v2064
    %v2179 = vadd.f32 %v1630, %v2067
    %v2180 = vadd.f32 %v1631, %v2072
    %v2181 = vadd.f32 %v1632, %v2075
    %v2182 = vadd.f32 %v1633, %v2080
    %v2183 = vadd.f32 %v1634, %v2083
    %v2184 = vadd.f32 %v1635, %v2088
    %v2185 = vadd.f32 %v1636, %v2091
    %v2186 = vadd.f32 %v1637, %v2096
    %v2187 = vadd.f32 %v1638, %v2099
    %v2188 = vadd.f32 %v1639, %v2104
    %v2189 = vadd.f32 %v1640, %v2107
    %v2190 = vadd.f32 %v1641, %v2112
    %v2191 = vadd.f32 %v1642, %v2115
    %v2192 = vadd.f32 %v1643, %v2120
    %v2193 = vadd.f32 %v1644, %v2123
    %v2194 = vadd.f32 %v1645, %v2128
    %v2195 = vadd.f32 %v1646, %v2131
    %v2196 = vadd.f32 %v1647, %v2136
    %v2197 = vadd.f32 %v1648, %v2139
    %v2198 = vadd.f32 %v1649, %v2144
    %v2199 = vadd.f32 %v1650, %v2147
    %v2200 = vadd.f32 %v1651, %v2152
    %v2201 = vadd.f32 %v1652, %v2155
    %v2202 = vadd.f32 %v1653, %v2160
    %v2203 = vadd.f32 %v1654, %v2163
    %v2204 = vadd.f32 %v1655, %v2168
    %v2205 = vadd.f32 %v1656, %v2171
    %s2206 = scalar_lea.vmem [#allocation2], 64
    %v2207 = vld [vmem:[%s2206] sm:$0xff]
    %v2208 = vld [vmem:[%s2206 + $0x8] sm:$0xff]
    %v2209 = vlaneseq
    %v2210 = vshrl.u32 %v2209, 7
    %v2211 = vsub.s32 0, %v2210
    %v2212 = vrot.slane %v2207, %v2211
    %2214 = vbcast.lane.b32.xlu0 %v2212, 256
    %v2215 = vpop.permute.xlu0 %2214
    %s2217 = sor.u32 256, 8
    %2218 = vbcast.lane.b32.xlu0 %v2212, %s2217
    %v2219 = vpop.permute.xlu0 %2218
    %v2220 = vlaneseq
    %v2221 = vshrl.u32 %v2220, 7
    %v2222 = vsub.s32 1, %v2221
    %v2223 = vrot.slane %v2207, %v2222
    %2225 = vbcast.lane.b32.xlu0 %v2223, 256
    %v2226 = vpop.permute.xlu0 %2225
    %s2228 = sor.u32 256, 8
    %2229 = vbcast.lane.b32.xlu0 %v2223, %s2228
    %v2230 = vpop.permute.xlu0 %2229
    %v2231 = vlaneseq
    %v2232 = vshrl.u32 %v2231, 7
    %v2233 = vsub.s32 2, %v2232
    %v2234 = vrot.slane %v2207, %v2233
    %2236 = vbcast.lane.b32.xlu0 %v2234, 256
    %v2237 = vpop.permute.xlu0 %2236
    %s2239 = sor.u32 256, 8
    %2240 = vbcast.lane.b32.xlu0 %v2234, %s2239
    %v2241 = vpop.permute.xlu0 %2240
    %v2242 = vlaneseq
    %v2243 = vshrl.u32 %v2242, 7
    %v2244 = vsub.s32 3, %v2243
    %v2245 = vrot.slane %v2207, %v2244
    %2247 = vbcast.lane.b32.xlu0 %v2245, 256
    %v2248 = vpop.permute.xlu0 %2247
    %s2250 = sor.u32 256, 8
    %2251 = vbcast.lane.b32.xlu0 %v2245, %s2250
    %v2252 = vpop.permute.xlu0 %2251
    %v2253 = vlaneseq
    %v2254 = vshrl.u32 %v2253, 7
    %v2255 = vsub.s32 4, %v2254
    %v2256 = vrot.slane %v2207, %v2255
    %2258 = vbcast.lane.b32.xlu0 %v2256, 256
    %v2259 = vpop.permute.xlu0 %2258
    %s2261 = sor.u32 256, 8
    %2262 = vbcast.lane.b32.xlu0 %v2256, %s2261
    %v2263 = vpop.permute.xlu0 %2262
    %v2264 = vlaneseq
    %v2265 = vshrl.u32 %v2264, 7
    %v2266 = vsub.s32 5, %v2265
    %v2267 = vrot.slane %v2207, %v2266
    %2269 = vbcast.lane.b32.xlu0 %v2267, 256
    %v2270 = vpop.permute.xlu0 %2269
    %s2272 = sor.u32 256, 8
    %2273 = vbcast.lane.b32.xlu0 %v2267, %s2272
    %v2274 = vpop.permute.xlu0 %2273
    %v2275 = vlaneseq
    %v2276 = vshrl.u32 %v2275, 7
    %v2277 = vsub.s32 6, %v2276
    %v2278 = vrot.slane %v2207, %v2277
    %2280 = vbcast.lane.b32.xlu0 %v2278, 256
    %v2281 = vpop.permute.xlu0 %2280
    %s2283 = sor.u32 256, 8
    %2284 = vbcast.lane.b32.xlu0 %v2278, %s2283
    %v2285 = vpop.permute.xlu0 %2284
    %v2286 = vlaneseq
    %v2287 = vshrl.u32 %v2286, 7
    %v2288 = vsub.s32 7, %v2287
    %v2289 = vrot.slane %v2207, %v2288
    %2291 = vbcast.lane.b32.xlu0 %v2289, 256
    %v2292 = vpop.permute.xlu0 %2291
    %s2294 = sor.u32 256, 8
    %2295 = vbcast.lane.b32.xlu0 %v2289, %s2294
    %v2296 = vpop.permute.xlu0 %2295
    %v2297 = vlaneseq
    %v2298 = vshrl.u32 %v2297, 7
    %v2299 = vsub.s32 0, %v2298
    %v2300 = vrot.slane %v2208, %v2299
    %2302 = vbcast.lane.b32.xlu0 %v2300, 256
    %v2303 = vpop.permute.xlu0 %2302
    %s2305 = sor.u32 256, 8
    %2306 = vbcast.lane.b32.xlu0 %v2300, %s2305
    %v2307 = vpop.permute.xlu0 %2306
    %v2308 = vlaneseq
    %v2309 = vshrl.u32 %v2308, 7
    %v2310 = vsub.s32 1, %v2309
    %v2311 = vrot.slane %v2208, %v2310
    %2313 = vbcast.lane.b32.xlu0 %v2311, 256
    %v2314 = vpop.permute.xlu0 %2313
    %s2316 = sor.u32 256, 8
    %2317 = vbcast.lane.b32.xlu0 %v2311, %s2316
    %v2318 = vpop.permute.xlu0 %2317
    %v2319 = vlaneseq
    %v2320 = vshrl.u32 %v2319, 7
    %v2321 = vsub.s32 2, %v2320
    %v2322 = vrot.slane %v2208, %v2321
    %2324 = vbcast.lane.b32.xlu0 %v2322, 256
    %v2325 = vpop.permute.xlu0 %2324
    %s2327 = sor.u32 256, 8
    %2328 = vbcast.lane.b32.xlu0 %v2322, %s2327
    %v2329 = vpop.permute.xlu0 %2328
    %v2330 = vlaneseq
    %v2331 = vshrl.u32 %v2330, 7
    %v2332 = vsub.s32 3, %v2331
    %v2333 = vrot.slane %v2208, %v2332
    %2335 = vbcast.lane.b32.xlu0 %v2333, 256
    %v2336 = vpop.permute.xlu0 %2335
    %s2338 = sor.u32 256, 8
    %2339 = vbcast.lane.b32.xlu0 %v2333, %s2338
    %v2340 = vpop.permute.xlu0 %2339
    %v2341 = vlaneseq
    %v2342 = vshrl.u32 %v2341, 7
    %v2343 = vsub.s32 4, %v2342
    %v2344 = vrot.slane %v2208, %v2343
    %2346 = vbcast.lane.b32.xlu0 %v2344, 256
    %v2347 = vpop.permute.xlu0 %2346
    %s2349 = sor.u32 256, 8
    %2350 = vbcast.lane.b32.xlu0 %v2344, %s2349
    %v2351 = vpop.permute.xlu0 %2350
    %v2352 = vlaneseq
    %v2353 = vshrl.u32 %v2352, 7
    %v2354 = vsub.s32 5, %v2353
    %v2355 = vrot.slane %v2208, %v2354
    %2357 = vbcast.lane.b32.xlu0 %v2355, 256
    %v2358 = vpop.permute.xlu0 %2357
    %s2360 = sor.u32 256, 8
    %2361 = vbcast.lane.b32.xlu0 %v2355, %s2360
    %v2362 = vpop.permute.xlu0 %2361
    %v2363 = vlaneseq
    %v2364 = vshrl.u32 %v2363, 7
    %v2365 = vsub.s32 6, %v2364
    %v2366 = vrot.slane %v2208, %v2365
    %2368 = vbcast.lane.b32.xlu0 %v2366, 256
    %v2369 = vpop.permute.xlu0 %2368
    %s2371 = sor.u32 256, 8
    %2372 = vbcast.lane.b32.xlu0 %v2366, %s2371
    %v2373 = vpop.permute.xlu0 %2372
    %v2374 = vlaneseq
    %v2375 = vshrl.u32 %v2374, 7
    %v2376 = vsub.s32 7, %v2375
    %v2377 = vrot.slane %v2208, %v2376
    %2379 = vbcast.lane.b32.xlu0 %v2377, 256
    %v2380 = vpop.permute.xlu0 %2379
    %s2382 = sor.u32 256, 8
    %2383 = vbcast.lane.b32.xlu0 %v2377, %s2382
    %v2384 = vpop.permute.xlu0 %2383
    %vm2385 = vcmp.eq.s32.totalorder %v2215, %v75
    %vm2386 = vcmp.eq.s32.totalorder %v2219, %v75
    %vm2387 = vcmp.eq.s32.totalorder %v2226, %v75
    %vm2388 = vcmp.eq.s32.totalorder %v2230, %v75
    %vm2389 = vcmp.eq.s32.totalorder %v2237, %v75
    %vm2390 = vcmp.eq.s32.totalorder %v2241, %v75
    %vm2391 = vcmp.eq.s32.totalorder %v2248, %v75
    %vm2392 = vcmp.eq.s32.totalorder %v2252, %v75
    %vm2393 = vcmp.eq.s32.totalorder %v2259, %v75
    %vm2394 = vcmp.eq.s32.totalorder %v2263, %v75
    %vm2395 = vcmp.eq.s32.totalorder %v2270, %v75
    %vm2396 = vcmp.eq.s32.totalorder %v2274, %v75
    %vm2397 = vcmp.eq.s32.totalorder %v2281, %v75
    %vm2398 = vcmp.eq.s32.totalorder %v2285, %v75
    %vm2399 = vcmp.eq.s32.totalorder %v2292, %v75
    %vm2400 = vcmp.eq.s32.totalorder %v2296, %v75
    %vm2401 = vcmp.eq.s32.totalorder %v2303, %v75
    %vm2402 = vcmp.eq.s32.totalorder %v2307, %v75
    %vm2403 = vcmp.eq.s32.totalorder %v2314, %v75
    %vm2404 = vcmp.eq.s32.totalorder %v2318, %v75
    %vm2405 = vcmp.eq.s32.totalorder %v2325, %v75
    %vm2406 = vcmp.eq.s32.totalorder %v2329, %v75
    %vm2407 = vcmp.eq.s32.totalorder %v2336, %v75
    %vm2408 = vcmp.eq.s32.totalorder %v2340, %v75
    %vm2409 = vcmp.eq.s32.totalorder %v2347, %v75
    %vm2410 = vcmp.eq.s32.totalorder %v2351, %v75
    %vm2411 = vcmp.eq.s32.totalorder %v2358, %v75
    %vm2412 = vcmp.eq.s32.totalorder %v2362, %v75
    %vm2413 = vcmp.eq.s32.totalorder %v2369, %v75
    %vm2414 = vcmp.eq.s32.totalorder %v2373, %v75
    %vm2415 = vcmp.eq.s32.totalorder %v2380, %v75
    %vm2416 = vcmp.eq.s32.totalorder %v2384, %v75
    %v2417 = vsel %vm2385, 1, 0
    %v2418 = vsel %vm2386, 1, 0
    %v2419 = vsel %vm2387, 1, 0
    %v2420 = vsel %vm2388, 1, 0
    %v2421 = vsel %vm2389, 1, 0
    %v2422 = vsel %vm2390, 1, 0
    %v2423 = vsel %vm2391, 1, 0
    %v2424 = vsel %vm2392, 1, 0
    %v2425 = vsel %vm2393, 1, 0
    %v2426 = vsel %vm2394, 1, 0
    %v2427 = vsel %vm2395, 1, 0
    %v2428 = vsel %vm2396, 1, 0
    %v2429 = vsel %vm2397, 1, 0
    %v2430 = vsel %vm2398, 1, 0
    %v2431 = vsel %vm2399, 1, 0
    %v2432 = vsel %vm2400, 1, 0
    %v2433 = vsel %vm2401, 1, 0
    %v2434 = vsel %vm2402, 1, 0
    %v2435 = vsel %vm2403, 1, 0
    %v2436 = vsel %vm2404, 1, 0
    %v2437 = vsel %vm2405, 1, 0
    %v2438 = vsel %vm2406, 1, 0
    %v2439 = vsel %vm2407, 1, 0
    %v2440 = vsel %vm2408, 1, 0
    %v2441 = vsel %vm2409, 1, 0
    %v2442 = vsel %vm2410, 1, 0
    %v2443 = vsel %vm2411, 1, 0
    %v2444 = vsel %vm2412, 1, 0
    %v2445 = vsel %vm2413, 1, 0
    %v2446 = vsel %vm2414, 1, 0
    %v2447 = vsel %vm2415, 1, 0
    %v2448 = vsel %vm2416, 1, 0
    %v2449 = vcvt.s32.f32 %v2417
    %v2450 = vcvt.s32.f32 %v2418
    %v2451 = vcvt.s32.f32 %v2419
    %v2452 = vcvt.s32.f32 %v2420
    %v2453 = vcvt.s32.f32 %v2421
    %v2454 = vcvt.s32.f32 %v2422
    %v2455 = vcvt.s32.f32 %v2423
    %v2456 = vcvt.s32.f32 %v2424
    %v2457 = vcvt.s32.f32 %v2425
    %v2458 = vcvt.s32.f32 %v2426
    %v2459 = vcvt.s32.f32 %v2427
    %v2460 = vcvt.s32.f32 %v2428
    %v2461 = vcvt.s32.f32 %v2429
    %v2462 = vcvt.s32.f32 %v2430
    %v2463 = vcvt.s32.f32 %v2431
    %v2464 = vcvt.s32.f32 %v2432
    %v2465 = vcvt.s32.f32 %v2433
    %v2466 = vcvt.s32.f32 %v2434
    %v2467 = vcvt.s32.f32 %v2435
    %v2468 = vcvt.s32.f32 %v2436
    %v2469 = vcvt.s32.f32 %v2437
    %v2470 = vcvt.s32.f32 %v2438
    %v2471 = vcvt.s32.f32 %v2439
    %v2472 = vcvt.s32.f32 %v2440
    %v2473 = vcvt.s32.f32 %v2441
    %v2474 = vcvt.s32.f32 %v2442
    %v2475 = vcvt.s32.f32 %v2443
    %v2476 = vcvt.s32.f32 %v2444
    %v2477 = vcvt.s32.f32 %v2445
    %v2478 = vcvt.s32.f32 %v2446
    %v2479 = vcvt.s32.f32 %v2447
    %v2480 = vcvt.s32.f32 %v2448
    %v2481 = vpack.c.bf16 %v2450, %v2449
    %v2482 = vpack.c.bf16 %v2452, %v2451
    %v2483 = vpack.c.bf16 %v2454, %v2453
    %v2484 = vpack.c.bf16 %v2456, %v2455
    %v2485 = vpack.c.bf16 %v2458, %v2457
    %v2486 = vpack.c.bf16 %v2460, %v2459
    %v2487 = vpack.c.bf16 %v2462, %v2461
    %v2488 = vpack.c.bf16 %v2464, %v2463
    %v2489 = vpack.c.bf16 %v2466, %v2465
    %v2490 = vpack.c.bf16 %v2468, %v2467
    %v2491 = vpack.c.bf16 %v2470, %v2469
    %v2492 = vpack.c.bf16 %v2472, %v2471
    %v2493 = vpack.c.bf16 %v2474, %v2473
    %v2494 = vpack.c.bf16 %v2476, %v2475
    %v2495 = vpack.c.bf16 %v2478, %v2477
    %v2496 = vpack.c.bf16 %v2480, %v2479
    %s2497 = scalar_lea.vmem [#allocation5], 256
    %v2498 = vld [vmem:[%s2497] sm:$0xf]
    %v2499 = vld [vmem:[%s2497 + $0x4] sm:$0xf]
    %v2500 = vld [vmem:[%s2497 + $0x8] sm:$0xf]
    %v2501 = vld [vmem:[%s2497 + $0xc] sm:$0xf]
    %v2502 = vld [vmem:[%s2497 + $0x10] sm:$0xf]
    %v2503 = vld [vmem:[%s2497 + $0x14] sm:$0xf]
    %v2504 = vld [vmem:[%s2497 + $0x18] sm:$0xf]
    %v2505 = vld [vmem:[%s2497 + $0x1c] sm:$0xf]
    %v2506 = vld [vmem:[%s2497 + $0x20] sm:$0xf]
    %v2507 = vld [vmem:[%s2497 + $0x24] sm:$0xf]
    %v2508 = vld [vmem:[%s2497 + $0x28] sm:$0xf]
    %v2509 = vld [vmem:[%s2497 + $0x2c] sm:$0xf]
    %v2510 = vld [vmem:[%s2497 + $0x30] sm:$0xf]
    %v2511 = vld [vmem:[%s2497 + $0x34] sm:$0xf]
    %v2512 = vld [vmem:[%s2497 + $0x38] sm:$0xf]
    %v2513 = vld [vmem:[%s2497 + $0x3c] sm:$0xf]
    %v2530 = vunpack.c.l.b16 %v2498
    %v2531 = vunpack.c.l.b16 %v2499
    %v2532 = vunpack.c.l.b16 %v2500
    %v2533 = vunpack.c.l.b16 %v2501
    %v2534 = vunpack.c.l.b16 %v2502
    %v2535 = vunpack.c.l.b16 %v2503
    %v2536 = vunpack.c.l.b16 %v2504
    %v2537 = vunpack.c.l.b16 %v2505
    %v2538 = vunpack.c.l.b16 %v2506
    %v2539 = vunpack.c.l.b16 %v2507
    %v2540 = vunpack.c.l.b16 %v2508
    %v2541 = vunpack.c.l.b16 %v2509
    %v2542 = vunpack.c.l.b16 %v2510
    %v2543 = vunpack.c.l.b16 %v2511
    %v2544 = vunpack.c.l.b16 %v2512
    %v2545 = vunpack.c.l.b16 %v2513
    %v2546 = vpack.c.b16 %v2531, %v2530
    %v2547 = vpack.c.b16 %v2533, %v2532
    %v2548 = vpack.c.b16 %v2535, %v2534
    %v2549 = vpack.c.b16 %v2537, %v2536
    %v2550 = vpack.c.b16 %v2539, %v2538
    %v2551 = vpack.c.b16 %v2541, %v2540
    %v2552 = vpack.c.b16 %v2543, %v2542
    %v2553 = vpack.c.b16 %v2545, %v2544
    %2562 = vmatprep.subr.bf16.mxu0 0
    %2563 = vmatpush1.bf16.msra.mxu0 %v2553
    %2564 = vmatprep.subr.bf16.mxu0 0
    %2565 = vmatpush1.bf16.msra.mxu0 %v2552
    %2566 = vmatprep.subr.bf16.mxu0 0
    %2567 = vmatpush1.bf16.msra.mxu0 %v2551
    %2568 = vmatprep.subr.bf16.mxu0 0
    %2569 = vmatpush1.bf16.msra.mxu0 %v2550
    %2570 = vmatprep.subr.bf16.mxu0 0
    %2571 = vmatpush1.bf16.msra.mxu0 %v2549
    %2572 = vmatprep.subr.bf16.mxu0 0
    %2573 = vmatpush1.bf16.msra.mxu0 %v2548
    %2574 = vmatprep.subr.bf16.mxu0 0
    %2575 = vmatpush1.bf16.msra.mxu0 %v2547
    %2576 = vmatprep.subr.bf16.mxu0 0
    %2577 = vmatpush1.bf16.msra.mxu0 %v2546
    %2578 = vmatprep.subr.bf16.mxu0 0
    %2579 = vmatpush2.bf16.msra.mxu0 0
    %2580 = vmatprep.subr.bf16.mxu0 0
    %2581 = vmatpush2.bf16.msra.mxu0 0
    %2582 = vmatprep.subr.bf16.mxu0 0
    %2583 = vmatpush2.bf16.msra.mxu0 0
    %2584 = vmatprep.subr.bf16.mxu0 0
    %2585 = vmatpush2.bf16.msra.mxu0 0
    %2586 = vmatprep.subr.bf16.mxu0 0
    %2587 = vmatpush2.bf16.msra.mxu0 0
    %2588 = vmatprep.subr.bf16.mxu0 0
    %2589 = vmatpush2.bf16.msra.mxu0 0
    %2590 = vmatprep.subr.bf16.mxu0 0
    %2591 = vmatpush2.bf16.msra.mxu0 0
    %2592 = vmatprep.subr.bf16.mxu0 0
    %2593 = vmatpush2.bf16.msra.mxu0 0
    %2594 = vmatprep.mubr.bf16.mxu0 0
    %2595 = vmatmul.mubr.bf16.gmra.mxu0 %v2481
    %v2596 = vpop.f32.mrf.mxu0
    %v2597 = vadd.f32 0.0, %v2596
    %v2598 = vpop.f32.mrf.mxu0
    %v2599 = vpop.f32.mrf.mxu0
    %v2600 = vadd.f32 0.0, %v2599
    %v2601 = vpop.f32.mrf.mxu0
    %2602 = vmatprep.mubr.bf16.mxu0 0
    %2603 = vmatmul.mubr.bf16.gmra.mxu0 %v2482
    %v2604 = vpop.f32.mrf.mxu0
    %v2605 = vadd.f32 0.0, %v2604
    %v2606 = vpop.f32.mrf.mxu0
    %v2607 = vpop.f32.mrf.mxu0
    %v2608 = vadd.f32 0.0, %v2607
    %v2609 = vpop.f32.mrf.mxu0
    %2610 = vmatprep.mubr.bf16.mxu0 0
    %2611 = vmatmul.mubr.bf16.gmra.mxu0 %v2483
    %v2612 = vpop.f32.mrf.mxu0
    %v2613 = vadd.f32 0.0, %v2612
    %v2614 = vpop.f32.mrf.mxu0
    %v2615 = vpop.f32.mrf.mxu0
    %v2616 = vadd.f32 0.0, %v2615
    %v2617 = vpop.f32.mrf.mxu0
    %2618 = vmatprep.mubr.bf16.mxu0 0
    %2619 = vmatmul.mubr.bf16.gmra.mxu0 %v2484
    %v2620 = vpop.f32.mrf.mxu0
    %v2621 = vadd.f32 0.0, %v2620
    %v2622 = vpop.f32.mrf.mxu0
    %v2623 = vpop.f32.mrf.mxu0
    %v2624 = vadd.f32 0.0, %v2623
    %v2625 = vpop.f32.mrf.mxu0
    %2626 = vmatprep.mubr.bf16.mxu0 0
    %2627 = vmatmul.mubr.bf16.gmra.mxu0 %v2485
    %v2628 = vpop.f32.mrf.mxu0
    %v2629 = vadd.f32 0.0, %v2628
    %v2630 = vpop.f32.mrf.mxu0
    %v2631 = vpop.f32.mrf.mxu0
    %v2632 = vadd.f32 0.0, %v2631
    %v2633 = vpop.f32.mrf.mxu0
    %2634 = vmatprep.mubr.bf16.mxu0 0
    %2635 = vmatmul.mubr.bf16.gmra.mxu0 %v2486
    %v2636 = vpop.f32.mrf.mxu0
    %v2637 = vadd.f32 0.0, %v2636
    %v2638 = vpop.f32.mrf.mxu0
    %v2639 = vpop.f32.mrf.mxu0
    %v2640 = vadd.f32 0.0, %v2639
    %v2641 = vpop.f32.mrf.mxu0
    %2642 = vmatprep.mubr.bf16.mxu0 0
    %2643 = vmatmul.mubr.bf16.gmra.mxu0 %v2487
    %v2644 = vpop.f32.mrf.mxu0
    %v2645 = vadd.f32 0.0, %v2644
    %v2646 = vpop.f32.mrf.mxu0
    %v2647 = vpop.f32.mrf.mxu0
    %v2648 = vadd.f32 0.0, %v2647
    %v2649 = vpop.f32.mrf.mxu0
    %2650 = vmatprep.mubr.bf16.mxu0 0
    %2651 = vmatmul.mubr.bf16.gmra.mxu0 %v2488
    %v2652 = vpop.f32.mrf.mxu0
    %v2653 = vadd.f32 0.0, %v2652
    %v2654 = vpop.f32.mrf.mxu0
    %v2655 = vpop.f32.mrf.mxu0
    %v2656 = vadd.f32 0.0, %v2655
    %v2657 = vpop.f32.mrf.mxu0
    %2658 = vmatprep.mubr.bf16.mxu0 0
    %2659 = vmatmul.mubr.bf16.gmra.mxu0 %v2489
    %v2660 = vpop.f32.mrf.mxu0
    %v2661 = vadd.f32 0.0, %v2660
    %v2662 = vpop.f32.mrf.mxu0
    %v2663 = vpop.f32.mrf.mxu0
    %v2664 = vadd.f32 0.0, %v2663
    %v2665 = vpop.f32.mrf.mxu0
    %2666 = vmatprep.mubr.bf16.mxu0 0
    %2667 = vmatmul.mubr.bf16.gmra.mxu0 %v2490
    %v2668 = vpop.f32.mrf.mxu0
    %v2669 = vadd.f32 0.0, %v2668
    %v2670 = vpop.f32.mrf.mxu0
    %v2671 = vpop.f32.mrf.mxu0
    %v2672 = vadd.f32 0.0, %v2671
    %v2673 = vpop.f32.mrf.mxu0
    %2674 = vmatprep.mubr.bf16.mxu0 0
    %2675 = vmatmul.mubr.bf16.gmra.mxu0 %v2491
    %v2676 = vpop.f32.mrf.mxu0
    %v2677 = vadd.f32 0.0, %v2676
    %v2678 = vpop.f32.mrf.mxu0
    %v2679 = vpop.f32.mrf.mxu0
    %v2680 = vadd.f32 0.0, %v2679
    %v2681 = vpop.f32.mrf.mxu0
    %2682 = vmatprep.mubr.bf16.mxu0 0
    %2683 = vmatmul.mubr.bf16.gmra.mxu0 %v2492
    %v2684 = vpop.f32.mrf.mxu0
    %v2685 = vadd.f32 0.0, %v2684
    %v2686 = vpop.f32.mrf.mxu0
    %v2687 = vpop.f32.mrf.mxu0
    %v2688 = vadd.f32 0.0, %v2687
    %v2689 = vpop.f32.mrf.mxu0
    %2690 = vmatprep.mubr.bf16.mxu0 0
    %2691 = vmatmul.mubr.bf16.gmra.mxu0 %v2493
    %v2692 = vpop.f32.mrf.mxu0
    %v2693 = vadd.f32 0.0, %v2692
    %v2694 = vpop.f32.mrf.mxu0
    %v2695 = vpop.f32.mrf.mxu0
    %v2696 = vadd.f32 0.0, %v2695
    %v2697 = vpop.f32.mrf.mxu0
    %2698 = vmatprep.mubr.bf16.mxu0 0
    %2699 = vmatmul.mubr.bf16.gmra.mxu0 %v2494
    %v2700 = vpop.f32.mrf.mxu0
    %v2701 = vadd.f32 0.0, %v2700
    %v2702 = vpop.f32.mrf.mxu0
    %v2703 = vpop.f32.mrf.mxu0
    %v2704 = vadd.f32 0.0, %v2703
    %v2705 = vpop.f32.mrf.mxu0
    %2706 = vmatprep.mubr.bf16.mxu0 0
    %2707 = vmatmul.mubr.bf16.gmra.mxu0 %v2495
    %v2708 = vpop.f32.mrf.mxu0
    %v2709 = vadd.f32 0.0, %v2708
    %v2710 = vpop.f32.mrf.mxu0
    %v2711 = vpop.f32.mrf.mxu0
    %v2712 = vadd.f32 0.0, %v2711
    %v2713 = vpop.f32.mrf.mxu0
    %2714 = vmatprep.mubr.bf16.mxu0 0
    %2715 = vmatmul.mubr.bf16.gmra.mxu0 %v2496
    %v2716 = vpop.f32.mrf.mxu0
    %v2717 = vadd.f32 0.0, %v2716
    %v2718 = vpop.f32.mrf.mxu0
    %v2719 = vpop.f32.mrf.mxu0
    %v2720 = vadd.f32 0.0, %v2719
    %v2721 = vpop.f32.mrf.mxu0
    %2722 = vdwg.mxu0
    %v2723 = vadd.f32 %v2174, %v2597
    %v2724 = vadd.f32 %v2175, %v2600
    %v2725 = vadd.f32 %v2176, %v2605
    %v2726 = vadd.f32 %v2177, %v2608
    %v2727 = vadd.f32 %v2178, %v2613
    %v2728 = vadd.f32 %v2179, %v2616
    %v2729 = vadd.f32 %v2180, %v2621
    %v2730 = vadd.f32 %v2181, %v2624
    %v2731 = vadd.f32 %v2182, %v2629
    %v2732 = vadd.f32 %v2183, %v2632
    %v2733 = vadd.f32 %v2184, %v2637
    %v2734 = vadd.f32 %v2185, %v2640
    %v2735 = vadd.f32 %v2186, %v2645
    %v2736 = vadd.f32 %v2187, %v2648
    %v2737 = vadd.f32 %v2188, %v2653
    %v2738 = vadd.f32 %v2189, %v2656
    %v2739 = vadd.f32 %v2190, %v2661
    %v2740 = vadd.f32 %v2191, %v2664
    %v2741 = vadd.f32 %v2192, %v2669
    %v2742 = vadd.f32 %v2193, %v2672
    %v2743 = vadd.f32 %v2194, %v2677
    %v2744 = vadd.f32 %v2195, %v2680
    %v2745 = vadd.f32 %v2196, %v2685
    %v2746 = vadd.f32 %v2197, %v2688
    %v2747 = vadd.f32 %v2198, %v2693
    %v2748 = vadd.f32 %v2199, %v2696
    %v2749 = vadd.f32 %v2200, %v2701
    %v2750 = vadd.f32 %v2201, %v2704
    %v2751 = vadd.f32 %v2202, %v2709
    %v2752 = vadd.f32 %v2203, %v2712
    %v2753 = vadd.f32 %v2204, %v2717
    %v2754 = vadd.f32 %v2205, %v2720
    %v2755 = vld [vmem:[#allocation8] sm:$0xff]
    %v2756 = vld [vmem:[#allocation8 + $0x8] sm:$0xff]
    %v2757 = vld [vmem:[#allocation8 + $0x10] sm:$0x1]
    %v2758 = vld [vmem:[#allocation8 + $0x11] sm:$0x1]
    %v2759 = vlaneseq
    %v2760 = vshrl.u32 %v2759, 7
    %v2761 = vsub.s32 0, %v2760
    %v2762 = vrot.slane %v2757, %v2761
    %v2763 = vadd.f32 %v2723, %v2762
    %v2764 = vadd.f32 %v2724, %v2762
    %v2765 = vadd.f32 %v2725, %v2762
    %v2766 = vadd.f32 %v2726, %v2762
    %v2767 = vadd.f32 %v2727, %v2762
    %v2768 = vadd.f32 %v2728, %v2762
    %v2769 = vadd.f32 %v2729, %v2762
    %v2770 = vadd.f32 %v2730, %v2762
    %v2771 = vadd.f32 %v2731, %v2762
    %v2772 = vadd.f32 %v2732, %v2762
    %v2773 = vadd.f32 %v2733, %v2762
    %v2774 = vadd.f32 %v2734, %v2762
    %v2775 = vadd.f32 %v2735, %v2762
    %v2776 = vadd.f32 %v2736, %v2762
    %v2777 = vadd.f32 %v2737, %v2762
    %v2778 = vadd.f32 %v2738, %v2762
    %v2779 = vadd.f32 %v2739, %v2762
    %v2780 = vadd.f32 %v2740, %v2762
    %v2781 = vadd.f32 %v2741, %v2762
    %v2782 = vadd.f32 %v2742, %v2762
    %v2783 = vadd.f32 %v2743, %v2762
    %v2784 = vadd.f32 %v2744, %v2762
    %v2785 = vadd.f32 %v2745, %v2762
    %v2786 = vadd.f32 %v2746, %v2762
    %v2787 = vadd.f32 %v2747, %v2762
    %v2788 = vadd.f32 %v2748, %v2762
    %v2789 = vadd.f32 %v2749, %v2762
    %v2790 = vadd.f32 %v2750, %v2762
    %v2791 = vadd.f32 %v2751, %v2762
    %v2792 = vadd.f32 %v2752, %v2762
    %v2793 = vadd.f32 %v2753, %v2762
    %v2794 = vadd.f32 %v2754, %v2762
    %v2795 = vmax.f32 %v2763, 0.0
    %v2796 = vmax.f32 %v2764, 0.0
    %v2797 = vmax.f32 %v2765, 0.0
    %v2798 = vmax.f32 %v2766, 0.0
    %v2799 = vmax.f32 %v2767, 0.0
    %v2800 = vmax.f32 %v2768, 0.0
    %v2801 = vmax.f32 %v2769, 0.0
    %v2802 = vmax.f32 %v2770, 0.0
    %v2803 = vmax.f32 %v2771, 0.0
    %v2804 = vmax.f32 %v2772, 0.0
    %v2805 = vmax.f32 %v2773, 0.0
    %v2806 = vmax.f32 %v2774, 0.0
    %v2807 = vmax.f32 %v2775, 0.0
    %v2808 = vmax.f32 %v2776, 0.0
    %v2809 = vmax.f32 %v2777, 0.0
    %v2810 = vmax.f32 %v2778, 0.0
    %v2811 = vmax.f32 %v2779, 0.0
    %v2812 = vmax.f32 %v2780, 0.0
    %v2813 = vmax.f32 %v2781, 0.0
    %v2814 = vmax.f32 %v2782, 0.0
    %v2815 = vmax.f32 %v2783, 0.0
    %v2816 = vmax.f32 %v2784, 0.0
    %v2817 = vmax.f32 %v2785, 0.0
    %v2818 = vmax.f32 %v2786, 0.0
    %v2819 = vmax.f32 %v2787, 0.0
    %v2820 = vmax.f32 %v2788, 0.0
    %v2821 = vmax.f32 %v2789, 0.0
    %v2822 = vmax.f32 %v2790, 0.0
    %v2823 = vmax.f32 %v2791, 0.0
    %v2824 = vmax.f32 %v2792, 0.0
    %v2825 = vmax.f32 %v2793, 0.0
    %v2826 = vmax.f32 %v2794, 0.0
    %v2827 = vmul.f32 %v2795, %v2755
    %v2828 = vmul.f32 %v2796, %v2756
    %v2829 = vmul.f32 %v2797, %v2755
    %v2830 = vmul.f32 %v2798, %v2756
    %v2831 = vmul.f32 %v2799, %v2755
    %v2832 = vmul.f32 %v2800, %v2756
    %v2833 = vmul.f32 %v2801, %v2755
    %v2834 = vmul.f32 %v2802, %v2756
    %v2835 = vmul.f32 %v2803, %v2755
    %v2836 = vmul.f32 %v2804, %v2756
    %v2837 = vmul.f32 %v2805, %v2755
    %v2838 = vmul.f32 %v2806, %v2756
    %v2839 = vmul.f32 %v2807, %v2755
    %v2840 = vmul.f32 %v2808, %v2756
    %v2841 = vmul.f32 %v2809, %v2755
    %v2842 = vmul.f32 %v2810, %v2756
    %v2843 = vmul.f32 %v2811, %v2755
    %v2844 = vmul.f32 %v2812, %v2756
    %v2845 = vmul.f32 %v2813, %v2755
    %v2846 = vmul.f32 %v2814, %v2756
    %v2847 = vmul.f32 %v2815, %v2755
    %v2848 = vmul.f32 %v2816, %v2756
    %v2849 = vmul.f32 %v2817, %v2755
    %v2850 = vmul.f32 %v2818, %v2756
    %v2851 = vmul.f32 %v2819, %v2755
    %v2852 = vmul.f32 %v2820, %v2756
    %v2853 = vmul.f32 %v2821, %v2755
    %v2854 = vmul.f32 %v2822, %v2756
    %v2855 = vmul.f32 %v2823, %v2755
    %v2856 = vmul.f32 %v2824, %v2756
    %v2857 = vmul.f32 %v2825, %v2755
    %v2858 = vmul.f32 %v2826, %v2756
    %v2859 = vmax.f32 %v2827, %v2828
    %v2860 = vrot.slane %v2859, 4
    %v2861 = vmax.f32 %v2859, %v2860
    %v2862 = vrot.slane %v2861, 2
    %v2863 = vmax.f32 %v2861, %v2862
    %v2864 = vrot.slane %v2863, 1
    %v2865 = vmax.f32 %v2863, %v2864
    %v2866 = vmax.f32 %v2829, %v2830
    %v2867 = vrot.slane %v2866, 4
    %v2868 = vmax.f32 %v2866, %v2867
    %v2869 = vrot.slane %v2868, 2
    %v2870 = vmax.f32 %v2868, %v2869
    %v2871 = vrot.slane %v2870, 1
    %v2872 = vmax.f32 %v2870, %v2871
    %v2873 = vmax.f32 %v2831, %v2832
    %v2874 = vrot.slane %v2873, 4
    %v2875 = vmax.f32 %v2873, %v2874
    %v2876 = vrot.slane %v2875, 2
    %v2877 = vmax.f32 %v2875, %v2876
    %v2878 = vrot.slane %v2877, 1
    %v2879 = vmax.f32 %v2877, %v2878
    %v2880 = vmax.f32 %v2833, %v2834
    %v2881 = vrot.slane %v2880, 4
    %v2882 = vmax.f32 %v2880, %v2881
    %v2883 = vrot.slane %v2882, 2
    %v2884 = vmax.f32 %v2882, %v2883
    %v2885 = vrot.slane %v2884, 1
    %v2886 = vmax.f32 %v2884, %v2885
    %v2887 = vmax.f32 %v2835, %v2836
    %v2888 = vrot.slane %v2887, 4
    %v2889 = vmax.f32 %v2887, %v2888
    %v2890 = vrot.slane %v2889, 2
    %v2891 = vmax.f32 %v2889, %v2890
    %v2892 = vrot.slane %v2891, 1
    %v2893 = vmax.f32 %v2891, %v2892
    %v2894 = vmax.f32 %v2837, %v2838
    %v2895 = vrot.slane %v2894, 4
    %v2896 = vmax.f32 %v2894, %v2895
    %v2897 = vrot.slane %v2896, 2
    %v2898 = vmax.f32 %v2896, %v2897
    %v2899 = vrot.slane %v2898, 1
    %v2900 = vmax.f32 %v2898, %v2899
    %v2901 = vmax.f32 %v2839, %v2840
    %v2902 = vrot.slane %v2901, 4
    %v2903 = vmax.f32 %v2901, %v2902
    %v2904 = vrot.slane %v2903, 2
    %v2905 = vmax.f32 %v2903, %v2904
    %v2906 = vrot.slane %v2905, 1
    %v2907 = vmax.f32 %v2905, %v2906
    %v2908 = vmax.f32 %v2841, %v2842
    %v2909 = vrot.slane %v2908, 4
    %v2910 = vmax.f32 %v2908, %v2909
    %v2911 = vrot.slane %v2910, 2
    %v2912 = vmax.f32 %v2910, %v2911
    %v2913 = vrot.slane %v2912, 1
    %v2914 = vmax.f32 %v2912, %v2913
    %v2915 = vmax.f32 %v2843, %v2844
    %v2916 = vrot.slane %v2915, 4
    %v2917 = vmax.f32 %v2915, %v2916
    %v2918 = vrot.slane %v2917, 2
    %v2919 = vmax.f32 %v2917, %v2918
    %v2920 = vrot.slane %v2919, 1
    %v2921 = vmax.f32 %v2919, %v2920
    %v2922 = vmax.f32 %v2845, %v2846
    %v2923 = vrot.slane %v2922, 4
    %v2924 = vmax.f32 %v2922, %v2923
    %v2925 = vrot.slane %v2924, 2
    %v2926 = vmax.f32 %v2924, %v2925
    %v2927 = vrot.slane %v2926, 1
    %v2928 = vmax.f32 %v2926, %v2927
    %v2929 = vmax.f32 %v2847, %v2848
    %v2930 = vrot.slane %v2929, 4
    %v2931 = vmax.f32 %v2929, %v2930
    %v2932 = vrot.slane %v2931, 2
    %v2933 = vmax.f32 %v2931, %v2932
    %v2934 = vrot.slane %v2933, 1
    %v2935 = vmax.f32 %v2933, %v2934
    %v2936 = vmax.f32 %v2849, %v2850
    %v2937 = vrot.slane %v2936, 4
    %v2938 = vmax.f32 %v2936, %v2937
    %v2939 = vrot.slane %v2938, 2
    %v2940 = vmax.f32 %v2938, %v2939
    %v2941 = vrot.slane %v2940, 1
    %v2942 = vmax.f32 %v2940, %v2941
    %v2943 = vmax.f32 %v2851, %v2852
    %v2944 = vrot.slane %v2943, 4
    %v2945 = vmax.f32 %v2943, %v2944
    %v2946 = vrot.slane %v2945, 2
    %v2947 = vmax.f32 %v2945, %v2946
    %v2948 = vrot.slane %v2947, 1
    %v2949 = vmax.f32 %v2947, %v2948
    %v2950 = vmax.f32 %v2853, %v2854
    %v2951 = vrot.slane %v2950, 4
    %v2952 = vmax.f32 %v2950, %v2951
    %v2953 = vrot.slane %v2952, 2
    %v2954 = vmax.f32 %v2952, %v2953
    %v2955 = vrot.slane %v2954, 1
    %v2956 = vmax.f32 %v2954, %v2955
    %v2957 = vmax.f32 %v2855, %v2856
    %v2958 = vrot.slane %v2957, 4
    %v2959 = vmax.f32 %v2957, %v2958
    %v2960 = vrot.slane %v2959, 2
    %v2961 = vmax.f32 %v2959, %v2960
    %v2962 = vrot.slane %v2961, 1
    %v2963 = vmax.f32 %v2961, %v2962
    %v2964 = vmax.f32 %v2857, %v2858
    %v2965 = vrot.slane %v2964, 4
    %v2966 = vmax.f32 %v2964, %v2965
    %v2967 = vrot.slane %v2966, 2
    %v2968 = vmax.f32 %v2966, %v2967
    %v2969 = vrot.slane %v2968, 1
    %v2970 = vmax.f32 %v2968, %v2969
    %v2971 = vld [vmem:[#allocation7] sm:$0xff]
    %v2972 = vld [vmem:[#allocation7 + $0x8] sm:$0xff]
    %v2973 = vld [vmem:[#allocation7 + $0x10] sm:$0xff]
    %v2974 = vld [vmem:[#allocation7 + $0x18] sm:$0xff]
    %v2975 = vld [vmem:[#allocation7 + $0x20] sm:$0xff]
    %v2976 = vld [vmem:[#allocation7 + $0x28] sm:$0xff]
    %v2977 = vld [vmem:[#allocation7 + $0x30] sm:$0xff]
    %v2978 = vld [vmem:[#allocation7 + $0x38] sm:$0xff]
    %v2979 = vld [vmem:[#allocation7 + $0x40] sm:$0xff]
    %v2980 = vld [vmem:[#allocation7 + $0x48] sm:$0xff]
    %v2981 = vld [vmem:[#allocation7 + $0x50] sm:$0xff]
    %v2982 = vld [vmem:[#allocation7 + $0x58] sm:$0xff]
    %v2983 = vld [vmem:[#allocation7 + $0x60] sm:$0xff]
    %v2984 = vld [vmem:[#allocation7 + $0x68] sm:$0xff]
    %v2985 = vld [vmem:[#allocation7 + $0x70] sm:$0xff]
    %v2986 = vld [vmem:[#allocation7 + $0x78] sm:$0xff]
    %v2987 = vlaneseq
    %v2988 = vshrl.u32 %v2987, 7
    %v2989 = vsub.s32 0, %v2988
    %v2990 = vrot.slane %v2758, %v2989
    %vm3007 = vcmask 1041409
    %v3008 = vsel %vm3007, %v2872, %v2865
    %vm3009 = vcmask 1042434
    %v3010 = vsel %vm3009, %v2879, %v3008
    %vm3011 = vcmask 1043459
    %v3012 = vsel %vm3011, %v2886, %v3010
    %vm3013 = vcmask 1044484
    %v3014 = vsel %vm3013, %v2893, %v3012
    %vm3015 = vcmask 1045509
    %v3016 = vsel %vm3015, %v2900, %v3014
    %vm3017 = vcmask 1046534
    %v3018 = vsel %vm3017, %v2907, %v3016
    %vm3019 = vcmask 1047559
    %v3020 = vsel %vm3019, %v2914, %v3018
    %v3021 = vsel %vm3007, %v2928, %v2921
    %v3022 = vsel %vm3009, %v2935, %v3021
    %v3023 = vsel %vm3011, %v2942, %v3022
    %v3024 = vsel %vm3013, %v2949, %v3023
    %v3025 = vsel %vm3015, %v2956, %v3024
    %v3026 = vsel %vm3017, %v2963, %v3025
    %v3027 = vsel %vm3019, %v2970, %v3026
    %3030 = vmatprep.subr.mxu0 0.0
    %3031 = vmatpush1.msra.mxu0 %v2986
    %3032 = vmatprep.subr.mxu0 0.0
    %3033 = vmatpush1.msra.mxu0 %v2985
    %3034 = vmatprep.subr.mxu0 0.0
    %3035 = vmatpush1.msra.mxu0 %v2984
    %3036 = vmatprep.subr.mxu0 0.0
    %3037 = vmatpush1.msra.mxu0 %v2983
    %3038 = vmatprep.subr.mxu0 0.0
    %3039 = vmatpush1.msra.mxu0 %v2982
    %3040 = vmatprep.subr.mxu0 0.0
    %3041 = vmatpush1.msra.mxu0 %v2981
    %3042 = vmatprep.subr.mxu0 0.0
    %3043 = vmatpush1.msra.mxu0 %v2980
    %3044 = vmatprep.subr.mxu0 0.0
    %3045 = vmatpush1.msra.mxu0 %v2979
    %3046 = vmatprep.subr.mxu0 0.0
    %3047 = vmatpush1.msra.mxu0 %v2978
    %3048 = vmatprep.subr.mxu0 0.0
    %3049 = vmatpush1.msra.mxu0 %v2977
    %3050 = vmatprep.subr.mxu0 0.0
    %3051 = vmatpush1.msra.mxu0 %v2976
    %3052 = vmatprep.subr.mxu0 0.0
    %3053 = vmatpush1.msra.mxu0 %v2975
    %3054 = vmatprep.subr.mxu0 0.0
    %3055 = vmatpush1.msra.mxu0 %v2974
    %3056 = vmatprep.subr.mxu0 0.0
    %3057 = vmatpush1.msra.mxu0 %v2973
    %3058 = vmatprep.subr.mxu0 0.0
    %3059 = vmatpush1.msra.mxu0 %v2972
    %3060 = vmatprep.subr.mxu0 0.0
    %3061 = vmatpush1.msra.mxu0 %v2971
    %3062 = vmatprep.subr.mxu0 0.0
    %3063 = vmatpush2.msra.mxu0 0.0
    %3064 = vmatprep.subr.mxu0 0.0
    %3065 = vmatpush2.msra.mxu0 0.0
    %3066 = vmatprep.subr.mxu0 0.0
    %3067 = vmatpush2.msra.mxu0 0.0
    %3068 = vmatprep.subr.mxu0 0.0
    %3069 = vmatpush2.msra.mxu0 0.0
    %3070 = vmatprep.subr.mxu0 0.0
    %3071 = vmatpush2.msra.mxu0 0.0
    %3072 = vmatprep.subr.mxu0 0.0
    %3073 = vmatpush2.msra.mxu0 0.0
    %3074 = vmatprep.subr.mxu0 0.0
    %3075 = vmatpush2.msra.mxu0 0.0
    %3076 = vmatprep.subr.mxu0 0.0
    %3077 = vmatpush2.msra.mxu0 0.0
    %3078 = vmatprep.subr.mxu0 0.0
    %3079 = vmatpush2.msra.mxu0 0.0
    %3080 = vmatprep.subr.mxu0 0.0
    %3081 = vmatpush2.msra.mxu0 0.0
    %3082 = vmatprep.subr.mxu0 0.0
    %3083 = vmatpush2.msra.mxu0 0.0
    %3084 = vmatprep.subr.mxu0 0.0
    %3085 = vmatpush2.msra.mxu0 0.0
    %3086 = vmatprep.subr.mxu0 0.0
    %3087 = vmatpush2.msra.mxu0 0.0
    %3088 = vmatprep.subr.mxu0 0.0
    %3089 = vmatpush2.msra.mxu0 0.0
    %3090 = vmatprep.subr.mxu0 0.0
    %3091 = vmatpush2.msra.mxu0 0.0
    %3092 = vmatprep.subr.mxu0 0.0
    %3093 = vmatpush2.msra.mxu0 0.0
    %3094 = vmatprep.mubr.f32.mxu0 0.0
    %3095 = vmatmul.mubr.f32.gmra.mxu0 %v3020
    %v3096 = vpop.f32.mrf.mxu0
    %v3097 = vadd.f32 %v2990, %v3096
    %v3098 = vpop.f32.mrf.mxu0
    %3099 = vmatprep.mubr.f32.mxu0 0.0
    %3100 = vmatmul.mubr.f32.gmra.mxu0 %v3027
    %v3101 = vpop.f32.mrf.mxu0
    %v3102 = vadd.f32 %v2990, %v3101
    %v3103 = vpop.f32.mrf.mxu0
    %3104 = vdwg.mxu0
    %3105 = vst [vmem:[#allocation10] sm:$0xff] %v3097
    %3106 = vst [vmem:[#allocation10 + $0x8] sm:$0xff] %v3102
    // Predicated region
    $region34: #{tpu_custom_call.1} parent=1 // pred_check
      _
    $region35: #{tpu_custom_call.1} parent=1 // pred_check_branch
      %3108 = sbr.rel (0) target = $region37
    $region36: #{tpu_custom_call.1} parent=1 // pred_region
      %s3110 = ssub.s32 256, 256
      %3111 = vsyncadd [#allocation4], %s3110
      %s3112 = sshll.u32 [#allocation10], 4
      %s3113 = int_to_ptr.vmem [resolvable:$true] %s3112
      %3118 = dma.vmem_to_hbm [thread:$0]  %s3113, 256, %s4, [#allocation4], 128, 128, 8
    $region37: #{tpu_custom_call.1} parent=1 // pred_fallthru
      _
    // Predicated region
    $region38: #{tpu_custom_call.1} parent=1 // pred_check
      _
    $region39: #{tpu_custom_call.1} parent=1 // pred_check_branch
      %3120 = sbr.rel (0) target = $region41
    $region40: #{tpu_custom_call.1} parent=1 // pred_region
      %3121 = dma.done [#allocation4], 256
    $region41: #{tpu_custom_call.1} parent=1 // pred_fallthru
      _
    %3122 = vsyncpa [#allocation3], 1
    %3123 = vsyncpa [#allocation6], 1
    %3124 = vsyncpa [#allocation9], 1
    %3125 = vsyncpa [#allocation4], 1

</llo_original>
